<compile_context>
chip_gen: v5e
topology: v5e:2x2
jax: 0.10.0
libtpu: 0.0.40
codegen_flags: <defaults>
</compile_context>

<pallas_src>
import functools

import jax
import jax.numpy as jnp
from jax.experimental import pallas as pl
from jax.experimental.pallas import tpu as pltpu

_LEFT_HALO = 8    # sublane-aligned left halo width of the pad scratch
_BAND = 8         # default row-band size for stages 2+3


def _round_up(n, m):
    return (n + m - 1) // m * m


def bottleneck_kernel(x_ref, w1_ref, w2_ref, w3_ref, b1_ref, b2_ref, b3_ref,
                      o_ref, pad_ref, *, band):
    # x_ref / o_ref: (1, H, W, Cp);  pad_ref: (H+2, PADW, Pp) bf16 scratch.
    _, H, W, Cp = x_ref.shape
    Pp = w1_ref.shape[1]
    PADW = pad_ref.shape[1]
    L = _LEFT_HALO
    f32 = jnp.float32
    bf16 = jnp.bfloat16

    # ---- stage 1: 1x1 conv (BN scale folded into w1) + bias + ReLU ----------
    # x is only needed here; the residual is re-read per band below.
    x = x_ref[0].astype(bf16).reshape(H * W, Cp)      # free collapse (W % 8 == 0)
    t1 = jnp.dot(x, w1_ref[...], preferred_element_type=f32) + b1_ref[...]
    t1 = jnp.maximum(t1, 0.0).astype(bf16)            # (H*W, Pp) bf16

    # ---- stage 2 setup: t1 into the zero-halo pad scratch --------------------
    # Left halo cols [0, L) and right halo cols [L+W, L+W+8) are zeroed with
    # aligned 8-wide stores; top/bottom rows with full-width stores.
    zcols = jnp.zeros((H + 2, L, Pp), bf16)
    pad_ref[:, 0:L, :] = zcols
    pad_ref[:, L + W:L + W + 8, :] = zcols
    zrow = jnp.zeros((1, PADW, Pp), bf16)
    pad_ref[0:1, :, :] = zrow
    pad_ref[H + 1:H + 2, :, :] = zrow
    # Interior store starts at sublane-aligned column L (unmasked stores).
    pad_ref[1:H + 1, L:L + W, :] = t1.reshape(H, W, Pp)

    # ---- stages 2 + 3, banded over rows (bounds vreg / VMEM live ranges) -----
    def band_body(i, carry):
        r = pl.multiple_of(i * band, band)            # first output row of band

        # 3x3 conv, stride 1, pad 1: 3 shifted window loads (one per kx);
        # the 3 ky taps are free leading-axis slices of each loaded value.
        acc = None
        for kx in range(3):
            win_kx = pad_ref[pl.ds(r, band + 2), L - 1 + kx:L - 1 + kx + W, :]
            for ky in range(3):
                win = win_kx[ky:ky + band].reshape(band * W, Pp)
                d = jnp.dot(win, w2_ref[ky, kx], preferred_element_type=f32)
                acc = d if acc is None else acc + d
        t2 = jnp.maximum(acc + b2_ref[...], 0.0).astype(bf16)   # (band*W, Pp)

        # 1x1 conv + bias, residual add (f32), ReLU.
        t3 = jnp.dot(t2, w3_ref[...], preferred_element_type=f32) + b3_ref[...]
        res = x_ref[:, pl.ds(r, band), :, :].astype(f32).reshape(band * W, Cp)
        out = jnp.maximum(t3 + res, 0.0)
        o_ref[:, pl.ds(r, band), :, :] = (
            out.reshape(1, band, W, Cp).astype(o_ref.dtype))
        return carry

    nb = H // band
    jax.lax.fori_loop(0, nb, band_body, 0, unroll=(nb <= 4))


def _fold_bn_weights(w1, w2, w3, s1, s2, s3):
    """Fold eval-mode BatchNorm scales into the conv weights (in f32)."""
    f32 = jnp.float32
    P = w1.shape[1]
    Cout = w3.shape[1]
    w1f = w1.astype(f32) * s1.reshape(1, P)
    w2f = w2.astype(f32) * s2.reshape(1, 1, 1, P)
    w3f = w3.astype(f32) * s3.reshape(1, Cout)
    return w1f, w2f, w3f


def bottleneck_pallas(x, w1, w2, w3, s1, b1, s2, b2, s3, b3):
    """x: (N, H, W, Cin) NHWC.  w1: (Cin, P), w2: (3, 3, P, P) HWIO, w3: (P, Cout).
    s*/b*: eval-mode BN affine (scale, bias) per channel, shape (1, C)."""
    N, H, W, Cin = x.shape
    P = w1.shape[1]
    Cout = w3.shape[1]
    # Residual path requires inplanes == planes * expansion and stride 1.
    assert Cin == Cout, "Bottleneck identity shortcut needs inplanes == planes*4"
    assert w2.shape == (3, 3, P, P)
    assert W % 8 == 0, "W must be a multiple of 8 (sublane alignment)"

    f32, bf16 = jnp.float32, jnp.bfloat16
    LANE = 128
    Cp = _round_up(Cin, LANE)
    Pp = _round_up(P, LANE)
    band = _BAND if H % _BAND == 0 else H
    PADW = _LEFT_HALO + W + 8                      # 8-wide halo on both sides

    # BN fold in f32, then cast the MXU operands to bf16; biases stay f32.
    w1f, w2f, w3f = _fold_bn_weights(w1, w2, w3, s1, s2, s3)
    w1p = jnp.zeros((Cp, Pp), bf16).at[:Cin, :P].set(w1f.astype(bf16))
    w2p = jnp.zeros((3, 3, Pp, Pp), bf16).at[:, :, :P, :P].set(w2f.astype(bf16))
    w3p = jnp.zeros((Pp, Cp), bf16).at[:P, :Cout].set(w3f.astype(bf16))
    b1p = jnp.zeros((1, Pp), f32).at[:, :P].set(b1.reshape(1, P).astype(f32))
    b2p = jnp.zeros((1, Pp), f32).at[:, :P].set(b2.reshape(1, P).astype(f32))
    b3p = jnp.zeros((1, Cp), f32).at[:, :Cout].set(b3.reshape(1, Cout).astype(f32))

    # Lane-pad activations only when needed (real Bottleneck channel counts
    # 256/512/1024/2048 skip both this pad and the output slice).
    xp = x if Cin == Cp else jnp.pad(x, ((0, 0), (0, 0), (0, 0), (0, Cp - Cin)))

    # Explicit scoped-VMEM budget: double-buffered activation blocks,
    # single-buffered weights, bf16 pad scratch, 2x headroom for temporaries.
    act_bytes = H * W * Cp * (xp.dtype.itemsize + jnp.dtype(x.dtype).itemsize)
    weight_bytes = sum(int(a.size) * a.dtype.itemsize
                       for a in (w1p, w2p, w3p, b1p, b2p, b3p))
    scratch_bytes = (H + 2) * PADW * Pp * 2
    vmem_limit = int(min(max(2 * (2 * act_bytes + weight_bytes + scratch_bytes),
                             32 << 20), 64 << 20))

    kernel = functools.partial(bottleneck_kernel, band=band)
    single = pl.Buffered(1)     # constant-index blocks: no double buffering

    out_p = pl.pallas_call(
        kernel,
        out_shape=jax.ShapeDtypeStruct((N, H, W, Cp), x.dtype),
        grid_spec=pltpu.PrefetchScalarGridSpec(
            num_scalar_prefetch=0,
            grid=(N,),
            in_specs=[
                pl.BlockSpec((1, H, W, Cp), lambda n: (n, 0, 0, 0)),
                pl.BlockSpec((Cp, Pp), lambda n: (0, 0), pipeline_mode=single),
                pl.BlockSpec((3, 3, Pp, Pp), lambda n: (0, 0, 0, 0),
                             pipeline_mode=single),
                pl.BlockSpec((Pp, Cp), lambda n: (0, 0), pipeline_mode=single),
                pl.BlockSpec((1, Pp), lambda n: (0, 0), pipeline_mode=single),
                pl.BlockSpec((1, Pp), lambda n: (0, 0), pipeline_mode=single),
                pl.BlockSpec((1, Cp), lambda n: (0, 0), pipeline_mode=single),
            ],
            out_specs=pl.BlockSpec((1, H, W, Cp), lambda n: (n, 0, 0, 0)),
            scratch_shapes=[pltpu.VMEM((H + 2, PADW, Pp), jnp.bfloat16)],
        ),
        compiler_params=pltpu.CompilerParams(
            dimension_semantics=("parallel",),
            vmem_limit_bytes=vmem_limit),
    )(xp, w1p, w2p, w3p, b1p, b2p, b3p)

    return out_p if Cout == Cp else out_p[..., :Cout]


def reference(x, w1, w2, w3, s1, b1, s2, b2, s3, b3,
              compute_dtype=jnp.float32):
    """Pure-JAX reference (lax.conv, NHWC/HWIO).  compute_dtype selects the
    precision of the conv operands (f32, or bf16 to mirror the kernel's MXU
    precision); accumulation, bias, ReLU and the residual stay in f32."""
    f32 = jnp.float32
    cd = compute_dtype
    dn = ('NHWC', 'HWIO', 'NHWC')
    w1f, w2f, w3f = _fold_bn_weights(w1, w2, w3, s1, s2, s3)

    def conv(a, w, padding):
        return jax.lax.conv_general_dilated(
            a.astype(cd), w.astype(cd), (1, 1), padding,
            dimension_numbers=dn, preferred_element_type=f32)

    t = conv(x, w1f.reshape(1, 1, *w1f.shape), 'VALID') + b1.astype(f32)
    t = jnp.maximum(t, 0.0)
    t = conv(t, w2f, 'SAME') + b2.astype(f32)
    t = jnp.maximum(t, 0.0)
    t = conv(t, w3f.reshape(1, 1, *w3f.shape), 'VALID') + b3.astype(f32)
    return jnp.maximum(t + x.astype(f32), 0.0)


def make_bn_affine(key, c):
    kg, kb, km, kv = jax.random.split(key, 4)
    gamma = 1.0 + 0.1 * jax.random.normal(kg, (c,), jnp.float32)
    beta = 0.1 * jax.random.normal(kb, (c,), jnp.float32)
    mean = 0.1 * jax.random.normal(km, (c,), jnp.float32)
    var = 1.0 + 0.1 * jax.random.uniform(kv, (c,), jnp.float32)
    eps = 1e-5
    scale = gamma / jnp.sqrt(var + eps)
    bias = beta - mean * scale
    return scale.reshape(1, c), bias.reshape(1, c)


if __name__ == "__main__":
    # Bottleneck residual add requires inplanes == planes * expansion (=4), stride=1.
    planes = 8
    inplanes = planes * 4            # 32
    N, H, W = 2, 16, 16

    key = jax.random.PRNGKey(0)
    ks = jax.random.split(key, 7)

    x = jax.random.normal(ks[0], (N, H, W, inplanes), jnp.float32)

    # conv weights stored matmul-ready: 1x1 convs as (Cin, Cout); 3x3 as HWIO.
    w1 = 0.1 * jax.random.normal(ks[1], (inplanes, planes), jnp.float32)
    w2 = 0.1 * jax.random.normal(ks[2], (3, 3, planes, planes), jnp.float32)
    w3 = 0.1 * jax.random.normal(ks[3], (planes, inplanes), jnp.float32)

    s1, b1 = make_bn_affine(ks[4], planes)
    s2, b2 = make_bn_affine(ks[5], planes)
    s3, b3 = make_bn_affine(ks[6], inplanes)

    out = bottleneck_pallas(x, w1, w2, w3, s1, b1, s2, b2, s3, b3)
    out = jax.block_until_ready(out)
    assert out.shape == (N, H, W, inplanes)
    assert out.dtype == x.dtype

    # Tight check vs a reference that mirrors the kernel's precision choices
    # (bf16 MXU operands, f32 accumulation / bias / ReLU / residual).
    ref_bf16 = reference(x, w1, w2, w3, s1, b1, s2, b2, s3, b3,
                         compute_dtype=jnp.bfloat16)
    assert jnp.allclose(out, ref_bf16, atol=1e-3, rtol=1e-3), \
        "mismatch vs bf16-matched reference"

    # Loose sanity check vs the pure-f32 reference (bf16 rounding budget).
    ref_f32 = reference(x, w1, w2, w3, s1, b1, s2, b2, s3, b3,
                        compute_dtype=jnp.float32)
    assert jnp.allclose(out, ref_f32, atol=5e-2, rtol=5e-2), \
        "mismatch vs f32 reference beyond bf16 rounding budget"

    print("KERNEL_OK")
</pallas_src>

<mosaic_0001>
module attributes {stable_mosaic.version = 11 : i64} {
  func.func @bottleneck_kernel(%arg0: i32, %arg1: memref<1x16x16x128xf32, #tpu.memory_space<vmem>>, %arg2: memref<128x128xbf16, #tpu.memory_space<vmem>>, %arg3: memref<3x3x128x128xbf16, #tpu.memory_space<vmem>>, %arg4: memref<128x128xbf16, #tpu.memory_space<vmem>>, %arg5: memref<1x128xf32, #tpu.memory_space<vmem>>, %arg6: memref<1x128xf32, #tpu.memory_space<vmem>>, %arg7: memref<1x128xf32, #tpu.memory_space<vmem>>, %arg8: memref<1x16x16x128xf32, #tpu.memory_space<vmem>>, %arg9: memref<18x32x128xbf16, #tpu.memory_space<vmem>>) attributes {dimension_semantics = [#tpu.dimension_semantics<parallel>], iteration_bounds = array<i64: 2>, scalar_prefetch = 0 : i64, scratch_operands = 1 : i64, tpu.core_type = #tpu.core_type<tc>, window_params = [{transform_indices = @transform_0, window_bounds = array<i64: 1, 16, 16, 128>}, {pipeline_mode = #tpu.pipeline_mode<synchronous>, transform_indices = @transform_1, window_bounds = array<i64: 128, 128>}, {pipeline_mode = #tpu.pipeline_mode<synchronous>, transform_indices = @transform_2, window_bounds = array<i64: 3, 3, 128, 128>}, {pipeline_mode = #tpu.pipeline_mode<synchronous>, transform_indices = @transform_3, window_bounds = array<i64: 128, 128>}, {pipeline_mode = #tpu.pipeline_mode<synchronous>, transform_indices = @transform_4, window_bounds = array<i64: 1, 128>}, {pipeline_mode = #tpu.pipeline_mode<synchronous>, transform_indices = @transform_5, window_bounds = array<i64: 1, 128>}, {pipeline_mode = #tpu.pipeline_mode<synchronous>, transform_indices = @transform_6, window_bounds = array<i64: 1, 128>}, {transform_indices = @transform_7, window_bounds = array<i64: 1, 16, 16, 128>}]} {
    %c0 = arith.constant 0 : index
    %c0_0 = arith.constant 0 : index
    %c0_1 = arith.constant 0 : index
    %c0_2 = arith.constant 0 : index
    %0 = vector.load %arg1[%c0, %c0_0, %c0_1, %c0_2] : memref<1x16x16x128xf32, #tpu.memory_space<vmem>>, vector<1x16x16x128xf32>
    %1 = vector.shape_cast %0 : vector<1x16x16x128xf32> to vector<16x16x128xf32>
    %2 = arith.truncf %1 : vector<16x16x128xf32> to vector<16x16x128xbf16>
    %3 = vector.shape_cast %2 : vector<16x16x128xbf16> to vector<256x128xbf16>
    %c0_3 = arith.constant 0 : index
    %c0_4 = arith.constant 0 : index
    %4 = vector.load %arg2[%c0_3, %c0_4] : memref<128x128xbf16, #tpu.memory_space<vmem>>, vector<128x128xbf16>
    %cst = arith.constant dense<0.000000e+00> : vector<256x128xf32>
    %5 = tpu.matmul %3, %4, %cst {dimension_numbers = #tpu.dot_dimension_numbers<[1], [0], [0], [1], [0, 0, 1, 1], [], []>} : vector<256x128xbf16>, vector<128x128xbf16>, vector<256x128xf32> -> vector<256x128xf32>
    %c0_5 = arith.constant 0 : index
    %c0_6 = arith.constant 0 : index
    %6 = vector.load %arg5[%c0_5, %c0_6] : memref<1x128xf32, #tpu.memory_space<vmem>>, vector<1x128xf32>
    %7 = vector.broadcast %6 : vector<1x128xf32> to vector<256x128xf32>
    %8 = arith.addf %5, %7 : vector<256x128xf32>
    %cst_7 = arith.constant 0.000000e+00 : f32
    %9 = vector.broadcast %cst_7 : f32 to vector<256x128xf32>
    %10 = arith.maximumf %8, %9 : vector<256x128xf32>
    %11 = arith.truncf %10 : vector<256x128xf32> to vector<256x128xbf16>
    %cst_8 = arith.constant 0.000000e+00 : bf16
    %12 = vector.broadcast %cst_8 : bf16 to vector<18x8x128xbf16>
    %c0_9 = arith.constant 0 : index
    %c0_10 = arith.constant 0 : index
    %c0_11 = arith.constant 0 : index
    %13 = vector.load %arg9[%c0_9, %c0_10, %c0_11] : memref<18x32x128xbf16, #tpu.memory_space<vmem>>, vector<18x8x128xbf16>
    tpu.vector_store %arg9[%c0_9, %c0_10, %c0_11], %12 {strides = array<i32>} : memref<18x32x128xbf16, #tpu.memory_space<vmem>>, vector<18x8x128xbf16>,
    %c0_12 = arith.constant 0 : index
    %c24 = arith.constant 24 : index
    %c0_13 = arith.constant 0 : index
    %14 = vector.load %arg9[%c0_12, %c24, %c0_13] : memref<18x32x128xbf16, #tpu.memory_space<vmem>>, vector<18x8x128xbf16>
    tpu.vector_store %arg9[%c0_12, %c24, %c0_13], %12 {strides = array<i32>} : memref<18x32x128xbf16, #tpu.memory_space<vmem>>, vector<18x8x128xbf16>,
    %cst_14 = arith.constant 0.000000e+00 : bf16
    %15 = vector.broadcast %cst_14 : bf16 to vector<1x32x128xbf16>
    %c0_15 = arith.constant 0 : index
    %c0_16 = arith.constant 0 : index
    %c0_17 = arith.constant 0 : index
    %16 = vector.load %arg9[%c0_15, %c0_16, %c0_17] : memref<18x32x128xbf16, #tpu.memory_space<vmem>>, vector<1x32x128xbf16>
    tpu.vector_store %arg9[%c0_15, %c0_16, %c0_17], %15 {strides = array<i32>} : memref<18x32x128xbf16, #tpu.memory_space<vmem>>, vector<1x32x128xbf16>,
    %c17 = arith.constant 17 : index
    %c0_18 = arith.constant 0 : index
    %c0_19 = arith.constant 0 : index
    %17 = vector.load %arg9[%c17, %c0_18, %c0_19] : memref<18x32x128xbf16, #tpu.memory_space<vmem>>, vector<1x32x128xbf16>
    tpu.vector_store %arg9[%c17, %c0_18, %c0_19], %15 {strides = array<i32>} : memref<18x32x128xbf16, #tpu.memory_space<vmem>>, vector<1x32x128xbf16>,
    %18 = vector.shape_cast %11 : vector<256x128xbf16> to vector<16x16x128xbf16>
    %c1 = arith.constant 1 : index
    %c8 = arith.constant 8 : index
    %c0_20 = arith.constant 0 : index
    %19 = vector.load %arg9[%c1, %c8, %c0_20] : memref<18x32x128xbf16, #tpu.memory_space<vmem>>, vector<16x16x128xbf16>
    tpu.vector_store %arg9[%c1, %c8, %c0_20], %18 {strides = array<i32>} : memref<18x32x128xbf16, #tpu.memory_space<vmem>>, vector<16x16x128xbf16>,
    %c0_i32 = arith.constant 0 : i32
    %c8_i32 = arith.constant 8 : i32
    %20 = arith.muli %c0_i32, %c8_i32 : i32
    %21 = tpu.assume_multiple %20, 8 : i32
    %22 = arith.index_cast %21 : i32 to index
    %c7 = arith.constant 7 : index
    %c0_21 = arith.constant 0 : index
    %23 = vector.load %arg9[%22, %c7, %c0_21] : memref<18x32x128xbf16, #tpu.memory_space<vmem>>, vector<10x16x128xbf16>
    %24 = vector.extract_strided_slice %23 {offsets = [0, 0, 0], sizes = [8, 16, 128], strides = [1, 1, 1]} : vector<10x16x128xbf16> to vector<8x16x128xbf16>
    %25 = vector.shape_cast %24 : vector<8x16x128xbf16> to vector<128x128xbf16>
    %c0_22 = arith.constant 0 : index
    %c0_23 = arith.constant 0 : index
    %c0_24 = arith.constant 0 : index
    %c0_25 = arith.constant 0 : index
    %26 = vector.load %arg3[%c0_22, %c0_23, %c0_24, %c0_25] : memref<3x3x128x128xbf16, #tpu.memory_space<vmem>>, vector<1x1x128x128xbf16>
    %27 = vector.shape_cast %26 : vector<1x1x128x128xbf16> to vector<128x128xbf16>
    %cst_26 = arith.constant dense<0.000000e+00> : vector<128x128xf32>
    %28 = tpu.matmul %25, %27, %cst_26 {dimension_numbers = #tpu.dot_dimension_numbers<[1], [0], [0], [1], [0, 0, 1, 1], [], []>} : vector<128x128xbf16>, vector<128x128xbf16>, vector<128x128xf32> -> vector<128x128xf32>
    %29 = vector.extract_strided_slice %23 {offsets = [1, 0, 0], sizes = [8, 16, 128], strides = [1, 1, 1]} : vector<10x16x128xbf16> to vector<8x16x128xbf16>
    %30 = vector.shape_cast %29 : vector<8x16x128xbf16> to vector<128x128xbf16>
    %c1_27 = arith.constant 1 : index
    %c0_28 = arith.constant 0 : index
    %c0_29 = arith.constant 0 : index
    %c0_30 = arith.constant 0 : index
    %31 = vector.load %arg3[%c1_27, %c0_28, %c0_29, %c0_30] : memref<3x3x128x128xbf16, #tpu.memory_space<vmem>>, vector<1x1x128x128xbf16>
    %32 = vector.shape_cast %31 : vector<1x1x128x128xbf16> to vector<128x128xbf16>
    %cst_31 = arith.constant dense<0.000000e+00> : vector<128x128xf32>
    %33 = tpu.matmul %30, %32, %cst_31 {dimension_numbers = #tpu.dot_dimension_numbers<[1], [0], [0], [1], [0, 0, 1, 1], [], []>} : vector<128x128xbf16>, vector<128x128xbf16>, vector<128x128xf32> -> vector<128x128xf32>
    %34 = arith.addf %28, %33 : vector<128x128xf32>
    %35 = vector.extract_strided_slice %23 {offsets = [2, 0, 0], sizes = [8, 16, 128], strides = [1, 1, 1]} : vector<10x16x128xbf16> to vector<8x16x128xbf16>
    %36 = vector.shape_cast %35 : vector<8x16x128xbf16> to vector<128x128xbf16>
    %c2 = arith.constant 2 : index
    %c0_32 = arith.constant 0 : index
    %c0_33 = arith.constant 0 : index
    %c0_34 = arith.constant 0 : index
    %37 = vector.load %arg3[%c2, %c0_32, %c0_33, %c0_34] : memref<3x3x128x128xbf16, #tpu.memory_space<vmem>>, vector<1x1x128x128xbf16>
    %38 = vector.shape_cast %37 : vector<1x1x128x128xbf16> to vector<128x128xbf16>
    %cst_35 = arith.constant dense<0.000000e+00> : vector<128x128xf32>
    %39 = tpu.matmul %36, %38, %cst_35 {dimension_numbers = #tpu.dot_dimension_numbers<[1], [0], [0], [1], [0, 0, 1, 1], [], []>} : vector<128x128xbf16>, vector<128x128xbf16>, vector<128x128xf32> -> vector<128x128xf32>
    %40 = arith.addf %34, %39 : vector<128x128xf32>
    %41 = arith.index_cast %21 : i32 to index
    %c8_36 = arith.constant 8 : index
    %c0_37 = arith.constant 0 : index
    %42 = vector.load %arg9[%41, %c8_36, %c0_37] : memref<18x32x128xbf16, #tpu.memory_space<vmem>>, vector<10x16x128xbf16>
    %43 = vector.extract_strided_slice %42 {offsets = [0, 0, 0], sizes = [8, 16, 128], strides = [1, 1, 1]} : vector<10x16x128xbf16> to vector<8x16x128xbf16>
    %44 = vector.shape_cast %43 : vector<8x16x128xbf16> to vector<128x128xbf16>
    %c0_38 = arith.constant 0 : index
    %c1_39 = arith.constant 1 : index
    %c0_40 = arith.constant 0 : index
    %c0_41 = arith.constant 0 : index
    %45 = vector.load %arg3[%c0_38, %c1_39, %c0_40, %c0_41] : memref<3x3x128x128xbf16, #tpu.memory_space<vmem>>, vector<1x1x128x128xbf16>
    %46 = vector.shape_cast %45 : vector<1x1x128x128xbf16> to vector<128x128xbf16>
    %cst_42 = arith.constant dense<0.000000e+00> : vector<128x128xf32>
    %47 = tpu.matmul %44, %46, %cst_42 {dimension_numbers = #tpu.dot_dimension_numbers<[1], [0], [0], [1], [0, 0, 1, 1], [], []>} : vector<128x128xbf16>, vector<128x128xbf16>, vector<128x128xf32> -> vector<128x128xf32>
    %48 = arith.addf %40, %47 : vector<128x128xf32>
    %49 = vector.extract_strided_slice %42 {offsets = [1, 0, 0], sizes = [8, 16, 128], strides = [1, 1, 1]} : vector<10x16x128xbf16> to vector<8x16x128xbf16>
    %50 = vector.shape_cast %49 : vector<8x16x128xbf16> to vector<128x128xbf16>
    %c1_43 = arith.constant 1 : index
    %c1_44 = arith.constant 1 : index
    %c0_45 = arith.constant 0 : index
    %c0_46 = arith.constant 0 : index
    %51 = vector.load %arg3[%c1_43, %c1_44, %c0_45, %c0_46] : memref<3x3x128x128xbf16, #tpu.memory_space<vmem>>, vector<1x1x128x128xbf16>
    %52 = vector.shape_cast %51 : vector<1x1x128x128xbf16> to vector<128x128xbf16>
    %cst_47 = arith.constant dense<0.000000e+00> : vector<128x128xf32>
    %53 = tpu.matmul %50, %52, %cst_47 {dimension_numbers = #tpu.dot_dimension_numbers<[1], [0], [0], [1], [0, 0, 1, 1], [], []>} : vector<128x128xbf16>, vector<128x128xbf16>, vector<128x128xf32> -> vector<128x128xf32>
    %54 = arith.addf %48, %53 : vector<128x128xf32>
    %55 = vector.extract_strided_slice %42 {offsets = [2, 0, 0], sizes = [8, 16, 128], strides = [1, 1, 1]} : vector<10x16x128xbf16> to vector<8x16x128xbf16>
    %56 = vector.shape_cast %55 : vector<8x16x128xbf16> to vector<128x128xbf16>
    %c2_48 = arith.constant 2 : index
    %c1_49 = arith.constant 1 : index
    %c0_50 = arith.constant 0 : index
    %c0_51 = arith.constant 0 : index
    %57 = vector.load %arg3[%c2_48, %c1_49, %c0_50, %c0_51] : memref<3x3x128x128xbf16, #tpu.memory_space<vmem>>, vector<1x1x128x128xbf16>
    %58 = vector.shape_cast %57 : vector<1x1x128x128xbf16> to vector<128x128xbf16>
    %cst_52 = arith.constant dense<0.000000e+00> : vector<128x128xf32>
    %59 = tpu.matmul %56, %58, %cst_52 {dimension_numbers = #tpu.dot_dimension_numbers<[1], [0], [0], [1], [0, 0, 1, 1], [], []>} : vector<128x128xbf16>, vector<128x128xbf16>, vector<128x128xf32> -> vector<128x128xf32>
    %60 = arith.addf %54, %59 : vector<128x128xf32>
    %61 = arith.index_cast %21 : i32 to index
    %c9 = arith.constant 9 : index
    %c0_53 = arith.constant 0 : index
    %62 = vector.load %arg9[%61, %c9, %c0_53] : memref<18x32x128xbf16, #tpu.memory_space<vmem>>, vector<10x16x128xbf16>
    %63 = vector.extract_strided_slice %62 {offsets = [0, 0, 0], sizes = [8, 16, 128], strides = [1, 1, 1]} : vector<10x16x128xbf16> to vector<8x16x128xbf16>
    %64 = vector.shape_cast %63 : vector<8x16x128xbf16> to vector<128x128xbf16>
    %c0_54 = arith.constant 0 : index
    %c2_55 = arith.constant 2 : index
    %c0_56 = arith.constant 0 : index
    %c0_57 = arith.constant 0 : index
    %65 = vector.load %arg3[%c0_54, %c2_55, %c0_56, %c0_57] : memref<3x3x128x128xbf16, #tpu.memory_space<vmem>>, vector<1x1x128x128xbf16>
    %66 = vector.shape_cast %65 : vector<1x1x128x128xbf16> to vector<128x128xbf16>
    %cst_58 = arith.constant dense<0.000000e+00> : vector<128x128xf32>
    %67 = tpu.matmul %64, %66, %cst_58 {dimension_numbers = #tpu.dot_dimension_numbers<[1], [0], [0], [1], [0, 0, 1, 1], [], []>} : vector<128x128xbf16>, vector<128x128xbf16>, vector<128x128xf32> -> vector<128x128xf32>
    %68 = arith.addf %60, %67 : vector<128x128xf32>
    %69 = vector.extract_strided_slice %62 {offsets = [1, 0, 0], sizes = [8, 16, 128], strides = [1, 1, 1]} : vector<10x16x128xbf16> to vector<8x16x128xbf16>
    %70 = vector.shape_cast %69 : vector<8x16x128xbf16> to vector<128x128xbf16>
    %c1_59 = arith.constant 1 : index
    %c2_60 = arith.constant 2 : index
    %c0_61 = arith.constant 0 : index
    %c0_62 = arith.constant 0 : index
    %71 = vector.load %arg3[%c1_59, %c2_60, %c0_61, %c0_62] : memref<3x3x128x128xbf16, #tpu.memory_space<vmem>>, vector<1x1x128x128xbf16>
    %72 = vector.shape_cast %71 : vector<1x1x128x128xbf16> to vector<128x128xbf16>
    %cst_63 = arith.constant dense<0.000000e+00> : vector<128x128xf32>
    %73 = tpu.matmul %70, %72, %cst_63 {dimension_numbers = #tpu.dot_dimension_numbers<[1], [0], [0], [1], [0, 0, 1, 1], [], []>} : vector<128x128xbf16>, vector<128x128xbf16>, vector<128x128xf32> -> vector<128x128xf32>
    %74 = arith.addf %68, %73 : vector<128x128xf32>
    %75 = vector.extract_strided_slice %62 {offsets = [2, 0, 0], sizes = [8, 16, 128], strides = [1, 1, 1]} : vector<10x16x128xbf16> to vector<8x16x128xbf16>
    %76 = vector.shape_cast %75 : vector<8x16x128xbf16> to vector<128x128xbf16>
    %c2_64 = arith.constant 2 : index
    %c2_65 = arith.constant 2 : index
    %c0_66 = arith.constant 0 : index
    %c0_67 = arith.constant 0 : index
    %77 = vector.load %arg3[%c2_64, %c2_65, %c0_66, %c0_67] : memref<3x3x128x128xbf16, #tpu.memory_space<vmem>>, vector<1x1x128x128xbf16>
    %78 = vector.shape_cast %77 : vector<1x1x128x128xbf16> to vector<128x128xbf16>
    %cst_68 = arith.constant dense<0.000000e+00> : vector<128x128xf32>
    %79 = tpu.matmul %76, %78, %cst_68 {dimension_numbers = #tpu.dot_dimension_numbers<[1], [0], [0], [1], [0, 0, 1, 1], [], []>} : vector<128x128xbf16>, vector<128x128xbf16>, vector<128x128xf32> -> vector<128x128xf32>
    %80 = arith.addf %74, %79 : vector<128x128xf32>
    %c0_69 = arith.constant 0 : index
    %c0_70 = arith.constant 0 : index
    %81 = vector.load %arg6[%c0_69, %c0_70] : memref<1x128xf32, #tpu.memory_space<vmem>>, vector<1x128xf32>
    %82 = vector.broadcast %81 : vector<1x128xf32> to vector<128x128xf32>
    %83 = arith.addf %80, %82 : vector<128x128xf32>
    %cst_71 = arith.constant 0.000000e+00 : f32
    %84 = vector.broadcast %cst_71 : f32 to vector<128x128xf32>
    %85 = arith.maximumf %83, %84 : vector<128x128xf32>
    %86 = arith.truncf %85 : vector<128x128xf32> to vector<128x128xbf16>
    %c0_72 = arith.constant 0 : index
    %c0_73 = arith.constant 0 : index
    %87 = vector.load %arg4[%c0_72, %c0_73] : memref<128x128xbf16, #tpu.memory_space<vmem>>, vector<128x128xbf16>
    %cst_74 = arith.constant dense<0.000000e+00> : vector<128x128xf32>
    %88 = tpu.matmul %86, %87, %cst_74 {dimension_numbers = #tpu.dot_dimension_numbers<[1], [0], [0], [1], [0, 0, 1, 1], [], []>} : vector<128x128xbf16>, vector<128x128xbf16>, vector<128x128xf32> -> vector<128x128xf32>
    %c0_75 = arith.constant 0 : index
    %c0_76 = arith.constant 0 : index
    %89 = vector.load %arg7[%c0_75, %c0_76] : memref<1x128xf32, #tpu.memory_space<vmem>>, vector<1x128xf32>
    %90 = vector.broadcast %89 : vector<1x128xf32> to vector<128x128xf32>
    %91 = arith.addf %88, %90 : vector<128x128xf32>
    %c0_77 = arith.constant 0 : index
    %92 = arith.index_cast %21 : i32 to index
    %c0_78 = arith.constant 0 : index
    %c0_79 = arith.constant 0 : index
    %93 = vector.load %arg1[%c0_77, %92, %c0_78, %c0_79] : memref<1x16x16x128xf32, #tpu.memory_space<vmem>>, vector<1x8x16x128xf32>
    %94 = vector.shape_cast %93 : vector<1x8x16x128xf32> to vector<128x128xf32>
    %95 = arith.addf %91, %94 : vector<128x128xf32>
    %cst_80 = arith.constant 0.000000e+00 : f32
    %96 = vector.broadcast %cst_80 : f32 to vector<128x128xf32>
    %97 = arith.maximumf %95, %96 : vector<128x128xf32>
    %98 = vector.shape_cast %97 : vector<128x128xf32> to vector<1x8x16x128xf32>
    %c0_81 = arith.constant 0 : index
    %99 = arith.index_cast %21 : i32 to index
    %c0_82 = arith.constant 0 : index
    %c0_83 = arith.constant 0 : index
    %100 = vector.load %arg8[%c0_81, %99, %c0_82, %c0_83] : memref<1x16x16x128xf32, #tpu.memory_space<vmem>>, vector<1x8x16x128xf32>
    tpu.vector_store %arg8[%c0_81, %99, %c0_82, %c0_83], %98 {strides = array<i32>} : memref<1x16x16x128xf32, #tpu.memory_space<vmem>>, vector<1x8x16x128xf32>,
    %c1_i32 = arith.constant 1 : i32
    %c8_i32_84 = arith.constant 8 : i32
    %101 = arith.muli %c1_i32, %c8_i32_84 : i32
    %102 = tpu.assume_multiple %101, 8 : i32
    %103 = arith.index_cast %102 : i32 to index
    %c7_85 = arith.constant 7 : index
    %c0_86 = arith.constant 0 : index
    %104 = vector.load %arg9[%103, %c7_85, %c0_86] : memref<18x32x128xbf16, #tpu.memory_space<vmem>>, vector<10x16x128xbf16>
    %105 = vector.extract_strided_slice %104 {offsets = [0, 0, 0], sizes = [8, 16, 128], strides = [1, 1, 1]} : vector<10x16x128xbf16> to vector<8x16x128xbf16>
    %106 = vector.shape_cast %105 : vector<8x16x128xbf16> to vector<128x128xbf16>
    %c0_87 = arith.constant 0 : index
    %c0_88 = arith.constant 0 : index
    %c0_89 = arith.constant 0 : index
    %c0_90 = arith.constant 0 : index
    %107 = vector.load %arg3[%c0_87, %c0_88, %c0_89, %c0_90] : memref<3x3x128x128xbf16, #tpu.memory_space<vmem>>, vector<1x1x128x128xbf16>
    %108 = vector.shape_cast %107 : vector<1x1x128x128xbf16> to vector<128x128xbf16>
    %cst_91 = arith.constant dense<0.000000e+00> : vector<128x128xf32>
    %109 = tpu.matmul %106, %108, %cst_91 {dimension_numbers = #tpu.dot_dimension_numbers<[1], [0], [0], [1], [0, 0, 1, 1], [], []>} : vector<128x128xbf16>, vector<128x128xbf16>, vector<128x128xf32> -> vector<128x128xf32>
    %110 = vector.extract_strided_slice %104 {offsets = [1, 0, 0], sizes = [8, 16, 128], strides = [1, 1, 1]} : vector<10x16x128xbf16> to vector<8x16x128xbf16>
    %111 = vector.shape_cast %110 : vector<8x16x128xbf16> to vector<128x128xbf16>
    %c1_92 = arith.constant 1 : index
    %c0_93 = arith.constant 0 : index
    %c0_94 = arith.constant 0 : index
    %c0_95 = arith.constant 0 : index
    %112 = vector.load %arg3[%c1_92, %c0_93, %c0_94, %c0_95] : memref<3x3x128x128xbf16, #tpu.memory_space<vmem>>, vector<1x1x128x128xbf16>
    %113 = vector.shape_cast %112 : vector<1x1x128x128xbf16> to vector<128x128xbf16>
    %cst_96 = arith.constant dense<0.000000e+00> : vector<128x128xf32>
    %114 = tpu.matmul %111, %113, %cst_96 {dimension_numbers = #tpu.dot_dimension_numbers<[1], [0], [0], [1], [0, 0, 1, 1], [], []>} : vector<128x128xbf16>, vector<128x128xbf16>, vector<128x128xf32> -> vector<128x128xf32>
    %115 = arith.addf %109, %114 : vector<128x128xf32>
    %116 = vector.extract_strided_slice %104 {offsets = [2, 0, 0], sizes = [8, 16, 128], strides = [1, 1, 1]} : vector<10x16x128xbf16> to vector<8x16x128xbf16>
    %117 = vector.shape_cast %116 : vector<8x16x128xbf16> to vector<128x128xbf16>
    %c2_97 = arith.constant 2 : index
    %c0_98 = arith.constant 0 : index
    %c0_99 = arith.constant 0 : index
    %c0_100 = arith.constant 0 : index
    %118 = vector.load %arg3[%c2_97, %c0_98, %c0_99, %c0_100] : memref<3x3x128x128xbf16, #tpu.memory_space<vmem>>, vector<1x1x128x128xbf16>
    %119 = vector.shape_cast %118 : vector<1x1x128x128xbf16> to vector<128x128xbf16>
    %cst_101 = arith.constant dense<0.000000e+00> : vector<128x128xf32>
    %120 = tpu.matmul %117, %119, %cst_101 {dimension_numbers = #tpu.dot_dimension_numbers<[1], [0], [0], [1], [0, 0, 1, 1], [], []>} : vector<128x128xbf16>, vector<128x128xbf16>, vector<128x128xf32> -> vector<128x128xf32>
    %121 = arith.addf %115, %120 : vector<128x128xf32>
    %122 = arith.index_cast %102 : i32 to index
    %c8_102 = arith.constant 8 : index
    %c0_103 = arith.constant 0 : index
    %123 = vector.load %arg9[%122, %c8_102, %c0_103] : memref<18x32x128xbf16, #tpu.memory_space<vmem>>, vector<10x16x128xbf16>
    %124 = vector.extract_strided_slice %123 {offsets = [0, 0, 0], sizes = [8, 16, 128], strides = [1, 1, 1]} : vector<10x16x128xbf16> to vector<8x16x128xbf16>
    %125 = vector.shape_cast %124 : vector<8x16x128xbf16> to vector<128x128xbf16>
    %c0_104 = arith.constant 0 : index
    %c1_105 = arith.constant 1 : index
    %c0_106 = arith.constant 0 : index
    %c0_107 = arith.constant 0 : index
    %126 = vector.load %arg3[%c0_104, %c1_105, %c0_106, %c0_107] : memref<3x3x128x128xbf16, #tpu.memory_space<vmem>>, vector<1x1x128x128xbf16>
    %127 = vector.shape_cast %126 : vector<1x1x128x128xbf16> to vector<128x128xbf16>
    %cst_108 = arith.constant dense<0.000000e+00> : vector<128x128xf32>
    %128 = tpu.matmul %125, %127, %cst_108 {dimension_numbers = #tpu.dot_dimension_numbers<[1], [0], [0], [1], [0, 0, 1, 1], [], []>} : vector<128x128xbf16>, vector<128x128xbf16>, vector<128x128xf32> -> vector<128x128xf32>
    %129 = arith.addf %121, %128 : vector<128x128xf32>
    %130 = vector.extract_strided_slice %123 {offsets = [1, 0, 0], sizes = [8, 16, 128], strides = [1, 1, 1]} : vector<10x16x128xbf16> to vector<8x16x128xbf16>
    %131 = vector.shape_cast %130 : vector<8x16x128xbf16> to vector<128x128xbf16>
    %c1_109 = arith.constant 1 : index
    %c1_110 = arith.constant 1 : index
    %c0_111 = arith.constant 0 : index
    %c0_112 = arith.constant 0 : index
    %132 = vector.load %arg3[%c1_109, %c1_110, %c0_111, %c0_112] : memref<3x3x128x128xbf16, #tpu.memory_space<vmem>>, vector<1x1x128x128xbf16>
    %133 = vector.shape_cast %132 : vector<1x1x128x128xbf16> to vector<128x128xbf16>
    %cst_113 = arith.constant dense<0.000000e+00> : vector<128x128xf32>
    %134 = tpu.matmul %131, %133, %cst_113 {dimension_numbers = #tpu.dot_dimension_numbers<[1], [0], [0], [1], [0, 0, 1, 1], [], []>} : vector<128x128xbf16>, vector<128x128xbf16>, vector<128x128xf32> -> vector<128x128xf32>
    %135 = arith.addf %129, %134 : vector<128x128xf32>
    %136 = vector.extract_strided_slice %123 {offsets = [2, 0, 0], sizes = [8, 16, 128], strides = [1, 1, 1]} : vector<10x16x128xbf16> to vector<8x16x128xbf16>
    %137 = vector.shape_cast %136 : vector<8x16x128xbf16> to vector<128x128xbf16>
    %c2_114 = arith.constant 2 : index
    %c1_115 = arith.constant 1 : index
    %c0_116 = arith.constant 0 : index
    %c0_117 = arith.constant 0 : index
    %138 = vector.load %arg3[%c2_114, %c1_115, %c0_116, %c0_117] : memref<3x3x128x128xbf16, #tpu.memory_space<vmem>>, vector<1x1x128x128xbf16>
    %139 = vector.shape_cast %138 : vector<1x1x128x128xbf16> to vector<128x128xbf16>
    %cst_118 = arith.constant dense<0.000000e+00> : vector<128x128xf32>
    %140 = tpu.matmul %137, %139, %cst_118 {dimension_numbers = #tpu.dot_dimension_numbers<[1], [0], [0], [1], [0, 0, 1, 1], [], []>} : vector<128x128xbf16>, vector<128x128xbf16>, vector<128x128xf32> -> vector<128x128xf32>
    %141 = arith.addf %135, %140 : vector<128x128xf32>
    %142 = arith.index_cast %102 : i32 to index
    %c9_119 = arith.constant 9 : index
    %c0_120 = arith.constant 0 : index
    %143 = vector.load %arg9[%142, %c9_119, %c0_120] : memref<18x32x128xbf16, #tpu.memory_space<vmem>>, vector<10x16x128xbf16>
    %144 = vector.extract_strided_slice %143 {offsets = [0, 0, 0], sizes = [8, 16, 128], strides = [1, 1, 1]} : vector<10x16x128xbf16> to vector<8x16x128xbf16>
    %145 = vector.shape_cast %144 : vector<8x16x128xbf16> to vector<128x128xbf16>
    %c0_121 = arith.constant 0 : index
    %c2_122 = arith.constant 2 : index
    %c0_123 = arith.constant 0 : index
    %c0_124 = arith.constant 0 : index
    %146 = vector.load %arg3[%c0_121, %c2_122, %c0_123, %c0_124] : memref<3x3x128x128xbf16, #tpu.memory_space<vmem>>, vector<1x1x128x128xbf16>
    %147 = vector.shape_cast %146 : vector<1x1x128x128xbf16> to vector<128x128xbf16>
    %cst_125 = arith.constant dense<0.000000e+00> : vector<128x128xf32>
    %148 = tpu.matmul %145, %147, %cst_125 {dimension_numbers = #tpu.dot_dimension_numbers<[1], [0], [0], [1], [0, 0, 1, 1], [], []>} : vector<128x128xbf16>, vector<128x128xbf16>, vector<128x128xf32> -> vector<128x128xf32>
    %149 = arith.addf %141, %148 : vector<128x128xf32>
    %150 = vector.extract_strided_slice %143 {offsets = [1, 0, 0], sizes = [8, 16, 128], strides = [1, 1, 1]} : vector<10x16x128xbf16> to vector<8x16x128xbf16>
    %151 = vector.shape_cast %150 : vector<8x16x128xbf16> to vector<128x128xbf16>
    %c1_126 = arith.constant 1 : index
    %c2_127 = arith.constant 2 : index
    %c0_128 = arith.constant 0 : index
    %c0_129 = arith.constant 0 : index
    %152 = vector.load %arg3[%c1_126, %c2_127, %c0_128, %c0_129] : memref<3x3x128x128xbf16, #tpu.memory_space<vmem>>, vector<1x1x128x128xbf16>
    %153 = vector.shape_cast %152 : vector<1x1x128x128xbf16> to vector<128x128xbf16>
    %cst_130 = arith.constant dense<0.000000e+00> : vector<128x128xf32>
    %154 = tpu.matmul %151, %153, %cst_130 {dimension_numbers = #tpu.dot_dimension_numbers<[1], [0], [0], [1], [0, 0, 1, 1], [], []>} : vector<128x128xbf16>, vector<128x128xbf16>, vector<128x128xf32> -> vector<128x128xf32>
    %155 = arith.addf %149, %154 : vector<128x128xf32>
    %156 = vector.extract_strided_slice %143 {offsets = [2, 0, 0], sizes = [8, 16, 128], strides = [1, 1, 1]} : vector<10x16x128xbf16> to vector<8x16x128xbf16>
    %157 = vector.shape_cast %156 : vector<8x16x128xbf16> to vector<128x128xbf16>
    %c2_131 = arith.constant 2 : index
    %c2_132 = arith.constant 2 : index
    %c0_133 = arith.constant 0 : index
    %c0_134 = arith.constant 0 : index
    %158 = vector.load %arg3[%c2_131, %c2_132, %c0_133, %c0_134] : memref<3x3x128x128xbf16, #tpu.memory_space<vmem>>, vector<1x1x128x128xbf16>
    %159 = vector.shape_cast %158 : vector<1x1x128x128xbf16> to vector<128x128xbf16>
    %cst_135 = arith.constant dense<0.000000e+00> : vector<128x128xf32>
    %160 = tpu.matmul %157, %159, %cst_135 {dimension_numbers = #tpu.dot_dimension_numbers<[1], [0], [0], [1], [0, 0, 1, 1], [], []>} : vector<128x128xbf16>, vector<128x128xbf16>, vector<128x128xf32> -> vector<128x128xf32>
    %161 = arith.addf %155, %160 : vector<128x128xf32>
    %c0_136 = arith.constant 0 : index
    %c0_137 = arith.constant 0 : index
    %162 = vector.load %arg6[%c0_136, %c0_137] : memref<1x128xf32, #tpu.memory_space<vmem>>, vector<1x128xf32>
    %163 = vector.broadcast %162 : vector<1x128xf32> to vector<128x128xf32>
    %164 = arith.addf %161, %163 : vector<128x128xf32>
    %cst_138 = arith.constant 0.000000e+00 : f32
    %165 = vector.broadcast %cst_138 : f32 to vector<128x128xf32>
    %166 = arith.maximumf %164, %165 : vector<128x128xf32>
    %167 = arith.truncf %166 : vector<128x128xf32> to vector<128x128xbf16>
    %c0_139 = arith.constant 0 : index
    %c0_140 = arith.constant 0 : index
    %168 = vector.load %arg4[%c0_139, %c0_140] : memref<128x128xbf16, #tpu.memory_space<vmem>>, vector<128x128xbf16>
    %cst_141 = arith.constant dense<0.000000e+00> : vector<128x128xf32>
    %169 = tpu.matmul %167, %168, %cst_141 {dimension_numbers = #tpu.dot_dimension_numbers<[1], [0], [0], [1], [0, 0, 1, 1], [], []>} : vector<128x128xbf16>, vector<128x128xbf16>, vector<128x128xf32> -> vector<128x128xf32>
    %c0_142 = arith.constant 0 : index
    %c0_143 = arith.constant 0 : index
    %170 = vector.load %arg7[%c0_142, %c0_143] : memref<1x128xf32, #tpu.memory_space<vmem>>, vector<1x128xf32>
    %171 = vector.broadcast %170 : vector<1x128xf32> to vector<128x128xf32>
    %172 = arith.addf %169, %171 : vector<128x128xf32>
    %c0_144 = arith.constant 0 : index
    %173 = arith.index_cast %102 : i32 to index
    %c0_145 = arith.constant 0 : index
    %c0_146 = arith.constant 0 : index
    %174 = vector.load %arg1[%c0_144, %173, %c0_145, %c0_146] : memref<1x16x16x128xf32, #tpu.memory_space<vmem>>, vector<1x8x16x128xf32>
    %175 = vector.shape_cast %174 : vector<1x8x16x128xf32> to vector<128x128xf32>
    %176 = arith.addf %172, %175 : vector<128x128xf32>
    %cst_147 = arith.constant 0.000000e+00 : f32
    %177 = vector.broadcast %cst_147 : f32 to vector<128x128xf32>
    %178 = arith.maximumf %176, %177 : vector<128x128xf32>
    %179 = vector.shape_cast %178 : vector<128x128xf32> to vector<1x8x16x128xf32>
    %c0_148 = arith.constant 0 : index
    %180 = arith.index_cast %102 : i32 to index
    %c0_149 = arith.constant 0 : index
    %c0_150 = arith.constant 0 : index
    %181 = vector.load %arg8[%c0_148, %180, %c0_149, %c0_150] : memref<1x16x16x128xf32, #tpu.memory_space<vmem>>, vector<1x8x16x128xf32>
    tpu.vector_store %arg8[%c0_148, %180, %c0_149, %c0_150], %179 {strides = array<i32>} : memref<1x16x16x128xf32, #tpu.memory_space<vmem>>, vector<1x8x16x128xf32>,
    %c2_i32 = arith.constant 2 : i32
    return
  }
  func.func @transform_0(%arg0: i32) -> (i32, i32, i32, i32) {
    %c0_i32 = arith.constant 0 : i32
    %c0_i32_0 = arith.constant 0 : i32
    %c0_i32_1 = arith.constant 0 : i32
    %c0_i32_2 = arith.constant 0 : i32
    return %arg0, %c0_i32, %c0_i32_0, %c0_i32_1 : i32, i32, i32, i32
  }
  func.func @transform_1(%arg0: i32) -> (i32, i32) {
    %c0_i32 = arith.constant 0 : i32
    %c0_i32_0 = arith.constant 0 : i32
    %c0_i32_1 = arith.constant 0 : i32
    return %c0_i32, %c0_i32_0 : i32, i32
  }
  func.func @transform_2(%arg0: i32) -> (i32, i32, i32, i32) {
    %c0_i32 = arith.constant 0 : i32
    %c0_i32_0 = arith.constant 0 : i32
    %c0_i32_1 = arith.constant 0 : i32
    %c0_i32_2 = arith.constant 0 : i32
    %c0_i32_3 = arith.constant 0 : i32
    return %c0_i32, %c0_i32_0, %c0_i32_1, %c0_i32_2 : i32, i32, i32, i32
  }
  func.func @transform_3(%arg0: i32) -> (i32, i32) {
    %c0_i32 = arith.constant 0 : i32
    %c0_i32_0 = arith.constant 0 : i32
    %c0_i32_1 = arith.constant 0 : i32
    return %c0_i32, %c0_i32_0 : i32, i32
  }
  func.func @transform_4(%arg0: i32) -> (i32, i32) {
    %c0_i32 = arith.constant 0 : i32
    %c0_i32_0 = arith.constant 0 : i32
    %c0_i32_1 = arith.constant 0 : i32
    return %c0_i32, %c0_i32_0 : i32, i32
  }
  func.func @transform_5(%arg0: i32) -> (i32, i32) {
    %c0_i32 = arith.constant 0 : i32
    %c0_i32_0 = arith.constant 0 : i32
    %c0_i32_1 = arith.constant 0 : i32
    return %c0_i32, %c0_i32_0 : i32, i32
  }
  func.func @transform_6(%arg0: i32) -> (i32, i32) {
    %c0_i32 = arith.constant 0 : i32
    %c0_i32_0 = arith.constant 0 : i32
    %c0_i32_1 = arith.constant 0 : i32
    return %c0_i32, %c0_i32_0 : i32, i32
  }
  func.func @transform_7(%arg0: i32) -> (i32, i32, i32, i32) {
    %c0_i32 = arith.constant 0 : i32
    %c0_i32_0 = arith.constant 0 : i32
    %c0_i32_1 = arith.constant 0 : i32
    %c0_i32_2 = arith.constant 0 : i32
    return %arg0, %c0_i32, %c0_i32_0, %c0_i32_1 : i32, i32, i32, i32
  }
}

</mosaic_0001>

<llo_original>
// kernel: tpu_custom_call.1
$region0: #{tpu_custom_call.1}
  #allocation0 [shape = 'u32[]', space=smem, size = 0x4, offset = 0x4, fixed_abs, tag = 'smem constant byte address 0x4 - core index']
  #allocation1 [shape = 'u32[72,128]{1,0:T(1,128)}', space=vmem, size = 0x9000, scoped, tag = 'internal scratch']
  #allocation2 [shape = 'bf16[18,32,128]{2,1,0:T(8,128)(2,1)}', space=vmem, size = 0x24000, scoped, tag = 'scratch operand']
  %s0 = inlined_call_operand.hbm [shape: f32[2,16,16,128], index: 0, kind: input, shape index: {}]
  %s1 = inlined_call_operand.hbm [shape: bf16[128,128], index: 1, kind: input, shape index: {}]
  %s2 = inlined_call_operand.hbm [shape: bf16[3,3,128,128], index: 2, kind: input, shape index: {}]
  %s3 = inlined_call_operand.hbm [shape: bf16[128,128], index: 3, kind: input, shape index: {}]
  %s4 = inlined_call_operand.vmem [shape: f32[1,128], index: 4, kind: input, shape index: {}]
  %s5 = inlined_call_operand.vmem [shape: f32[1,128], index: 5, kind: input, shape index: {}]
  %s6 = inlined_call_operand.vmem [shape: f32[1,128], index: 6, kind: input, shape index: {}]
  %s7 = inlined_call_operand.hbm [shape: f32[2,16,16,128], index: 7, kind: output, shape index: {}]
  %s8 = sld [smem:[#allocation0]]
  $region77: #{tpu_custom_call.1} parent=0
    _
  %s10 = ssub.s32 1, %s8
  %s11 = scalar_select 0, %s10, %s8
  $region1: #{tpu_custom_call.1} parent=0
    #allocation3 [shape = 'u8[262144]{0}', space=vmem, size = 0x40000, scoped, tag = 'input window, operand 0']
    #allocation4 [shape = 's32[2]{0}', space=sflag, size = 0x8, scoped, tag = 'scoped memory for tpu_custom_call.1']
    #allocation5 [shape = 's32[2]{0}', space=sflag, size = 0x8, scoped, tag = 'scoped memory for tpu_custom_call.1']
    #allocation6 [shape = 'u8[32768]{0}', space=vmem, size = 0x8000, scoped, tag = 'input window, operand 1, single buffered']
    #allocation7 [shape = 's32[1]{0}', space=sflag, size = 0x4, scoped, tag = 'scoped memory for tpu_custom_call.1']
    #allocation8 [shape = 'u8[294912]{0}', space=vmem, size = 0x48000, scoped, tag = 'input window, operand 2, single buffered']
    #allocation9 [shape = 'u8[32768]{0}', space=vmem, size = 0x8000, scoped, tag = 'input window, operand 3, single buffered']
    #allocation10 [shape = 's32[1]{0}', space=sflag, size = 0x4, scoped, tag = 'scoped memory for tpu_custom_call.1']
    #allocation11 [shape = 'u8[262144]{0}', space=vmem, size = 0x40000, scoped, tag = 'output window, operand 0']
    %12 = vsyncpa [#allocation4], 0
    %s13 = scalar_lea.sflag [#allocation4], 1
    %14 = vsyncpa %s13, 0
    %15 = vsyncpa [#allocation7], 0
    %16 = vsyncpa [#allocation10], 0
    %17 = vsyncpa [#allocation5], 0
    %s18 = scalar_lea.sflag [#allocation5], 1
    %19 = vsyncpa %s18, 0
    loop: start=0, step=1, limit=4
    $region2: #{tpu_custom_call.1} parent=1 // loop_pre_header
      _
    $region3: #{tpu_custom_call.1} parent=1 // loop_header
      %s21 = sphi 0, %s25
      %p22 = scmp.ge.s32.totalorder %s21, 4
      %s31 = sphi 0, %s33
      %s34 = sphi 0, %s31
      %s35 = sphi 0, %s34
      %s51 = sphi 0, %s35
      %s55 = sphi 0, %s55
      %s57 = sphi 0, %s55
      %s58 = sphi 0, %s57
      %s72 = sphi 0, %s58
      %s76 = sphi 0, %s76
      %s78 = sphi 0, %s76
      %s79 = sphi 0, %s78
      %s93 = sphi 0, %s79
      %s97 = sphi 0, %s97
      %s99 = sphi 0, %s97
      %s100 = sphi 0, %s99
      %s114 = sphi 0, %s100
      %s118 = sphi 0, %s118
      %s120 = sphi 0, %s118
      %s121 = sphi 0, %s120
      %s135 = sphi 0, %s121
      %s139 = sphi 0, %s139
      %s141 = sphi 0, %s139
      %s142 = sphi 0, %s141
      %s156 = sphi 0, %s142
      %s160 = sphi 0, %s160
      %s162 = sphi 0, %s160
      %s163 = sphi 0, %s162
      %s177 = sphi 0, %s163
      %s183 = sphi 0, %s185
      %s186 = sphi 0, %s183
      %s187 = sphi 0, %s186
      %s203 = sphi 0, %s187
    $region4: #{tpu_custom_call.1} parent=1 // loop_header_branch
      %24 = sbr.rel (%p22) target = $region8
    $region5: #{tpu_custom_call.1} parent=1 // loop_body
      %s26 = ssub.s32 %s21, 1
      %s27 = ssub.s32 %s21, 2
      %s28 = sadd.s32 %s21, 1
      %s29 = ssub.s32 %s21, %s28
      %p30 = scmp.eq.s32.totalorder %s29, 0
      %s32 = sadd.s32 %s31, 1
      %s33 = scalar_select %p30, %s31, %s32
      %p36 = pneg %p30
      %p37 = scmp.eq.s32.totalorder %s21, 1
      %p38 = por %p36, %p37
      %p39 = scmp.ne.s32.totalorder %s31, %s34
      %p40 = scmp.eq.s32.totalorder %s21, 0
      %p41 = por %p39, %p40
      %p42 = scmp.ne.s32.totalorder %s31, %s34
      %p43 = scmp.eq.s32.totalorder %s26, 1
      %p44 = por %p42, %p43
      %p45 = scmp.ne.s32.totalorder %s34, %s35
      %p46 = scmp.eq.s32.totalorder %s26, 0
      %p47 = por %p45, %p46
      %p48 = scmp.ne.s32.totalorder %s34, %s35
      %p49 = scmp.eq.s32.totalorder %s27, 1
      %p50 = por %p48, %p49
      %p52 = scmp.ne.s32.totalorder %s35, %s51
      %p53 = scmp.eq.s32.totalorder %s27, 0
      %p54 = por %p52, %p53
      %s56 = sadd.s32 %s55, 1
      %p59 = scmp.eq.s32.totalorder %s21, 1
      %p60 = scmp.ne.s32.totalorder %s55, %s57
      %p61 = scmp.eq.s32.totalorder %s21, 0
      %p62 = por %p60, %p61
      %p63 = scmp.ne.s32.totalorder %s55, %s57
      %p64 = scmp.eq.s32.totalorder %s26, 1
      %p65 = por %p63, %p64
      %p66 = scmp.ne.s32.totalorder %s57, %s58
      %p67 = scmp.eq.s32.totalorder %s26, 0
      %p68 = por %p66, %p67
      %p69 = scmp.ne.s32.totalorder %s57, %s58
      %p70 = scmp.eq.s32.totalorder %s27, 1
      %p71 = por %p69, %p70
      %p73 = scmp.ne.s32.totalorder %s58, %s72
      %p74 = scmp.eq.s32.totalorder %s27, 0
      %p75 = por %p73, %p74
      %s77 = sadd.s32 %s76, 1
      %p80 = scmp.eq.s32.totalorder %s21, 1
      %p81 = scmp.ne.s32.totalorder %s76, %s78
      %p82 = scmp.eq.s32.totalorder %s21, 0
      %p83 = por %p81, %p82
      %p84 = scmp.ne.s32.totalorder %s76, %s78
      %p85 = scmp.eq.s32.totalorder %s26, 1
      %p86 = por %p84, %p85
      %p87 = scmp.ne.s32.totalorder %s78, %s79
      %p88 = scmp.eq.s32.totalorder %s26, 0
      %p89 = por %p87, %p88
      %p90 = scmp.ne.s32.totalorder %s78, %s79
      %p91 = scmp.eq.s32.totalorder %s27, 1
      %p92 = por %p90, %p91
      %p94 = scmp.ne.s32.totalorder %s79, %s93
      %p95 = scmp.eq.s32.totalorder %s27, 0
      %p96 = por %p94, %p95
      %s98 = sadd.s32 %s97, 1
      %p101 = scmp.eq.s32.totalorder %s21, 1
      %p102 = scmp.ne.s32.totalorder %s97, %s99
      %p103 = scmp.eq.s32.totalorder %s21, 0
      %p104 = por %p102, %p103
      %p105 = scmp.ne.s32.totalorder %s97, %s99
      %p106 = scmp.eq.s32.totalorder %s26, 1
      %p107 = por %p105, %p106
      %p108 = scmp.ne.s32.totalorder %s99, %s100
      %p109 = scmp.eq.s32.totalorder %s26, 0
      %p110 = por %p108, %p109
      %p111 = scmp.ne.s32.totalorder %s99, %s100
      %p112 = scmp.eq.s32.totalorder %s27, 1
      %p113 = por %p111, %p112
      %p115 = scmp.ne.s32.totalorder %s100, %s114
      %p116 = scmp.eq.s32.totalorder %s27, 0
      %p117 = por %p115, %p116
      %s119 = sadd.s32 %s118, 1
      %p122 = scmp.eq.s32.totalorder %s21, 1
      %p123 = scmp.ne.s32.totalorder %s118, %s120
      %p124 = scmp.eq.s32.totalorder %s21, 0
      %p125 = por %p123, %p124
      %p126 = scmp.ne.s32.totalorder %s118, %s120
      %p127 = scmp.eq.s32.totalorder %s26, 1
      %p128 = por %p126, %p127
      %p129 = scmp.ne.s32.totalorder %s120, %s121
      %p130 = scmp.eq.s32.totalorder %s26, 0
      %p131 = por %p129, %p130
      %p132 = scmp.ne.s32.totalorder %s120, %s121
      %p133 = scmp.eq.s32.totalorder %s27, 1
      %p134 = por %p132, %p133
      %p136 = scmp.ne.s32.totalorder %s121, %s135
      %p137 = scmp.eq.s32.totalorder %s27, 0
      %p138 = por %p136, %p137
      %s140 = sadd.s32 %s139, 1
      %p143 = scmp.eq.s32.totalorder %s21, 1
      %p144 = scmp.ne.s32.totalorder %s139, %s141
      %p145 = scmp.eq.s32.totalorder %s21, 0
      %p146 = por %p144, %p145
      %p147 = scmp.ne.s32.totalorder %s139, %s141
      %p148 = scmp.eq.s32.totalorder %s26, 1
      %p149 = por %p147, %p148
      %p150 = scmp.ne.s32.totalorder %s141, %s142
      %p151 = scmp.eq.s32.totalorder %s26, 0
      %p152 = por %p150, %p151
      %p153 = scmp.ne.s32.totalorder %s141, %s142
      %p154 = scmp.eq.s32.totalorder %s27, 1
      %p155 = por %p153, %p154
      %p157 = scmp.ne.s32.totalorder %s142, %s156
      %p158 = scmp.eq.s32.totalorder %s27, 0
      %p159 = por %p157, %p158
      %s161 = sadd.s32 %s160, 1
      %p164 = scmp.eq.s32.totalorder %s21, 1
      %p165 = scmp.ne.s32.totalorder %s160, %s162
      %p166 = scmp.eq.s32.totalorder %s21, 0
      %p167 = por %p165, %p166
      %p168 = scmp.ne.s32.totalorder %s160, %s162
      %p169 = scmp.eq.s32.totalorder %s26, 1
      %p170 = por %p168, %p169
      %p171 = scmp.ne.s32.totalorder %s162, %s163
      %p172 = scmp.eq.s32.totalorder %s26, 0
      %p173 = por %p171, %p172
      %p174 = scmp.ne.s32.totalorder %s162, %s163
      %p175 = scmp.eq.s32.totalorder %s27, 1
      %p176 = por %p174, %p175
      %p178 = scmp.ne.s32.totalorder %s163, %s177
      %p179 = scmp.eq.s32.totalorder %s27, 0
      %p180 = por %p178, %p179
      %s181 = ssub.s32 %s21, %s28
      %p182 = scmp.eq.s32.totalorder %s181, 0
      %s184 = sadd.s32 %s183, 1
      %s185 = scalar_select %p182, %s183, %s184
      %p188 = pneg %p182
      %p189 = scmp.eq.s32.totalorder %s21, 1
      %p190 = por %p188, %p189
      %p191 = scmp.ne.s32.totalorder %s183, %s186
      %p192 = scmp.eq.s32.totalorder %s21, 0
      %p193 = por %p191, %p192
      %p194 = scmp.ne.s32.totalorder %s183, %s186
      %p195 = scmp.eq.s32.totalorder %s26, 1
      %p196 = por %p194, %p195
      %p197 = scmp.ne.s32.totalorder %s186, %s187
      %p198 = scmp.eq.s32.totalorder %s26, 0
      %p199 = por %p197, %p198
      %p200 = scmp.ne.s32.totalorder %s186, %s187
      %p201 = scmp.eq.s32.totalorder %s27, 1
      %p202 = por %p200, %p201
      %p204 = scmp.ne.s32.totalorder %s187, %s203
      %p205 = scmp.eq.s32.totalorder %s27, 0
      %p206 = por %p204, %p205
      %p207 = scmp.le.s32.totalorder 1, %s21
      %p208 = scmp.lt.s32.totalorder %s21, 3
      %p209 = pnand %p207, %p208
      %p210 = pneg %p209
      // Predicated region
      $region9: #{tpu_custom_call.1} parent=5 // pred_check
        _
      $region10: #{tpu_custom_call.1} parent=5 // pred_check_branch
        %212 = sbr.rel (%p209) target = $region12
      $region11: #{tpu_custom_call.1} parent=5 // pred_region
        %s213 = ssub.s32 %s21, 1
        // Predicated region
        $region13: #{tpu_custom_call.1} parent=11 // pred_check
          %p214 = pneg %p68
        $region14: #{tpu_custom_call.1} parent=11 // pred_check_branch
          %216 = sbr.rel (%p214) target = $region16
        $region15: #{tpu_custom_call.1} parent=11 // pred_region
          %218 = vsyncadd [#allocation7], 0
          %s219 = sshll.u32 %s1, 4
          %s220 = int_to_ptr.hbm [resolvable:$true] %s219
          %s221 = sshll.u32 [#allocation6], 4
          %s222 = int_to_ptr.vmem [resolvable:$true] %s221
          %227 = dma.hbm_to_vmem [thread:$0]  %s220, 1024, %s222, [#allocation7], 64, 64, 4
        $region16: #{tpu_custom_call.1} parent=11 // pred_fallthru
          _
        // Predicated region
        $region17: #{tpu_custom_call.1} parent=11 // pred_check
          %p228 = pneg %p89
        $region18: #{tpu_custom_call.1} parent=11 // pred_check_branch
          %230 = sbr.rel (%p228) target = $region20
        $region19: #{tpu_custom_call.1} parent=11 // pred_region
          %232 = vsyncadd [#allocation7], 0
          %s233 = sshll.u32 %s2, 4
          %s234 = int_to_ptr.hbm [resolvable:$true] %s233
          %s235 = sshll.u32 [#allocation8], 4
          %s236 = int_to_ptr.vmem [resolvable:$true] %s235
          %241 = dma.hbm_to_vmem [thread:$0]  %s234, 9216, %s236, [#allocation7], 64, 64, 4
        $region20: #{tpu_custom_call.1} parent=11 // pred_fallthru
          _
        // Predicated region
        $region21: #{tpu_custom_call.1} parent=11 // pred_check
          %p242 = pneg %p110
        $region22: #{tpu_custom_call.1} parent=11 // pred_check_branch
          %244 = sbr.rel (%p242) target = $region24
        $region23: #{tpu_custom_call.1} parent=11 // pred_region
          %246 = vsyncadd [#allocation10], 0
          %s247 = sshll.u32 %s3, 4
          %s248 = int_to_ptr.hbm [resolvable:$true] %s247
          %s249 = sshll.u32 [#allocation9], 4
          %s250 = int_to_ptr.vmem [resolvable:$true] %s249
          %255 = dma.hbm_to_vmem [thread:$0]  %s248, 1024, %s250, [#allocation10], 64, 64, 4
        $region24: #{tpu_custom_call.1} parent=11 // pred_fallthru
          _
        // Predicated region
        $region25: #{tpu_custom_call.1} parent=11 // pred_check
          %p256 = pneg %p131
        $region26: #{tpu_custom_call.1} parent=11 // pred_check_branch
          %258 = sbr.rel (%p256) target = $region28
        $region27: #{tpu_custom_call.1} parent=11 // pred_region
          _
        $region28: #{tpu_custom_call.1} parent=11 // pred_fallthru
          _
        // Predicated region
        $region29: #{tpu_custom_call.1} parent=11 // pred_check
          %p259 = pneg %p152
        $region30: #{tpu_custom_call.1} parent=11 // pred_check_branch
          %261 = sbr.rel (%p259) target = $region32
        $region31: #{tpu_custom_call.1} parent=11 // pred_region
          _
        $region32: #{tpu_custom_call.1} parent=11 // pred_fallthru
          _
        // Predicated region
        $region33: #{tpu_custom_call.1} parent=11 // pred_check
          %p262 = pneg %p173
        $region34: #{tpu_custom_call.1} parent=11 // pred_check_branch
          %264 = sbr.rel (%p262) target = $region36
        $region35: #{tpu_custom_call.1} parent=11 // pred_region
          _
        $region36: #{tpu_custom_call.1} parent=11 // pred_fallthru
          _
      $region12: #{tpu_custom_call.1} parent=5 // pred_fallthru
        _
      %p265 = scmp.lt.s32.totalorder %s21, 2
      // Predicated region
      $region37: #{tpu_custom_call.1} parent=5 // pred_check
        %p266 = pneg %p265
      $region38: #{tpu_custom_call.1} parent=5 // pred_check_branch
        %268 = sbr.rel (%p266) target = $region40
      $region39: #{tpu_custom_call.1} parent=5 // pred_region
        // Predicated region
        $region41: #{tpu_custom_call.1} parent=39 // pred_check
          %p269 = pneg %p41
        $region42: #{tpu_custom_call.1} parent=39 // pred_check_branch
          %271 = sbr.rel (%p269) target = $region44
        $region43: #{tpu_custom_call.1} parent=39 // pred_region
          %s272 = sand.u32 %s31, 1
          %s273 = scalar_lea.sflag [#allocation4], %s272
          %s274 = sand.u32 %s31, 1
          %s275 = smul.addr %s274, 256
          %s276 = scalar_lea.vmem [#allocation3], %s275
          %278 = vsyncadd %s273, 0
          %s279 = smul.addr %s21, 32
          %s280 = smul.addr %s279, 8
          %s281 = scalar_lea.hbm %s0, %s280
          %s282 = sshll.u32 %s281, 4
          %s283 = int_to_ptr.hbm [resolvable:$true] %s282
          %s284 = sshll.u32 %s276, 4
          %s285 = int_to_ptr.vmem [resolvable:$true] %s284
          %290 = dma.hbm_to_vmem [thread:$0]  %s283, 4096, %s285, %s273, 128, 128, 8
        $region44: #{tpu_custom_call.1} parent=39 // pred_fallthru
          _
      $region40: #{tpu_custom_call.1} parent=5 // pred_fallthru
        _
      %p291 = scmp.le.s32.totalorder 1, %s21
      %p292 = scmp.lt.s32.totalorder %s21, 3
      %p293 = pnand %p291, %p292
      %p294 = pneg %p293
      // Predicated region
      $region45: #{tpu_custom_call.1} parent=5 // pred_check
        _
      $region46: #{tpu_custom_call.1} parent=5 // pred_check_branch
        %296 = sbr.rel (%p293) target = $region48
      $region47: #{tpu_custom_call.1} parent=5 // pred_region
        %s297 = ssub.s32 %s21, 1
        %s298 = sand.u32 %s34, 1
        %s299 = scalar_lea.sflag [#allocation4], %s298
        %s300 = sand.u32 %s34, 1
        %s301 = smul.addr %s300, 256
        %s302 = scalar_lea.vmem [#allocation3], %s301
        // Predicated region
        $region49: #{tpu_custom_call.1} parent=47 // pred_check
          %p303 = pneg %p47
        $region50: #{tpu_custom_call.1} parent=47 // pred_check_branch
          %305 = sbr.rel (%p303) target = $region52
        $region51: #{tpu_custom_call.1} parent=47 // pred_region
          %307 = dma.done %s299, 4096
        $region52: #{tpu_custom_call.1} parent=47 // pred_fallthru
          _
        // Predicated region
        $region53: #{tpu_custom_call.1} parent=47 // pred_check
          %p308 = pneg %p68
        $region54: #{tpu_custom_call.1} parent=47 // pred_check_branch
          %310 = sbr.rel (%p308) target = $region56
        $region55: #{tpu_custom_call.1} parent=47 // pred_region
          %312 = dma.done [#allocation7], 1024
        $region56: #{tpu_custom_call.1} parent=47 // pred_fallthru
          _
        // Predicated region
        $region57: #{tpu_custom_call.1} parent=47 // pred_check
          %p313 = pneg %p89
        $region58: #{tpu_custom_call.1} parent=47 // pred_check_branch
          %315 = sbr.rel (%p313) target = $region60
        $region59: #{tpu_custom_call.1} parent=47 // pred_region
          %317 = dma.done [#allocation7], 9216
        $region60: #{tpu_custom_call.1} parent=47 // pred_fallthru
          _
        // Predicated region
        $region61: #{tpu_custom_call.1} parent=47 // pred_check
          %p318 = pneg %p110
        $region62: #{tpu_custom_call.1} parent=47 // pred_check_branch
          %320 = sbr.rel (%p318) target = $region64
        $region63: #{tpu_custom_call.1} parent=47 // pred_region
          %322 = dma.done [#allocation10], 1024
        $region64: #{tpu_custom_call.1} parent=47 // pred_fallthru
          _
        %s323 = sand.u32 %s34, 1
        %s324 = scalar_lea.sflag [#allocation4], %s323
        %s325 = sand.u32 %s34, 1
        %s326 = smul.addr %s325, 256
        %s327 = scalar_lea.vmem [#allocation3], %s326
        %p328 = pneg %p47
        %p329 = pneg %p44
        %p330 = pneg %p68
        %p331 = pneg %p65
        %p332 = pneg %p89
        %p333 = pneg %p86
        %p334 = pneg %p110
        %p335 = pneg %p107
        %p336 = pneg %p131
        %p337 = pneg %p128
        %p338 = pneg %p152
        %p339 = pneg %p149
        %p340 = pneg %p173
        %p341 = pneg %p170
        %p342 = pneg %p199
        %p343 = pneg %p196
        %s344 = sand.u32 %s186, 1
        %s345 = scalar_lea.sflag [#allocation5], %s344
        %s346 = sand.u32 %s186, 1
        %s347 = smul.addr %s346, 256
        %s348 = scalar_lea.vmem [#allocation11], %s347
        %v350 = vld [vmem:[%s302] sm:$0xff]
        %v351 = vld [vmem:[%s302 + $0x8] sm:$0xff]
        %v352 = vld [vmem:[%s302 + $0x10] sm:$0xff]
        %v353 = vld [vmem:[%s302 + $0x18] sm:$0xff]
        %v354 = vld [vmem:[%s302 + $0x20] sm:$0xff]
        %v355 = vld [vmem:[%s302 + $0x28] sm:$0xff]
        %v356 = vld [vmem:[%s302 + $0x30] sm:$0xff]
        %v357 = vld [vmem:[%s302 + $0x38] sm:$0xff]
        %v358 = vld [vmem:[%s302 + $0x40] sm:$0xff]
        %v359 = vld [vmem:[%s302 + $0x48] sm:$0xff]
        %v360 = vld [vmem:[%s302 + $0x50] sm:$0xff]
        %v361 = vld [vmem:[%s302 + $0x58] sm:$0xff]
        %v362 = vld [vmem:[%s302 + $0x60] sm:$0xff]
        %v363 = vld [vmem:[%s302 + $0x68] sm:$0xff]
        %v364 = vld [vmem:[%s302 + $0x70] sm:$0xff]
        %v365 = vld [vmem:[%s302 + $0x78] sm:$0xff]
        %v366 = vld [vmem:[%s302 + $0x80] sm:$0xff]
        %v367 = vld [vmem:[%s302 + $0x88] sm:$0xff]
        %v368 = vld [vmem:[%s302 + $0x90] sm:$0xff]
        %v369 = vld [vmem:[%s302 + $0x98] sm:$0xff]
        %v370 = vld [vmem:[%s302 + $0xa0] sm:$0xff]
        %v371 = vld [vmem:[%s302 + $0xa8] sm:$0xff]
        %v372 = vld [vmem:[%s302 + $0xb0] sm:$0xff]
        %v373 = vld [vmem:[%s302 + $0xb8] sm:$0xff]
        %v374 = vld [vmem:[%s302 + $0xc0] sm:$0xff]
        %v375 = vld [vmem:[%s302 + $0xc8] sm:$0xff]
        %v376 = vld [vmem:[%s302 + $0xd0] sm:$0xff]
        %v377 = vld [vmem:[%s302 + $0xd8] sm:$0xff]
        %v378 = vld [vmem:[%s302 + $0xe0] sm:$0xff]
        %v379 = vld [vmem:[%s302 + $0xe8] sm:$0xff]
        %v380 = vld [vmem:[%s302 + $0xf0] sm:$0xff]
        %v381 = vld [vmem:[%s302 + $0xf8] sm:$0xff]
        %v382 = vpack.c.bf16 %v350, %v350
        %v383 = vpack.c.bf16 %v351, %v351
        %v384 = vpack.c.bf16 %v352, %v352
        %v385 = vpack.c.bf16 %v353, %v353
        %v386 = vpack.c.bf16 %v354, %v354
        %v387 = vpack.c.bf16 %v355, %v355
        %v388 = vpack.c.bf16 %v356, %v356
        %v389 = vpack.c.bf16 %v357, %v357
        %v390 = vpack.c.bf16 %v358, %v358
        %v391 = vpack.c.bf16 %v359, %v359
        %v392 = vpack.c.bf16 %v360, %v360
        %v393 = vpack.c.bf16 %v361, %v361
        %v394 = vpack.c.bf16 %v362, %v362
        %v395 = vpack.c.bf16 %v363, %v363
        %v396 = vpack.c.bf16 %v364, %v364
        %v397 = vpack.c.bf16 %v365, %v365
        %v398 = vpack.c.bf16 %v366, %v366
        %v399 = vpack.c.bf16 %v367, %v367
        %v400 = vpack.c.bf16 %v368, %v368
        %v401 = vpack.c.bf16 %v369, %v369
        %v402 = vpack.c.bf16 %v370, %v370
        %v403 = vpack.c.bf16 %v371, %v371
        %v404 = vpack.c.bf16 %v372, %v372
        %v405 = vpack.c.bf16 %v373, %v373
        %v406 = vpack.c.bf16 %v374, %v374
        %v407 = vpack.c.bf16 %v375, %v375
        %v408 = vpack.c.bf16 %v376, %v376
        %v409 = vpack.c.bf16 %v377, %v377
        %v410 = vpack.c.bf16 %v378, %v378
        %v411 = vpack.c.bf16 %v379, %v379
        %v412 = vpack.c.bf16 %v380, %v380
        %v413 = vpack.c.bf16 %v381, %v381
        %v414 = vld [vmem:[#allocation6] sm:$0xf]
        %v415 = vld [vmem:[#allocation6 + $0x4] sm:$0xf]
        %v416 = vld [vmem:[#allocation6 + $0x8] sm:$0xf]
        %v417 = vld [vmem:[#allocation6 + $0xc] sm:$0xf]
        %v418 = vld [vmem:[#allocation6 + $0x10] sm:$0xf]
        %v419 = vld [vmem:[#allocation6 + $0x14] sm:$0xf]
        %v420 = vld [vmem:[#allocation6 + $0x18] sm:$0xf]
        %v421 = vld [vmem:[#allocation6 + $0x1c] sm:$0xf]
        %v422 = vld [vmem:[#allocation6 + $0x20] sm:$0xf]
        %v423 = vld [vmem:[#allocation6 + $0x24] sm:$0xf]
        %v424 = vld [vmem:[#allocation6 + $0x28] sm:$0xf]
        %v425 = vld [vmem:[#allocation6 + $0x2c] sm:$0xf]
        %v426 = vld [vmem:[#allocation6 + $0x30] sm:$0xf]
        %v427 = vld [vmem:[#allocation6 + $0x34] sm:$0xf]
        %v428 = vld [vmem:[#allocation6 + $0x38] sm:$0xf]
        %v429 = vld [vmem:[#allocation6 + $0x3c] sm:$0xf]
        %v430 = vld [vmem:[%s4] sm:$0x1]
        %v432 = vperm.slane %v430, 0
        %v466 = vunpack.c.l.b16 %v382
        %v467 = vunpack.c.l.b16 %v383
        %v468 = vunpack.c.l.b16 %v384
        %v469 = vunpack.c.l.b16 %v385
        %v470 = vunpack.c.l.b16 %v386
        %v471 = vunpack.c.l.b16 %v387
        %v472 = vunpack.c.l.b16 %v388
        %v473 = vunpack.c.l.b16 %v389
        %v474 = vunpack.c.l.b16 %v390
        %v475 = vunpack.c.l.b16 %v391
        %v476 = vunpack.c.l.b16 %v392
        %v477 = vunpack.c.l.b16 %v393
        %v478 = vunpack.c.l.b16 %v394
        %v479 = vunpack.c.l.b16 %v395
        %v480 = vunpack.c.l.b16 %v396
        %v481 = vunpack.c.l.b16 %v397
        %v482 = vunpack.c.l.b16 %v398
        %v483 = vunpack.c.l.b16 %v399
        %v484 = vunpack.c.l.b16 %v400
        %v485 = vunpack.c.l.b16 %v401
        %v486 = vunpack.c.l.b16 %v402
        %v487 = vunpack.c.l.b16 %v403
        %v488 = vunpack.c.l.b16 %v404
        %v489 = vunpack.c.l.b16 %v405
        %v490 = vunpack.c.l.b16 %v406
        %v491 = vunpack.c.l.b16 %v407
        %v492 = vunpack.c.l.b16 %v408
        %v493 = vunpack.c.l.b16 %v409
        %v494 = vunpack.c.l.b16 %v410
        %v495 = vunpack.c.l.b16 %v411
        %v496 = vunpack.c.l.b16 %v412
        %v497 = vunpack.c.l.b16 %v413
        %v498 = vpack.c.b16 %v467, %v466
        %v499 = vpack.c.b16 %v469, %v468
        %v500 = vpack.c.b16 %v471, %v470
        %v501 = vpack.c.b16 %v473, %v472
        %v502 = vpack.c.b16 %v475, %v474
        %v503 = vpack.c.b16 %v477, %v476
        %v504 = vpack.c.b16 %v479, %v478
        %v505 = vpack.c.b16 %v481, %v480
        %v506 = vpack.c.b16 %v483, %v482
        %v507 = vpack.c.b16 %v485, %v484
        %v508 = vpack.c.b16 %v487, %v486
        %v509 = vpack.c.b16 %v489, %v488
        %v510 = vpack.c.b16 %v491, %v490
        %v511 = vpack.c.b16 %v493, %v492
        %v512 = vpack.c.b16 %v495, %v494
        %v513 = vpack.c.b16 %v497, %v496
        %v546 = vunpack.c.l.b16 %v414
        %v547 = vunpack.c.l.b16 %v415
        %v548 = vunpack.c.l.b16 %v416
        %v549 = vunpack.c.l.b16 %v417
        %v550 = vunpack.c.l.b16 %v418
        %v551 = vunpack.c.l.b16 %v419
        %v552 = vunpack.c.l.b16 %v420
        %v553 = vunpack.c.l.b16 %v421
        %v554 = vunpack.c.l.b16 %v422
        %v555 = vunpack.c.l.b16 %v423
        %v556 = vunpack.c.l.b16 %v424
        %v557 = vunpack.c.l.b16 %v425
        %v558 = vunpack.c.l.b16 %v426
        %v559 = vunpack.c.l.b16 %v427
        %v560 = vunpack.c.l.b16 %v428
        %v561 = vunpack.c.l.b16 %v429
        %v562 = vpack.c.b16 %v547, %v546
        %v563 = vpack.c.b16 %v549, %v548
        %v564 = vpack.c.b16 %v551, %v550
        %v565 = vpack.c.b16 %v553, %v552
        %v566 = vpack.c.b16 %v555, %v554
        %v567 = vpack.c.b16 %v557, %v556
        %v568 = vpack.c.b16 %v559, %v558
        %v569 = vpack.c.b16 %v561, %v560
        %578 = vmatpush.bf16.msra.mxu0 %v569
        %579 = vmatpush.bf16.msra.mxu0 %v568
        %580 = vmatpush.bf16.msra.mxu0 %v567
        %581 = vmatpush.bf16.msra.mxu0 %v566
        %582 = vmatpush.bf16.msra.mxu0 %v565
        %583 = vmatpush.bf16.msra.mxu0 %v564
        %584 = vmatpush.bf16.msra.mxu0 %v563
        %585 = vmatpush.bf16.msra.mxu0 %v562
        %586 = vmatmul.bf16.gmra.mxu0 %v498
        %v587 = vpop.f32.mrf.mxu0
        %v588 = vadd.f32 %v432, %v587
        %v589 = vpop.f32.mrf.mxu0
        %v590 = vadd.f32 %v432, %v589
        %591 = vmatmul.bf16.gmra.mxu0 %v499
        %v592 = vpop.f32.mrf.mxu0
        %v593 = vadd.f32 %v432, %v592
        %v594 = vpop.f32.mrf.mxu0
        %v595 = vadd.f32 %v432, %v594
        %596 = vmatmul.bf16.gmra.mxu0 %v500
        %v597 = vpop.f32.mrf.mxu0
        %v598 = vadd.f32 %v432, %v597
        %v599 = vpop.f32.mrf.mxu0
        %v600 = vadd.f32 %v432, %v599
        %601 = vmatmul.bf16.gmra.mxu0 %v501
        %v602 = vpop.f32.mrf.mxu0
        %v603 = vadd.f32 %v432, %v602
        %v604 = vpop.f32.mrf.mxu0
        %v605 = vadd.f32 %v432, %v604
        %606 = vmatmul.bf16.gmra.mxu0 %v502
        %v607 = vpop.f32.mrf.mxu0
        %v608 = vadd.f32 %v432, %v607
        %v609 = vpop.f32.mrf.mxu0
        %v610 = vadd.f32 %v432, %v609
        %611 = vmatmul.bf16.gmra.mxu0 %v503
        %v612 = vpop.f32.mrf.mxu0
        %v613 = vadd.f32 %v432, %v612
        %v614 = vpop.f32.mrf.mxu0
        %v615 = vadd.f32 %v432, %v614
        %616 = vmatmul.bf16.gmra.mxu0 %v504
        %v617 = vpop.f32.mrf.mxu0
        %v618 = vadd.f32 %v432, %v617
        %v619 = vpop.f32.mrf.mxu0
        %v620 = vadd.f32 %v432, %v619
        %621 = vmatmul.bf16.gmra.mxu0 %v505
        %v622 = vpop.f32.mrf.mxu0
        %v623 = vadd.f32 %v432, %v622
        %v624 = vpop.f32.mrf.mxu0
        %v625 = vadd.f32 %v432, %v624
        %626 = vmatmul.bf16.gmra.mxu0 %v506
        %v627 = vpop.f32.mrf.mxu0
        %v628 = vadd.f32 %v432, %v627
        %v629 = vpop.f32.mrf.mxu0
        %v630 = vadd.f32 %v432, %v629
        %631 = vmatmul.bf16.gmra.mxu0 %v507
        %v632 = vpop.f32.mrf.mxu0
        %v633 = vadd.f32 %v432, %v632
        %v634 = vpop.f32.mrf.mxu0
        %v635 = vadd.f32 %v432, %v634
        %636 = vmatmul.bf16.gmra.mxu0 %v508
        %v637 = vpop.f32.mrf.mxu0
        %v638 = vadd.f32 %v432, %v637
        %v639 = vpop.f32.mrf.mxu0
        %v640 = vadd.f32 %v432, %v639
        %641 = vmatmul.bf16.gmra.mxu0 %v509
        %v642 = vpop.f32.mrf.mxu0
        %v643 = vadd.f32 %v432, %v642
        %v644 = vpop.f32.mrf.mxu0
        %v645 = vadd.f32 %v432, %v644
        %646 = vmatmul.bf16.gmra.mxu0 %v510
        %v647 = vpop.f32.mrf.mxu0
        %v648 = vadd.f32 %v432, %v647
        %v649 = vpop.f32.mrf.mxu0
        %v650 = vadd.f32 %v432, %v649
        %651 = vmatmul.bf16.gmra.mxu0 %v511
        %v652 = vpop.f32.mrf.mxu0
        %v653 = vadd.f32 %v432, %v652
        %v654 = vpop.f32.mrf.mxu0
        %v655 = vadd.f32 %v432, %v654
        %656 = vmatmul.bf16.gmra.mxu0 %v512
        %v657 = vpop.f32.mrf.mxu0
        %v658 = vadd.f32 %v432, %v657
        %v659 = vpop.f32.mrf.mxu0
        %v660 = vadd.f32 %v432, %v659
        %661 = vmatmul.bf16.gmra.mxu0 %v513
        %v662 = vpop.f32.mrf.mxu0
        %v663 = vadd.f32 %v432, %v662
        %v664 = vpop.f32.mrf.mxu0
        %v665 = vadd.f32 %v432, %v664
        %666 = vdwg.mxu0
        %v667 = vmax.f32 %v588, 0.0
        %v668 = vmax.f32 %v590, 0.0
        %v669 = vmax.f32 %v593, 0.0
        %v670 = vmax.f32 %v595, 0.0
        %v671 = vmax.f32 %v598, 0.0
        %v672 = vmax.f32 %v600, 0.0
        %v673 = vmax.f32 %v603, 0.0
        %v674 = vmax.f32 %v605, 0.0
        %v675 = vmax.f32 %v608, 0.0
        %v676 = vmax.f32 %v610, 0.0
        %v677 = vmax.f32 %v613, 0.0
        %v678 = vmax.f32 %v615, 0.0
        %v679 = vmax.f32 %v618, 0.0
        %v680 = vmax.f32 %v620, 0.0
        %v681 = vmax.f32 %v623, 0.0
        %v682 = vmax.f32 %v625, 0.0
        %v683 = vmax.f32 %v628, 0.0
        %v684 = vmax.f32 %v630, 0.0
        %v685 = vmax.f32 %v633, 0.0
        %v686 = vmax.f32 %v635, 0.0
        %v687 = vmax.f32 %v638, 0.0
        %v688 = vmax.f32 %v640, 0.0
        %v689 = vmax.f32 %v643, 0.0
        %v690 = vmax.f32 %v645, 0.0
        %v691 = vmax.f32 %v648, 0.0
        %v692 = vmax.f32 %v650, 0.0
        %v693 = vmax.f32 %v653, 0.0
        %v694 = vmax.f32 %v655, 0.0
        %v695 = vmax.f32 %v658, 0.0
        %v696 = vmax.f32 %v660, 0.0
        %v697 = vmax.f32 %v663, 0.0
        %v698 = vmax.f32 %v665, 0.0
        %v699 = vpack.c.bf16 %v667, %v667
        %v700 = vpack.c.bf16 %v668, %v668
        %v701 = vpack.c.bf16 %v669, %v669
        %v702 = vpack.c.bf16 %v670, %v670
        %v703 = vpack.c.bf16 %v671, %v671
        %v704 = vpack.c.bf16 %v672, %v672
        %v705 = vpack.c.bf16 %v673, %v673
        %v706 = vpack.c.bf16 %v674, %v674
        %v707 = vpack.c.bf16 %v675, %v675
        %v708 = vpack.c.bf16 %v676, %v676
        %v709 = vpack.c.bf16 %v677, %v677
        %v710 = vpack.c.bf16 %v678, %v678
        %v711 = vpack.c.bf16 %v679, %v679
        %v712 = vpack.c.bf16 %v680, %v680
        %v713 = vpack.c.bf16 %v681, %v681
        %v714 = vpack.c.bf16 %v682, %v682
        %v715 = vpack.c.bf16 %v683, %v683
        %v716 = vpack.c.bf16 %v684, %v684
        %v717 = vpack.c.bf16 %v685, %v685
        %v718 = vpack.c.bf16 %v686, %v686
        %v719 = vpack.c.bf16 %v687, %v687
        %v720 = vpack.c.bf16 %v688, %v688
        %v721 = vpack.c.bf16 %v689, %v689
        %v722 = vpack.c.bf16 %v690, %v690
        %v723 = vpack.c.bf16 %v691, %v691
        %v724 = vpack.c.bf16 %v692, %v692
        %v725 = vpack.c.bf16 %v693, %v693
        %v726 = vpack.c.bf16 %v694, %v694
        %v727 = vpack.c.bf16 %v695, %v695
        %v728 = vpack.c.bf16 %v696, %v696
        %v729 = vpack.c.bf16 %v697, %v697
        %v730 = vpack.c.bf16 %v698, %v698
        %731 = vst [vmem:[#allocation2] sm:$0xf] 0
        %732 = vst [vmem:[#allocation2 + $0x10] sm:$0xf] 0
        %733 = vst [vmem:[#allocation2 + $0x20] sm:$0xf] 0
        %734 = vst [vmem:[#allocation2 + $0x30] sm:$0xf] 0
        %735 = vst [vmem:[#allocation2 + $0x40] sm:$0xf] 0
        %736 = vst [vmem:[#allocation2 + $0x50] sm:$0xf] 0
        %737 = vst [vmem:[#allocation2 + $0x60] sm:$0xf] 0
        %738 = vst [vmem:[#allocation2 + $0x70] sm:$0xf] 0
        %739 = vst [vmem:[#allocation2 + $0x80] sm:$0xf] 0
        %740 = vst [vmem:[#allocation2 + $0x90] sm:$0xf] 0
        %741 = vst [vmem:[#allocation2 + $0xa0] sm:$0xf] 0
        %742 = vst [vmem:[#allocation2 + $0xb0] sm:$0xf] 0
        %743 = vst [vmem:[#allocation2 + $0xc0] sm:$0xf] 0
        %744 = vst [vmem:[#allocation2 + $0xd0] sm:$0xf] 0
        %745 = vst [vmem:[#allocation2 + $0xe0] sm:$0xf] 0
        %746 = vst [vmem:[#allocation2 + $0xf0] sm:$0xf] 0
        %747 = vst [vmem:[#allocation2 + $0x100] sm:$0xf] 0
        %748 = vst [vmem:[#allocation2 + $0x110] sm:$0xf] 0
        %749 = vst [vmem:[#allocation2 + $0xc] sm:$0xf] 0
        %750 = vst [vmem:[#allocation2 + $0x1c] sm:$0xf] 0
        %751 = vst [vmem:[#allocation2 + $0x2c] sm:$0xf] 0
        %752 = vst [vmem:[#allocation2 + $0x3c] sm:$0xf] 0
        %753 = vst [vmem:[#allocation2 + $0x4c] sm:$0xf] 0
        %754 = vst [vmem:[#allocation2 + $0x5c] sm:$0xf] 0
        %755 = vst [vmem:[#allocation2 + $0x6c] sm:$0xf] 0
        %756 = vst [vmem:[#allocation2 + $0x7c] sm:$0xf] 0
        %757 = vst [vmem:[#allocation2 + $0x8c] sm:$0xf] 0
        %758 = vst [vmem:[#allocation2 + $0x9c] sm:$0xf] 0
        %759 = vst [vmem:[#allocation2 + $0xac] sm:$0xf] 0
        %760 = vst [vmem:[#allocation2 + $0xbc] sm:$0xf] 0
        %761 = vst [vmem:[#allocation2 + $0xcc] sm:$0xf] 0
        %762 = vst [vmem:[#allocation2 + $0xdc] sm:$0xf] 0
        %763 = vst [vmem:[#allocation2 + $0xec] sm:$0xf] 0
        %764 = vst [vmem:[#allocation2 + $0xfc] sm:$0xf] 0
        %765 = vst [vmem:[#allocation2 + $0x10c] sm:$0xf] 0
        %766 = vst [vmem:[#allocation2 + $0x11c] sm:$0xf] 0
        %767 = vst [vmem:[#allocation2] sm:$0xf] 0
        %768 = vst [vmem:[#allocation2 + $0x4] sm:$0xf] 0
        %769 = vst [vmem:[#allocation2 + $0x8] sm:$0xf] 0
        %770 = vst [vmem:[#allocation2 + $0xc] sm:$0xf] 0
        %s771 = scalar_lea.vmem [#allocation2], 272
        %772 = vst [vmem:[%s771] sm:$0xf] 0
        %773 = vst [vmem:[%s771 + $0x4] sm:$0xf] 0
        %774 = vst [vmem:[%s771 + $0x8] sm:$0xf] 0
        %775 = vst [vmem:[%s771 + $0xc] sm:$0xf] 0
        %s776 = scalar_lea.vmem [#allocation2], 16
        %777 = vst [vmem:[%s776 + $0x4] sm:$0xf] %v699
        %778 = vst [vmem:[%s776 + $0x8] sm:$0xf] %v700
        %779 = vst [vmem:[%s776 + $0x14] sm:$0xf] %v701
        %780 = vst [vmem:[%s776 + $0x18] sm:$0xf] %v702
        %781 = vst [vmem:[%s776 + $0x24] sm:$0xf] %v703
        %782 = vst [vmem:[%s776 + $0x28] sm:$0xf] %v704
        %783 = vst [vmem:[%s776 + $0x34] sm:$0xf] %v705
        %784 = vst [vmem:[%s776 + $0x38] sm:$0xf] %v706
        %785 = vst [vmem:[%s776 + $0x44] sm:$0xf] %v707
        %786 = vst [vmem:[%s776 + $0x48] sm:$0xf] %v708
        %787 = vst [vmem:[%s776 + $0x54] sm:$0xf] %v709
        %788 = vst [vmem:[%s776 + $0x58] sm:$0xf] %v710
        %789 = vst [vmem:[%s776 + $0x64] sm:$0xf] %v711
        %790 = vst [vmem:[%s776 + $0x68] sm:$0xf] %v712
        %791 = vst [vmem:[%s776 + $0x74] sm:$0xf] %v713
        %792 = vst [vmem:[%s776 + $0x78] sm:$0xf] %v714
        %793 = vst [vmem:[%s776 + $0x84] sm:$0xf] %v715
        %794 = vst [vmem:[%s776 + $0x88] sm:$0xf] %v716
        %795 = vst [vmem:[%s776 + $0x94] sm:$0xf] %v717
        %796 = vst [vmem:[%s776 + $0x98] sm:$0xf] %v718
        %797 = vst [vmem:[%s776 + $0xa4] sm:$0xf] %v719
        %798 = vst [vmem:[%s776 + $0xa8] sm:$0xf] %v720
        %799 = vst [vmem:[%s776 + $0xb4] sm:$0xf] %v721
        %800 = vst [vmem:[%s776 + $0xb8] sm:$0xf] %v722
        %801 = vst [vmem:[%s776 + $0xc4] sm:$0xf] %v723
        %802 = vst [vmem:[%s776 + $0xc8] sm:$0xf] %v724
        %803 = vst [vmem:[%s776 + $0xd4] sm:$0xf] %v725
        %804 = vst [vmem:[%s776 + $0xd8] sm:$0xf] %v726
        %805 = vst [vmem:[%s776 + $0xe4] sm:$0xf] %v727
        %806 = vst [vmem:[%s776 + $0xe8] sm:$0xf] %v728
        %807 = vst [vmem:[%s776 + $0xf4] sm:$0xf] %v729
        %808 = vst [vmem:[%s776 + $0xf8] sm:$0xf] %v730
        %s809 = smul.u32 0, 4
        %s810 = smul.addr %s809, 4
        %s811 = scalar_lea.vmem [#allocation2], %s810
        %v812 = vld [vmem:[%s811] sm:$0x8]
        %v813 = vld [vmem:[%s811 + $0x4] sm:$0xf]
        %v814 = vld [vmem:[%s811 + $0x8] sm:$0xf]
        %v815 = vld [vmem:[%s811 + $0x10] sm:$0x8]
        %v816 = vld [vmem:[%s811 + $0x14] sm:$0xf]
        %v817 = vld [vmem:[%s811 + $0x18] sm:$0xf]
        %v818 = vld [vmem:[%s811 + $0x20] sm:$0x8]
        %v819 = vld [vmem:[%s811 + $0x24] sm:$0xf]
        %v820 = vld [vmem:[%s811 + $0x28] sm:$0xf]
        %v821 = vld [vmem:[%s811 + $0x30] sm:$0x8]
        %v822 = vld [vmem:[%s811 + $0x34] sm:$0xf]
        %v823 = vld [vmem:[%s811 + $0x38] sm:$0xf]
        %v824 = vld [vmem:[%s811 + $0x40] sm:$0x8]
        %v825 = vld [vmem:[%s811 + $0x44] sm:$0xf]
        %v826 = vld [vmem:[%s811 + $0x48] sm:$0xf]
        %v827 = vld [vmem:[%s811 + $0x50] sm:$0x8]
        %v828 = vld [vmem:[%s811 + $0x54] sm:$0xf]
        %v829 = vld [vmem:[%s811 + $0x58] sm:$0xf]
        %v830 = vld [vmem:[%s811 + $0x60] sm:$0x8]
        %v831 = vld [vmem:[%s811 + $0x64] sm:$0xf]
        %v832 = vld [vmem:[%s811 + $0x68] sm:$0xf]
        %v833 = vld [vmem:[%s811 + $0x70] sm:$0x8]
        %v834 = vld [vmem:[%s811 + $0x74] sm:$0xf]
        %v835 = vld [vmem:[%s811 + $0x78] sm:$0xf]
        %v836 = vld [vmem:[%s811 + $0x80] sm:$0x8]
        %v837 = vld [vmem:[%s811 + $0x84] sm:$0xf]
        %v838 = vld [vmem:[%s811 + $0x88] sm:$0xf]
        %v839 = vld [vmem:[%s811 + $0x90] sm:$0x8]
        %v840 = vld [vmem:[%s811 + $0x94] sm:$0xf]
        %v841 = vld [vmem:[%s811 + $0x98] sm:$0xf]
        %vm842 = vsmask.f32 256
        %vm843 = vsmask.f32 4368
        %vm844 = vmor %vm842, %vm843
        %v846 = vshrl.u32 %v812, 16
        %v848 = vrot.slane %v846, 7
        %v849 = vrot.slane %v848, 4
        %v851 = vshrl.u32 %v813, 16
        %v853 = vrot.slane %v851, 7
        %v854 = vshll.u32 %v813, 16
        %v856 = vor.u32 %v853, %v854
        %v857 = vsel %vm844, %v849, %v856
        %v858 = vrot.slane %v853, 4
        %v860 = vshrl.u32 %v814, 16
        %v862 = vrot.slane %v860, 7
        %v863 = vshll.u32 %v814, 16
        %v865 = vor.u32 %v862, %v863
        %v866 = vsel %vm844, %v858, %v865
        %v868 = vshrl.u32 %v815, 16
        %v870 = vrot.slane %v868, 7
        %v871 = vrot.slane %v870, 4
        %v873 = vshrl.u32 %v816, 16
        %v875 = vrot.slane %v873, 7
        %v876 = vshll.u32 %v816, 16
        %v878 = vor.u32 %v875, %v876
        %v879 = vsel %vm844, %v871, %v878
        %v880 = vrot.slane %v875, 4
        %v882 = vshrl.u32 %v817, 16
        %v884 = vrot.slane %v882, 7
        %v885 = vshll.u32 %v817, 16
        %v887 = vor.u32 %v884, %v885
        %v888 = vsel %vm844, %v880, %v887
        %v890 = vshrl.u32 %v818, 16
        %v892 = vrot.slane %v890, 7
        %v893 = vrot.slane %v892, 4
        %v895 = vshrl.u32 %v819, 16
        %v897 = vrot.slane %v895, 7
        %v898 = vshll.u32 %v819, 16
        %v900 = vor.u32 %v897, %v898
        %v901 = vsel %vm844, %v893, %v900
        %v902 = vrot.slane %v897, 4
        %v904 = vshrl.u32 %v820, 16
        %v906 = vrot.slane %v904, 7
        %v907 = vshll.u32 %v820, 16
        %v909 = vor.u32 %v906, %v907
        %v910 = vsel %vm844, %v902, %v909
        %v912 = vshrl.u32 %v821, 16
        %v914 = vrot.slane %v912, 7
        %v915 = vrot.slane %v914, 4
        %v917 = vshrl.u32 %v822, 16
        %v919 = vrot.slane %v917, 7
        %v920 = vshll.u32 %v822, 16
        %v922 = vor.u32 %v919, %v920
        %v923 = vsel %vm844, %v915, %v922
        %v924 = vrot.slane %v919, 4
        %v926 = vshrl.u32 %v823, 16
        %v928 = vrot.slane %v926, 7
        %v929 = vshll.u32 %v823, 16
        %v931 = vor.u32 %v928, %v929
        %v932 = vsel %vm844, %v924, %v931
        %v934 = vshrl.u32 %v824, 16
        %v936 = vrot.slane %v934, 7
        %v937 = vrot.slane %v936, 4
        %v939 = vshrl.u32 %v825, 16
        %v941 = vrot.slane %v939, 7
        %v942 = vshll.u32 %v825, 16
        %v944 = vor.u32 %v941, %v942
        %v945 = vsel %vm844, %v937, %v944
        %v946 = vrot.slane %v941, 4
        %v948 = vshrl.u32 %v826, 16
        %v950 = vrot.slane %v948, 7
        %v951 = vshll.u32 %v826, 16
        %v953 = vor.u32 %v950, %v951
        %v954 = vsel %vm844, %v946, %v953
        %v956 = vshrl.u32 %v827, 16
        %v958 = vrot.slane %v956, 7
        %v959 = vrot.slane %v958, 4
        %v961 = vshrl.u32 %v828, 16
        %v963 = vrot.slane %v961, 7
        %v964 = vshll.u32 %v828, 16
        %v966 = vor.u32 %v963, %v964
        %v967 = vsel %vm844, %v959, %v966
        %v968 = vrot.slane %v963, 4
        %v970 = vshrl.u32 %v829, 16
        %v972 = vrot.slane %v970, 7
        %v973 = vshll.u32 %v829, 16
        %v975 = vor.u32 %v972, %v973
        %v976 = vsel %vm844, %v968, %v975
        %v978 = vshrl.u32 %v830, 16
        %v980 = vrot.slane %v978, 7
        %v981 = vrot.slane %v980, 4
        %v983 = vshrl.u32 %v831, 16
        %v985 = vrot.slane %v983, 7
        %v986 = vshll.u32 %v831, 16
        %v988 = vor.u32 %v985, %v986
        %v989 = vsel %vm844, %v981, %v988
        %v990 = vrot.slane %v985, 4
        %v992 = vshrl.u32 %v832, 16
        %v994 = vrot.slane %v992, 7
        %v995 = vshll.u32 %v832, 16
        %v997 = vor.u32 %v994, %v995
        %v998 = vsel %vm844, %v990, %v997
        %v1000 = vshrl.u32 %v833, 16
        %v1002 = vrot.slane %v1000, 7
        %v1003 = vrot.slane %v1002, 4
        %v1005 = vshrl.u32 %v834, 16
        %v1007 = vrot.slane %v1005, 7
        %v1008 = vshll.u32 %v834, 16
        %v1010 = vor.u32 %v1007, %v1008
        %v1011 = vsel %vm844, %v1003, %v1010
        %v1012 = vrot.slane %v1007, 4
        %v1014 = vshrl.u32 %v835, 16
        %v1016 = vrot.slane %v1014, 7
        %v1017 = vshll.u32 %v835, 16
        %v1019 = vor.u32 %v1016, %v1017
        %v1020 = vsel %vm844, %v1012, %v1019
        %v1021 = vld [vmem:[#allocation8] sm:$0xf]
        %v1022 = vld [vmem:[#allocation8 + $0x4] sm:$0xf]
        %v1023 = vld [vmem:[#allocation8 + $0x8] sm:$0xf]
        %v1024 = vld [vmem:[#allocation8 + $0xc] sm:$0xf]
        %v1025 = vld [vmem:[#allocation8 + $0x10] sm:$0xf]
        %v1026 = vld [vmem:[#allocation8 + $0x14] sm:$0xf]
        %v1027 = vld [vmem:[#allocation8 + $0x18] sm:$0xf]
        %v1028 = vld [vmem:[#allocation8 + $0x1c] sm:$0xf]
        %v1029 = vld [vmem:[#allocation8 + $0x20] sm:$0xf]
        %v1030 = vld [vmem:[#allocation8 + $0x24] sm:$0xf]
        %v1031 = vld [vmem:[#allocation8 + $0x28] sm:$0xf]
        %v1032 = vld [vmem:[#allocation8 + $0x2c] sm:$0xf]
        %v1033 = vld [vmem:[#allocation8 + $0x30] sm:$0xf]
        %v1034 = vld [vmem:[#allocation8 + $0x34] sm:$0xf]
        %v1035 = vld [vmem:[#allocation8 + $0x38] sm:$0xf]
        %v1036 = vld [vmem:[#allocation8 + $0x3c] sm:$0xf]
        %v1038 = vshrl.u32 %v836, 16
        %v1040 = vrot.slane %v1038, 7
        %v1041 = vrot.slane %v1040, 4
        %v1043 = vshrl.u32 %v837, 16
        %v1045 = vrot.slane %v1043, 7
        %v1046 = vshll.u32 %v837, 16
        %v1048 = vor.u32 %v1045, %v1046
        %v1049 = vsel %vm844, %v1041, %v1048
        %v1050 = vrot.slane %v1045, 4
        %v1052 = vshrl.u32 %v838, 16
        %v1054 = vrot.slane %v1052, 7
        %v1055 = vshll.u32 %v838, 16
        %v1057 = vor.u32 %v1054, %v1055
        %v1058 = vsel %vm844, %v1050, %v1057
        %s1059 = scalar_lea.vmem [#allocation8], 192
        %v1060 = vld [vmem:[%s1059] sm:$0xf]
        %v1061 = vld [vmem:[%s1059 + $0x4] sm:$0xf]
        %v1062 = vld [vmem:[%s1059 + $0x8] sm:$0xf]
        %v1063 = vld [vmem:[%s1059 + $0xc] sm:$0xf]
        %v1064 = vld [vmem:[%s1059 + $0x10] sm:$0xf]
        %v1065 = vld [vmem:[%s1059 + $0x14] sm:$0xf]
        %v1066 = vld [vmem:[%s1059 + $0x18] sm:$0xf]
        %v1067 = vld [vmem:[%s1059 + $0x1c] sm:$0xf]
        %v1068 = vld [vmem:[%s1059 + $0x20] sm:$0xf]
        %v1069 = vld [vmem:[%s1059 + $0x24] sm:$0xf]
        %v1070 = vld [vmem:[%s1059 + $0x28] sm:$0xf]
        %v1071 = vld [vmem:[%s1059 + $0x2c] sm:$0xf]
        %v1072 = vld [vmem:[%s1059 + $0x30] sm:$0xf]
        %v1073 = vld [vmem:[%s1059 + $0x34] sm:$0xf]
        %v1074 = vld [vmem:[%s1059 + $0x38] sm:$0xf]
        %v1075 = vld [vmem:[%s1059 + $0x3c] sm:$0xf]
        %v1076 = vunpack.c.l.b16 %v879
        %v1077 = vunpack.c.l.b16 %v888
        %v1078 = vunpack.c.l.b16 %v901
        %v1079 = vunpack.c.l.b16 %v910
        %v1080 = vunpack.c.l.b16 %v923
        %v1081 = vunpack.c.l.b16 %v932
        %v1082 = vunpack.c.l.b16 %v945
        %v1083 = vunpack.c.l.b16 %v954
        %v1084 = vunpack.c.l.b16 %v967
        %v1085 = vunpack.c.l.b16 %v976
        %v1086 = vunpack.c.l.b16 %v989
        %v1087 = vunpack.c.l.b16 %v998
        %v1088 = vunpack.c.l.b16 %v1011
        %v1089 = vunpack.c.l.b16 %v1020
        %v1090 = vunpack.c.l.b16 %v1049
        %v1091 = vunpack.c.l.b16 %v1058
        %v1092 = vpack.c.b16 %v1077, %v1076
        %v1093 = vpack.c.b16 %v1079, %v1078
        %v1094 = vpack.c.b16 %v1081, %v1080
        %v1095 = vpack.c.b16 %v1083, %v1082
        %v1096 = vpack.c.b16 %v1085, %v1084
        %v1097 = vpack.c.b16 %v1087, %v1086
        %v1098 = vpack.c.b16 %v1089, %v1088
        %v1099 = vpack.c.b16 %v1091, %v1090
        %v1124 = vunpack.c.l.b16 %v1060
        %v1125 = vunpack.c.l.b16 %v1061
        %v1126 = vunpack.c.l.b16 %v1062
        %v1127 = vunpack.c.l.b16 %v1063
        %v1128 = vunpack.c.l.b16 %v1064
        %v1129 = vunpack.c.l.b16 %v1065
        %v1130 = vunpack.c.l.b16 %v1066
        %v1131 = vunpack.c.l.b16 %v1067
        %v1132 = vunpack.c.l.b16 %v1068
        %v1133 = vunpack.c.l.b16 %v1069
        %v1134 = vunpack.c.l.b16 %v1070
        %v1135 = vunpack.c.l.b16 %v1071
        %v1136 = vunpack.c.l.b16 %v1072
        %v1137 = vunpack.c.l.b16 %v1073
        %v1138 = vunpack.c.l.b16 %v1074
        %v1139 = vunpack.c.l.b16 %v1075
        %v1140 = vpack.c.b16 %v1125, %v1124
        %v1141 = vpack.c.b16 %v1127, %v1126
        %v1142 = vpack.c.b16 %v1129, %v1128
        %v1143 = vpack.c.b16 %v1131, %v1130
        %v1144 = vpack.c.b16 %v1133, %v1132
        %v1145 = vpack.c.b16 %v1135, %v1134
        %v1146 = vpack.c.b16 %v1137, %v1136
        %v1147 = vpack.c.b16 %v1139, %v1138
        %1156 = vmatpush.bf16.msra.mxu0 %v1147
        %1157 = vmatpush.bf16.msra.mxu0 %v1146
        %1158 = vmatpush.bf16.msra.mxu0 %v1145
        %1159 = vmatpush.bf16.msra.mxu0 %v1144
        %1160 = vmatpush.bf16.msra.mxu0 %v1143
        %1161 = vmatpush.bf16.msra.mxu0 %v1142
        %1162 = vmatpush.bf16.msra.mxu0 %v1141
        %1163 = vmatpush.bf16.msra.mxu0 %v1140
        %1164 = vmatmul.bf16.gmra.mxu0 %v1092
        %v1165 = vpop.f32.mrf.mxu0
        %v1166 = vadd.f32 0.0, %v1165
        %v1167 = vpop.f32.mrf.mxu0
        %v1168 = vadd.f32 0.0, %v1167
        %1169 = vmatmul.bf16.gmra.mxu0 %v1093
        %v1170 = vpop.f32.mrf.mxu0
        %v1171 = vadd.f32 0.0, %v1170
        %v1172 = vpop.f32.mrf.mxu0
        %v1173 = vadd.f32 0.0, %v1172
        %1174 = vmatmul.bf16.gmra.mxu0 %v1094
        %v1175 = vpop.f32.mrf.mxu0
        %v1176 = vadd.f32 0.0, %v1175
        %v1177 = vpop.f32.mrf.mxu0
        %v1178 = vadd.f32 0.0, %v1177
        %1179 = vmatmul.bf16.gmra.mxu0 %v1095
        %v1180 = vpop.f32.mrf.mxu0
        %v1181 = vadd.f32 0.0, %v1180
        %v1182 = vpop.f32.mrf.mxu0
        %v1183 = vadd.f32 0.0, %v1182
        %1184 = vmatmul.bf16.gmra.mxu0 %v1096
        %v1185 = vpop.f32.mrf.mxu0
        %v1186 = vadd.f32 0.0, %v1185
        %v1187 = vpop.f32.mrf.mxu0
        %v1188 = vadd.f32 0.0, %v1187
        %1189 = vmatmul.bf16.gmra.mxu0 %v1097
        %v1190 = vpop.f32.mrf.mxu0
        %v1191 = vadd.f32 0.0, %v1190
        %v1192 = vpop.f32.mrf.mxu0
        %v1193 = vadd.f32 0.0, %v1192
        %1194 = vmatmul.bf16.gmra.mxu0 %v1098
        %v1195 = vpop.f32.mrf.mxu0
        %v1196 = vadd.f32 0.0, %v1195
        %v1197 = vpop.f32.mrf.mxu0
        %v1198 = vadd.f32 0.0, %v1197
        %1199 = vmatmul.bf16.gmra.mxu0 %v1099
        %v1200 = vpop.f32.mrf.mxu0
        %v1201 = vadd.f32 0.0, %v1200
        %v1202 = vpop.f32.mrf.mxu0
        %v1203 = vadd.f32 0.0, %v1202
        %1204 = vdwg.mxu0
        %v1205 = vunpack.c.l.b16 %v857
        %v1206 = vunpack.c.l.b16 %v866
        %v1207 = vpack.c.b16 %v1206, %v1205
        %v1225 = vunpack.c.l.b16 %v1021
        %v1226 = vunpack.c.l.b16 %v1022
        %v1227 = vunpack.c.l.b16 %v1023
        %v1228 = vunpack.c.l.b16 %v1024
        %v1229 = vunpack.c.l.b16 %v1025
        %v1230 = vunpack.c.l.b16 %v1026
        %v1231 = vunpack.c.l.b16 %v1027
        %v1232 = vunpack.c.l.b16 %v1028
        %v1233 = vunpack.c.l.b16 %v1029
        %v1234 = vunpack.c.l.b16 %v1030
        %v1235 = vunpack.c.l.b16 %v1031
        %v1236 = vunpack.c.l.b16 %v1032
        %v1237 = vunpack.c.l.b16 %v1033
        %v1238 = vunpack.c.l.b16 %v1034
        %v1239 = vunpack.c.l.b16 %v1035
        %v1240 = vunpack.c.l.b16 %v1036
        %v1241 = vpack.c.b16 %v1226, %v1225
        %v1242 = vpack.c.b16 %v1228, %v1227
        %v1243 = vpack.c.b16 %v1230, %v1229
        %v1244 = vpack.c.b16 %v1232, %v1231
        %v1245 = vpack.c.b16 %v1234, %v1233
        %v1246 = vpack.c.b16 %v1236, %v1235
        %v1247 = vpack.c.b16 %v1238, %v1237
        %v1248 = vpack.c.b16 %v1240, %v1239
        %1257 = vmatpush.bf16.msra.mxu0 %v1248
        %1258 = vmatpush.bf16.msra.mxu0 %v1247
        %1259 = vmatpush.bf16.msra.mxu0 %v1246
        %1260 = vmatpush.bf16.msra.mxu0 %v1245
        %1261 = vmatpush.bf16.msra.mxu0 %v1244
        %1262 = vmatpush.bf16.msra.mxu0 %v1243
        %1263 = vmatpush.bf16.msra.mxu0 %v1242
        %1264 = vmatpush.bf16.msra.mxu0 %v1241
        %1265 = vmatmul.bf16.gmra.mxu0 %v1207
        %v1266 = vpop.f32.mrf.mxu0
        %v1267 = vadd.f32 %v1166, %v1266
        %v1268 = vpop.f32.mrf.mxu0
        %v1269 = vadd.f32 %v1168, %v1268
        %1270 = vmatmul.bf16.gmra.mxu0 %v1092
        %v1271 = vpop.f32.mrf.mxu0
        %v1272 = vadd.f32 %v1171, %v1271
        %v1273 = vpop.f32.mrf.mxu0
        %v1274 = vadd.f32 %v1173, %v1273
        %1275 = vmatmul.bf16.gmra.mxu0 %v1093
        %v1276 = vpop.f32.mrf.mxu0
        %v1277 = vadd.f32 %v1176, %v1276
        %v1278 = vpop.f32.mrf.mxu0
        %v1279 = vadd.f32 %v1178, %v1278
        %1280 = vmatmul.bf16.gmra.mxu0 %v1094
        %v1281 = vpop.f32.mrf.mxu0
        %v1282 = vadd.f32 %v1181, %v1281
        %v1283 = vpop.f32.mrf.mxu0
        %v1284 = vadd.f32 %v1183, %v1283
        %1285 = vmatmul.bf16.gmra.mxu0 %v1095
        %v1286 = vpop.f32.mrf.mxu0
        %v1287 = vadd.f32 %v1186, %v1286
        %v1288 = vpop.f32.mrf.mxu0
        %v1289 = vadd.f32 %v1188, %v1288
        %1290 = vmatmul.bf16.gmra.mxu0 %v1096
        %v1291 = vpop.f32.mrf.mxu0
        %v1292 = vadd.f32 %v1191, %v1291
        %v1293 = vpop.f32.mrf.mxu0
        %v1294 = vadd.f32 %v1193, %v1293
        %1295 = vmatmul.bf16.gmra.mxu0 %v1097
        %v1296 = vpop.f32.mrf.mxu0
        %v1297 = vadd.f32 %v1196, %v1296
        %v1298 = vpop.f32.mrf.mxu0
        %v1299 = vadd.f32 %v1198, %v1298
        %1300 = vmatmul.bf16.gmra.mxu0 %v1098
        %v1301 = vpop.f32.mrf.mxu0
        %v1302 = vadd.f32 %v1201, %v1301
        %v1303 = vpop.f32.mrf.mxu0
        %v1304 = vadd.f32 %v1203, %v1303
        %1305 = vdwg.mxu0
        %v1307 = vshrl.u32 %v839, 16
        %v1309 = vrot.slane %v1307, 7
        %v1310 = vrot.slane %v1309, 4
        %v1312 = vshrl.u32 %v840, 16
        %v1314 = vrot.slane %v1312, 7
        %v1315 = vshll.u32 %v840, 16
        %v1317 = vor.u32 %v1314, %v1315
        %v1318 = vsel %vm844, %v1310, %v1317
        %v1319 = vrot.slane %v1314, 4
        %v1321 = vshrl.u32 %v841, 16
        %v1323 = vrot.slane %v1321, 7
        %v1324 = vshll.u32 %v841, 16
        %v1326 = vor.u32 %v1323, %v1324
        %v1327 = vsel %vm844, %v1319, %v1326
        %s1328 = scalar_lea.vmem [#allocation8], 384
        %v1329 = vld [vmem:[%s1328] sm:$0xf]
        %v1330 = vld [vmem:[%s1328 + $0x4] sm:$0xf]
        %v1331 = vld [vmem:[%s1328 + $0x8] sm:$0xf]
        %v1332 = vld [vmem:[%s1328 + $0xc] sm:$0xf]
        %v1333 = vld [vmem:[%s1328 + $0x10] sm:$0xf]
        %v1334 = vld [vmem:[%s1328 + $0x14] sm:$0xf]
        %v1335 = vld [vmem:[%s1328 + $0x18] sm:$0xf]
        %v1336 = vld [vmem:[%s1328 + $0x1c] sm:$0xf]
        %v1337 = vld [vmem:[%s1328 + $0x20] sm:$0xf]
        %v1338 = vld [vmem:[%s1328 + $0x24] sm:$0xf]
        %v1339 = vld [vmem:[%s1328 + $0x28] sm:$0xf]
        %v1340 = vld [vmem:[%s1328 + $0x2c] sm:$0xf]
        %v1341 = vld [vmem:[%s1328 + $0x30] sm:$0xf]
        %v1342 = vld [vmem:[%s1328 + $0x34] sm:$0xf]
        %v1343 = vld [vmem:[%s1328 + $0x38] sm:$0xf]
        %v1344 = vld [vmem:[%s1328 + $0x3c] sm:$0xf]
        %v1345 = vunpack.c.l.b16 %v1318
        %v1346 = vunpack.c.l.b16 %v1327
        %v1347 = vpack.c.b16 %v1346, %v1345
        %v1365 = vunpack.c.l.b16 %v1329
        %v1366 = vunpack.c.l.b16 %v1330
        %v1367 = vunpack.c.l.b16 %v1331
        %v1368 = vunpack.c.l.b16 %v1332
        %v1369 = vunpack.c.l.b16 %v1333
        %v1370 = vunpack.c.l.b16 %v1334
        %v1371 = vunpack.c.l.b16 %v1335
        %v1372 = vunpack.c.l.b16 %v1336
        %v1373 = vunpack.c.l.b16 %v1337
        %v1374 = vunpack.c.l.b16 %v1338
        %v1375 = vunpack.c.l.b16 %v1339
        %v1376 = vunpack.c.l.b16 %v1340
        %v1377 = vunpack.c.l.b16 %v1341
        %v1378 = vunpack.c.l.b16 %v1342
        %v1379 = vunpack.c.l.b16 %v1343
        %v1380 = vunpack.c.l.b16 %v1344
        %v1381 = vpack.c.b16 %v1366, %v1365
        %v1382 = vpack.c.b16 %v1368, %v1367
        %v1383 = vpack.c.b16 %v1370, %v1369
        %v1384 = vpack.c.b16 %v1372, %v1371
        %v1385 = vpack.c.b16 %v1374, %v1373
        %v1386 = vpack.c.b16 %v1376, %v1375
        %v1387 = vpack.c.b16 %v1378, %v1377
        %v1388 = vpack.c.b16 %v1380, %v1379
        %1397 = vmatpush.bf16.msra.mxu0 %v1388
        %1398 = vmatpush.bf16.msra.mxu0 %v1387
        %1399 = vmatpush.bf16.msra.mxu0 %v1386
        %1400 = vmatpush.bf16.msra.mxu0 %v1385
        %1401 = vmatpush.bf16.msra.mxu0 %v1384
        %1402 = vmatpush.bf16.msra.mxu0 %v1383
        %1403 = vmatpush.bf16.msra.mxu0 %v1382
        %1404 = vmatpush.bf16.msra.mxu0 %v1381
        %1405 = vmatmul.bf16.gmra.mxu0 %v1093
        %v1406 = vpop.f32.mrf.mxu0
        %v1407 = vadd.f32 0.0, %v1406
        %v1408 = vpop.f32.mrf.mxu0
        %v1409 = vadd.f32 0.0, %v1408
        %1410 = vmatmul.bf16.gmra.mxu0 %v1094
        %v1411 = vpop.f32.mrf.mxu0
        %v1412 = vadd.f32 0.0, %v1411
        %v1413 = vpop.f32.mrf.mxu0
        %v1414 = vadd.f32 0.0, %v1413
        %1415 = vmatmul.bf16.gmra.mxu0 %v1095
        %v1416 = vpop.f32.mrf.mxu0
        %v1417 = vadd.f32 0.0, %v1416
        %v1418 = vpop.f32.mrf.mxu0
        %v1419 = vadd.f32 0.0, %v1418
        %1420 = vmatmul.bf16.gmra.mxu0 %v1096
        %v1421 = vpop.f32.mrf.mxu0
        %v1422 = vadd.f32 0.0, %v1421
        %v1423 = vpop.f32.mrf.mxu0
        %v1424 = vadd.f32 0.0, %v1423
        %1425 = vmatmul.bf16.gmra.mxu0 %v1097
        %v1426 = vpop.f32.mrf.mxu0
        %v1427 = vadd.f32 0.0, %v1426
        %v1428 = vpop.f32.mrf.mxu0
        %v1429 = vadd.f32 0.0, %v1428
        %1430 = vmatmul.bf16.gmra.mxu0 %v1098
        %v1431 = vpop.f32.mrf.mxu0
        %v1432 = vadd.f32 0.0, %v1431
        %v1433 = vpop.f32.mrf.mxu0
        %v1434 = vadd.f32 0.0, %v1433
        %1435 = vmatmul.bf16.gmra.mxu0 %v1099
        %v1436 = vpop.f32.mrf.mxu0
        %v1437 = vadd.f32 0.0, %v1436
        %v1438 = vpop.f32.mrf.mxu0
        %v1439 = vadd.f32 0.0, %v1438
        %1440 = vmatmul.bf16.gmra.mxu0 %v1347
        %v1441 = vpop.f32.mrf.mxu0
        %v1442 = vadd.f32 0.0, %v1441
        %v1443 = vpop.f32.mrf.mxu0
        %v1444 = vadd.f32 0.0, %v1443
        %1445 = vdwg.mxu0
        %v1446 = vadd.f32 %v1267, %v1407
        %v1447 = vadd.f32 %v1269, %v1409
        %v1448 = vadd.f32 %v1272, %v1412
        %v1449 = vadd.f32 %v1274, %v1414
        %v1450 = vadd.f32 %v1277, %v1417
        %v1451 = vadd.f32 %v1279, %v1419
        %v1452 = vadd.f32 %v1282, %v1422
        %v1453 = vadd.f32 %v1284, %v1424
        %v1454 = vadd.f32 %v1287, %v1427
        %v1455 = vadd.f32 %v1289, %v1429
        %v1456 = vadd.f32 %v1292, %v1432
        %v1457 = vadd.f32 %v1294, %v1434
        %v1458 = vadd.f32 %v1297, %v1437
        %v1459 = vadd.f32 %v1299, %v1439
        %v1460 = vadd.f32 %v1302, %v1442
        %v1461 = vadd.f32 %v1304, %v1444
        %s1462 = scalar_lea.vmem [#allocation8], 64
        %v1463 = vld [vmem:[%s1462] sm:$0xf]
        %v1464 = vld [vmem:[%s1462 + $0x4] sm:$0xf]
        %v1465 = vld [vmem:[%s1462 + $0x8] sm:$0xf]
        %v1466 = vld [vmem:[%s1462 + $0xc] sm:$0xf]
        %v1467 = vld [vmem:[%s1462 + $0x10] sm:$0xf]
        %v1468 = vld [vmem:[%s1462 + $0x14] sm:$0xf]
        %v1469 = vld [vmem:[%s1462 + $0x18] sm:$0xf]
        %v1470 = vld [vmem:[%s1462 + $0x1c] sm:$0xf]
        %v1471 = vld [vmem:[%s1462 + $0x20] sm:$0xf]
        %v1472 = vld [vmem:[%s1462 + $0x24] sm:$0xf]
        %v1473 = vld [vmem:[%s1462 + $0x28] sm:$0xf]
        %v1474 = vld [vmem:[%s1462 + $0x2c] sm:$0xf]
        %v1475 = vld [vmem:[%s1462 + $0x30] sm:$0xf]
        %v1476 = vld [vmem:[%s1462 + $0x34] sm:$0xf]
        %v1477 = vld [vmem:[%s1462 + $0x38] sm:$0xf]
        %v1478 = vld [vmem:[%s1462 + $0x3c] sm:$0xf]
        %v1495 = vunpack.c.l.b16 %v813
        %v1496 = vunpack.c.l.b16 %v814
        %v1497 = vunpack.c.l.b16 %v816
        %v1498 = vunpack.c.l.b16 %v817
        %v1499 = vunpack.c.l.b16 %v819
        %v1500 = vunpack.c.l.b16 %v820
        %v1501 = vunpack.c.l.b16 %v822
        %v1502 = vunpack.c.l.b16 %v823
        %v1503 = vunpack.c.l.b16 %v825
        %v1504 = vunpack.c.l.b16 %v826
        %v1505 = vunpack.c.l.b16 %v828
        %v1506 = vunpack.c.l.b16 %v829
        %v1507 = vunpack.c.l.b16 %v831
        %v1508 = vunpack.c.l.b16 %v832
        %v1509 = vunpack.c.l.b16 %v834
        %v1510 = vunpack.c.l.b16 %v835
        %v1511 = vpack.c.b16 %v1496, %v1495
        %v1512 = vpack.c.b16 %v1498, %v1497
        %v1513 = vpack.c.b16 %v1500, %v1499
        %v1514 = vpack.c.b16 %v1502, %v1501
        %v1515 = vpack.c.b16 %v1504, %v1503
        %v1516 = vpack.c.b16 %v1506, %v1505
        %v1517 = vpack.c.b16 %v1508, %v1507
        %v1518 = vpack.c.b16 %v1510, %v1509
        %v1543 = vunpack.c.l.b16 %v1463
        %v1544 = vunpack.c.l.b16 %v1464
        %v1545 = vunpack.c.l.b16 %v1465
        %v1546 = vunpack.c.l.b16 %v1466
        %v1547 = vunpack.c.l.b16 %v1467
        %v1548 = vunpack.c.l.b16 %v1468
        %v1549 = vunpack.c.l.b16 %v1469
        %v1550 = vunpack.c.l.b16 %v1470
        %v1551 = vunpack.c.l.b16 %v1471
        %v1552 = vunpack.c.l.b16 %v1472
        %v1553 = vunpack.c.l.b16 %v1473
        %v1554 = vunpack.c.l.b16 %v1474
        %v1555 = vunpack.c.l.b16 %v1475
        %v1556 = vunpack.c.l.b16 %v1476
        %v1557 = vunpack.c.l.b16 %v1477
        %v1558 = vunpack.c.l.b16 %v1478
        %v1559 = vpack.c.b16 %v1544, %v1543
        %v1560 = vpack.c.b16 %v1546, %v1545
        %v1561 = vpack.c.b16 %v1548, %v1547
        %v1562 = vpack.c.b16 %v1550, %v1549
        %v1563 = vpack.c.b16 %v1552, %v1551
        %v1564 = vpack.c.b16 %v1554, %v1553
        %v1565 = vpack.c.b16 %v1556, %v1555
        %v1566 = vpack.c.b16 %v1558, %v1557
        %1575 = vmatpush.bf16.msra.mxu0 %v1566
        %1576 = vmatpush.bf16.msra.mxu0 %v1565
        %1577 = vmatpush.bf16.msra.mxu0 %v1564
        %1578 = vmatpush.bf16.msra.mxu0 %v1563
        %1579 = vmatpush.bf16.msra.mxu0 %v1562
        %1580 = vmatpush.bf16.msra.mxu0 %v1561
        %1581 = vmatpush.bf16.msra.mxu0 %v1560
        %1582 = vmatpush.bf16.msra.mxu0 %v1559
        %1583 = vmatmul.bf16.gmra.mxu0 %v1511
        %v1584 = vpop.f32.mrf.mxu0
        %v1585 = vadd.f32 0.0, %v1584
        %v1586 = vpop.f32.mrf.mxu0
        %v1587 = vadd.f32 0.0, %v1586
        %1588 = vmatmul.bf16.gmra.mxu0 %v1512
        %v1589 = vpop.f32.mrf.mxu0
        %v1590 = vadd.f32 0.0, %v1589
        %v1591 = vpop.f32.mrf.mxu0
        %v1592 = vadd.f32 0.0, %v1591
        %1593 = vmatmul.bf16.gmra.mxu0 %v1513
        %v1594 = vpop.f32.mrf.mxu0
        %v1595 = vadd.f32 0.0, %v1594
        %v1596 = vpop.f32.mrf.mxu0
        %v1597 = vadd.f32 0.0, %v1596
        %1598 = vmatmul.bf16.gmra.mxu0 %v1514
        %v1599 = vpop.f32.mrf.mxu0
        %v1600 = vadd.f32 0.0, %v1599
        %v1601 = vpop.f32.mrf.mxu0
        %v1602 = vadd.f32 0.0, %v1601
        %1603 = vmatmul.bf16.gmra.mxu0 %v1515
        %v1604 = vpop.f32.mrf.mxu0
        %v1605 = vadd.f32 0.0, %v1604
        %v1606 = vpop.f32.mrf.mxu0
        %v1607 = vadd.f32 0.0, %v1606
        %1608 = vmatmul.bf16.gmra.mxu0 %v1516
        %v1609 = vpop.f32.mrf.mxu0
        %v1610 = vadd.f32 0.0, %v1609
        %v1611 = vpop.f32.mrf.mxu0
        %v1612 = vadd.f32 0.0, %v1611
        %1613 = vmatmul.bf16.gmra.mxu0 %v1517
        %v1614 = vpop.f32.mrf.mxu0
        %v1615 = vadd.f32 0.0, %v1614
        %v1616 = vpop.f32.mrf.mxu0
        %v1617 = vadd.f32 0.0, %v1616
        %1618 = vmatmul.bf16.gmra.mxu0 %v1518
        %v1619 = vpop.f32.mrf.mxu0
        %v1620 = vadd.f32 0.0, %v1619
        %v1621 = vpop.f32.mrf.mxu0
        %v1622 = vadd.f32 0.0, %v1621
        %1623 = vdwg.mxu0
        %v1624 = vadd.f32 %v1446, %v1585
        %v1625 = vadd.f32 %v1447, %v1587
        %v1626 = vadd.f32 %v1448, %v1590
        %v1627 = vadd.f32 %v1449, %v1592
        %v1628 = vadd.f32 %v1450, %v1595
        %v1629 = vadd.f32 %v1451, %v1597
        %v1630 = vadd.f32 %v1452, %v1600
        %v1631 = vadd.f32 %v1453, %v1602
        %v1632 = vadd.f32 %v1454, %v1605
        %v1633 = vadd.f32 %v1455, %v1607
        %v1634 = vadd.f32 %v1456, %v1610
        %v1635 = vadd.f32 %v1457, %v1612
        %v1636 = vadd.f32 %v1458, %v1615
        %v1637 = vadd.f32 %v1459, %v1617
        %v1638 = vadd.f32 %v1460, %v1620
        %v1639 = vadd.f32 %v1461, %v1622
        %s1640 = scalar_lea.vmem [#allocation8], 256
        %v1641 = vld [vmem:[%s1640] sm:$0xf]
        %v1642 = vld [vmem:[%s1640 + $0x4] sm:$0xf]
        %v1643 = vld [vmem:[%s1640 + $0x8] sm:$0xf]
        %v1644 = vld [vmem:[%s1640 + $0xc] sm:$0xf]
        %v1645 = vld [vmem:[%s1640 + $0x10] sm:$0xf]
        %v1646 = vld [vmem:[%s1640 + $0x14] sm:$0xf]
        %v1647 = vld [vmem:[%s1640 + $0x18] sm:$0xf]
        %v1648 = vld [vmem:[%s1640 + $0x1c] sm:$0xf]
        %v1649 = vld [vmem:[%s1640 + $0x20] sm:$0xf]
        %v1650 = vld [vmem:[%s1640 + $0x24] sm:$0xf]
        %v1651 = vld [vmem:[%s1640 + $0x28] sm:$0xf]
        %v1652 = vld [vmem:[%s1640 + $0x2c] sm:$0xf]
        %v1653 = vld [vmem:[%s1640 + $0x30] sm:$0xf]
        %v1654 = vld [vmem:[%s1640 + $0x34] sm:$0xf]
        %v1655 = vld [vmem:[%s1640 + $0x38] sm:$0xf]
        %v1656 = vld [vmem:[%s1640 + $0x3c] sm:$0xf]
        %v1659 = vunpack.c.l.b16 %v837
        %v1660 = vunpack.c.l.b16 %v838
        %v1661 = vpack.c.b16 %v1660, %v1659
        %v1679 = vunpack.c.l.b16 %v1641
        %v1680 = vunpack.c.l.b16 %v1642
        %v1681 = vunpack.c.l.b16 %v1643
        %v1682 = vunpack.c.l.b16 %v1644
        %v1683 = vunpack.c.l.b16 %v1645
        %v1684 = vunpack.c.l.b16 %v1646
        %v1685 = vunpack.c.l.b16 %v1647
        %v1686 = vunpack.c.l.b16 %v1648
        %v1687 = vunpack.c.l.b16 %v1649
        %v1688 = vunpack.c.l.b16 %v1650
        %v1689 = vunpack.c.l.b16 %v1651
        %v1690 = vunpack.c.l.b16 %v1652
        %v1691 = vunpack.c.l.b16 %v1653
        %v1692 = vunpack.c.l.b16 %v1654
        %v1693 = vunpack.c.l.b16 %v1655
        %v1694 = vunpack.c.l.b16 %v1656
        %v1695 = vpack.c.b16 %v1680, %v1679
        %v1696 = vpack.c.b16 %v1682, %v1681
        %v1697 = vpack.c.b16 %v1684, %v1683
        %v1698 = vpack.c.b16 %v1686, %v1685
        %v1699 = vpack.c.b16 %v1688, %v1687
        %v1700 = vpack.c.b16 %v1690, %v1689
        %v1701 = vpack.c.b16 %v1692, %v1691
        %v1702 = vpack.c.b16 %v1694, %v1693
        %1711 = vmatpush.bf16.msra.mxu0 %v1702
        %1712 = vmatpush.bf16.msra.mxu0 %v1701
        %1713 = vmatpush.bf16.msra.mxu0 %v1700
        %1714 = vmatpush.bf16.msra.mxu0 %v1699
        %1715 = vmatpush.bf16.msra.mxu0 %v1698
        %1716 = vmatpush.bf16.msra.mxu0 %v1697
        %1717 = vmatpush.bf16.msra.mxu0 %v1696
        %1718 = vmatpush.bf16.msra.mxu0 %v1695
        %1719 = vmatmul.bf16.gmra.mxu0 %v1512
        %v1720 = vpop.f32.mrf.mxu0
        %v1721 = vadd.f32 0.0, %v1720
        %v1722 = vpop.f32.mrf.mxu0
        %v1723 = vadd.f32 0.0, %v1722
        %1724 = vmatmul.bf16.gmra.mxu0 %v1513
        %v1725 = vpop.f32.mrf.mxu0
        %v1726 = vadd.f32 0.0, %v1725
        %v1727 = vpop.f32.mrf.mxu0
        %v1728 = vadd.f32 0.0, %v1727
        %1729 = vmatmul.bf16.gmra.mxu0 %v1514
        %v1730 = vpop.f32.mrf.mxu0
        %v1731 = vadd.f32 0.0, %v1730
        %v1732 = vpop.f32.mrf.mxu0
        %v1733 = vadd.f32 0.0, %v1732
        %1734 = vmatmul.bf16.gmra.mxu0 %v1515
        %v1735 = vpop.f32.mrf.mxu0
        %v1736 = vadd.f32 0.0, %v1735
        %v1737 = vpop.f32.mrf.mxu0
        %v1738 = vadd.f32 0.0, %v1737
        %1739 = vmatmul.bf16.gmra.mxu0 %v1516
        %v1740 = vpop.f32.mrf.mxu0
        %v1741 = vadd.f32 0.0, %v1740
        %v1742 = vpop.f32.mrf.mxu0
        %v1743 = vadd.f32 0.0, %v1742
        %1744 = vmatmul.bf16.gmra.mxu0 %v1517
        %v1745 = vpop.f32.mrf.mxu0
        %v1746 = vadd.f32 0.0, %v1745
        %v1747 = vpop.f32.mrf.mxu0
        %v1748 = vadd.f32 0.0, %v1747
        %1749 = vmatmul.bf16.gmra.mxu0 %v1518
        %v1750 = vpop.f32.mrf.mxu0
        %v1751 = vadd.f32 0.0, %v1750
        %v1752 = vpop.f32.mrf.mxu0
        %v1753 = vadd.f32 0.0, %v1752
        %1754 = vmatmul.bf16.gmra.mxu0 %v1661
        %v1755 = vpop.f32.mrf.mxu0
        %v1756 = vadd.f32 0.0, %v1755
        %v1757 = vpop.f32.mrf.mxu0
        %v1758 = vadd.f32 0.0, %v1757
        %1759 = vdwg.mxu0
        %v1760 = vadd.f32 %v1624, %v1721
        %v1761 = vadd.f32 %v1625, %v1723
        %v1762 = vadd.f32 %v1626, %v1726
        %v1763 = vadd.f32 %v1627, %v1728
        %v1764 = vadd.f32 %v1628, %v1731
        %v1765 = vadd.f32 %v1629, %v1733
        %v1766 = vadd.f32 %v1630, %v1736
        %v1767 = vadd.f32 %v1631, %v1738
        %v1768 = vadd.f32 %v1632, %v1741
        %v1769 = vadd.f32 %v1633, %v1743
        %v1770 = vadd.f32 %v1634, %v1746
        %v1771 = vadd.f32 %v1635, %v1748
        %v1772 = vadd.f32 %v1636, %v1751
        %v1773 = vadd.f32 %v1637, %v1753
        %v1774 = vadd.f32 %v1638, %v1756
        %v1775 = vadd.f32 %v1639, %v1758
        %s1776 = scalar_lea.vmem [#allocation8], 448
        %v1777 = vld [vmem:[%s1776] sm:$0xf]
        %v1778 = vld [vmem:[%s1776 + $0x4] sm:$0xf]
        %v1779 = vld [vmem:[%s1776 + $0x8] sm:$0xf]
        %v1780 = vld [vmem:[%s1776 + $0xc] sm:$0xf]
        %v1781 = vld [vmem:[%s1776 + $0x10] sm:$0xf]
        %v1782 = vld [vmem:[%s1776 + $0x14] sm:$0xf]
        %v1783 = vld [vmem:[%s1776 + $0x18] sm:$0xf]
        %v1784 = vld [vmem:[%s1776 + $0x1c] sm:$0xf]
        %v1785 = vld [vmem:[%s1776 + $0x20] sm:$0xf]
        %v1786 = vld [vmem:[%s1776 + $0x24] sm:$0xf]
        %v1787 = vld [vmem:[%s1776 + $0x28] sm:$0xf]
        %v1788 = vld [vmem:[%s1776 + $0x2c] sm:$0xf]
        %v1789 = vld [vmem:[%s1776 + $0x30] sm:$0xf]
        %v1790 = vld [vmem:[%s1776 + $0x34] sm:$0xf]
        %v1791 = vld [vmem:[%s1776 + $0x38] sm:$0xf]
        %v1792 = vld [vmem:[%s1776 + $0x3c] sm:$0xf]
        %v1795 = vunpack.c.l.b16 %v840
        %v1796 = vunpack.c.l.b16 %v841
        %v1797 = vpack.c.b16 %v1796, %v1795
        %v1815 = vunpack.c.l.b16 %v1777
        %v1816 = vunpack.c.l.b16 %v1778
        %v1817 = vunpack.c.l.b16 %v1779
        %v1818 = vunpack.c.l.b16 %v1780
        %v1819 = vunpack.c.l.b16 %v1781
        %v1820 = vunpack.c.l.b16 %v1782
        %v1821 = vunpack.c.l.b16 %v1783
        %v1822 = vunpack.c.l.b16 %v1784
        %v1823 = vunpack.c.l.b16 %v1785
        %v1824 = vunpack.c.l.b16 %v1786
        %v1825 = vunpack.c.l.b16 %v1787
        %v1826 = vunpack.c.l.b16 %v1788
        %v1827 = vunpack.c.l.b16 %v1789
        %v1828 = vunpack.c.l.b16 %v1790
        %v1829 = vunpack.c.l.b16 %v1791
        %v1830 = vunpack.c.l.b16 %v1792
        %v1831 = vpack.c.b16 %v1816, %v1815
        %v1832 = vpack.c.b16 %v1818, %v1817
        %v1833 = vpack.c.b16 %v1820, %v1819
        %v1834 = vpack.c.b16 %v1822, %v1821
        %v1835 = vpack.c.b16 %v1824, %v1823
        %v1836 = vpack.c.b16 %v1826, %v1825
        %v1837 = vpack.c.b16 %v1828, %v1827
        %v1838 = vpack.c.b16 %v1830, %v1829
        %1847 = vmatpush.bf16.msra.mxu0 %v1838
        %1848 = vmatpush.bf16.msra.mxu0 %v1837
        %1849 = vmatpush.bf16.msra.mxu0 %v1836
        %1850 = vmatpush.bf16.msra.mxu0 %v1835
        %1851 = vmatpush.bf16.msra.mxu0 %v1834
        %1852 = vmatpush.bf16.msra.mxu0 %v1833
        %1853 = vmatpush.bf16.msra.mxu0 %v1832
        %1854 = vmatpush.bf16.msra.mxu0 %v1831
        %1855 = vmatmul.bf16.gmra.mxu0 %v1513
        %v1856 = vpop.f32.mrf.mxu0
        %v1857 = vadd.f32 0.0, %v1856
        %v1858 = vpop.f32.mrf.mxu0
        %v1859 = vadd.f32 0.0, %v1858
        %1860 = vmatmul.bf16.gmra.mxu0 %v1514
        %v1861 = vpop.f32.mrf.mxu0
        %v1862 = vadd.f32 0.0, %v1861
        %v1863 = vpop.f32.mrf.mxu0
        %v1864 = vadd.f32 0.0, %v1863
        %1865 = vmatmul.bf16.gmra.mxu0 %v1515
        %v1866 = vpop.f32.mrf.mxu0
        %v1867 = vadd.f32 0.0, %v1866
        %v1868 = vpop.f32.mrf.mxu0
        %v1869 = vadd.f32 0.0, %v1868
        %1870 = vmatmul.bf16.gmra.mxu0 %v1516
        %v1871 = vpop.f32.mrf.mxu0
        %v1872 = vadd.f32 0.0, %v1871
        %v1873 = vpop.f32.mrf.mxu0
        %v1874 = vadd.f32 0.0, %v1873
        %1875 = vmatmul.bf16.gmra.mxu0 %v1517
        %v1876 = vpop.f32.mrf.mxu0
        %v1877 = vadd.f32 0.0, %v1876
        %v1878 = vpop.f32.mrf.mxu0
        %v1879 = vadd.f32 0.0, %v1878
        %1880 = vmatmul.bf16.gmra.mxu0 %v1518
        %v1881 = vpop.f32.mrf.mxu0
        %v1882 = vadd.f32 0.0, %v1881
        %v1883 = vpop.f32.mrf.mxu0
        %v1884 = vadd.f32 0.0, %v1883
        %1885 = vmatmul.bf16.gmra.mxu0 %v1661
        %v1886 = vpop.f32.mrf.mxu0
        %v1887 = vadd.f32 0.0, %v1886
        %v1888 = vpop.f32.mrf.mxu0
        %v1889 = vadd.f32 0.0, %v1888
        %1890 = vmatmul.bf16.gmra.mxu0 %v1797
        %v1891 = vpop.f32.mrf.mxu0
        %v1892 = vadd.f32 0.0, %v1891
        %v1893 = vpop.f32.mrf.mxu0
        %v1894 = vadd.f32 0.0, %v1893
        %1895 = vdwg.mxu0
        %v1896 = vadd.f32 %v1760, %v1857
        %v1897 = vadd.f32 %v1761, %v1859
        %v1898 = vadd.f32 %v1762, %v1862
        %v1899 = vadd.f32 %v1763, %v1864
        %v1900 = vadd.f32 %v1764, %v1867
        %v1901 = vadd.f32 %v1765, %v1869
        %v1902 = vadd.f32 %v1766, %v1872
        %v1903 = vadd.f32 %v1767, %v1874
        %v1904 = vadd.f32 %v1768, %v1877
        %v1905 = vadd.f32 %v1769, %v1879
        %v1906 = vadd.f32 %v1770, %v1882
        %v1907 = vadd.f32 %v1771, %v1884
        %v1908 = vadd.f32 %v1772, %v1887
        %v1909 = vadd.f32 %v1773, %v1889
        %v1910 = vadd.f32 %v1774, %v1892
        %v1911 = vadd.f32 %v1775, %v1894
        %v1912 = vld [vmem:[%s811 + $0x4] sm:$0xf]
        %v1913 = vld [vmem:[%s811 + $0x8] sm:$0xf]
        %v1914 = vld [vmem:[%s811 + $0xc] sm:$0x1]
        %v1915 = vld [vmem:[%s811 + $0x14] sm:$0xf]
        %v1916 = vld [vmem:[%s811 + $0x18] sm:$0xf]
        %v1917 = vld [vmem:[%s811 + $0x1c] sm:$0x1]
        %v1918 = vld [vmem:[%s811 + $0x24] sm:$0xf]
        %v1919 = vld [vmem:[%s811 + $0x28] sm:$0xf]
        %v1920 = vld [vmem:[%s811 + $0x2c] sm:$0x1]
        %v1921 = vld [vmem:[%s811 + $0x34] sm:$0xf]
        %v1922 = vld [vmem:[%s811 + $0x38] sm:$0xf]
        %v1923 = vld [vmem:[%s811 + $0x3c] sm:$0x1]
        %v1924 = vld [vmem:[%s811 + $0x44] sm:$0xf]
        %v1925 = vld [vmem:[%s811 + $0x48] sm:$0xf]
        %v1926 = vld [vmem:[%s811 + $0x4c] sm:$0x1]
        %v1927 = vld [vmem:[%s811 + $0x54] sm:$0xf]
        %v1928 = vld [vmem:[%s811 + $0x58] sm:$0xf]
        %v1929 = vld [vmem:[%s811 + $0x5c] sm:$0x1]
        %v1930 = vld [vmem:[%s811 + $0x64] sm:$0xf]
        %v1931 = vld [vmem:[%s811 + $0x68] sm:$0xf]
        %v1932 = vld [vmem:[%s811 + $0x6c] sm:$0x1]
        %v1933 = vld [vmem:[%s811 + $0x74] sm:$0xf]
        %v1934 = vld [vmem:[%s811 + $0x78] sm:$0xf]
        %v1935 = vld [vmem:[%s811 + $0x7c] sm:$0x1]
        %v1936 = vld [vmem:[%s811 + $0x84] sm:$0xf]
        %v1937 = vld [vmem:[%s811 + $0x88] sm:$0xf]
        %v1938 = vld [vmem:[%s811 + $0x8c] sm:$0x1]
        %v1939 = vld [vmem:[%s811 + $0x94] sm:$0xf]
        %v1940 = vld [vmem:[%s811 + $0x98] sm:$0xf]
        %v1941 = vld [vmem:[%s811 + $0x9c] sm:$0x1]
        %vm1942 = vsmask.f32 3328
        %vm1943 = vsmask.f32 7440
        %vm1944 = vmor %vm1942, %vm1943
        %v1946 = vshrl.u32 %v1912, 16
        %v1948 = vrot.slane %v1946, 4
        %v1949 = vshll.u32 %v1912, 16
        %v1951 = vrot.slane %v1949, 5
        %v1952 = vor.u32 %v1948, %v1951
        %v1953 = vrot.slane %v1952, 4
        %v1955 = vshll.u32 %v1913, 16
        %v1957 = vrot.slane %v1955, 5
        %v1958 = vsel %vm1944, %v1953, %v1957
        %v1959 = vshrl.u32 %v1913, 16
        %v1961 = vrot.slane %v1959, 4
        %v1962 = vor.u32 %v1961, %v1957
        %v1963 = vrot.slane %v1962, 4
        %v1965 = vshll.u32 %v1914, 16
        %v1967 = vrot.slane %v1965, 5
        %v1968 = vsel %vm1944, %v1963, %v1967
        %v1970 = vshrl.u32 %v1915, 16
        %v1972 = vrot.slane %v1970, 4
        %v1973 = vshll.u32 %v1915, 16
        %v1975 = vrot.slane %v1973, 5
        %v1976 = vor.u32 %v1972, %v1975
        %v1977 = vrot.slane %v1976, 4
        %v1979 = vshll.u32 %v1916, 16
        %v1981 = vrot.slane %v1979, 5
        %v1982 = vsel %vm1944, %v1977, %v1981
        %v1983 = vshrl.u32 %v1916, 16
        %v1985 = vrot.slane %v1983, 4
        %v1986 = vor.u32 %v1985, %v1981
        %v1987 = vrot.slane %v1986, 4
        %v1989 = vshll.u32 %v1917, 16
        %v1991 = vrot.slane %v1989, 5
        %v1992 = vsel %vm1944, %v1987, %v1991
        %v1994 = vshrl.u32 %v1918, 16
        %v1996 = vrot.slane %v1994, 4
        %v1997 = vshll.u32 %v1918, 16
        %v1999 = vrot.slane %v1997, 5
        %v2000 = vor.u32 %v1996, %v1999
        %v2001 = vrot.slane %v2000, 4
        %v2003 = vshll.u32 %v1919, 16
        %v2005 = vrot.slane %v2003, 5
        %v2006 = vsel %vm1944, %v2001, %v2005
        %v2007 = vshrl.u32 %v1919, 16
        %v2009 = vrot.slane %v2007, 4
        %v2010 = vor.u32 %v2009, %v2005
        %v2011 = vrot.slane %v2010, 4
        %v2013 = vshll.u32 %v1920, 16
        %v2015 = vrot.slane %v2013, 5
        %v2016 = vsel %vm1944, %v2011, %v2015
        %v2018 = vshrl.u32 %v1921, 16
        %v2020 = vrot.slane %v2018, 4
        %v2021 = vshll.u32 %v1921, 16
        %v2023 = vrot.slane %v2021, 5
        %v2024 = vor.u32 %v2020, %v2023
        %v2025 = vrot.slane %v2024, 4
        %v2027 = vshll.u32 %v1922, 16
        %v2029 = vrot.slane %v2027, 5
        %v2030 = vsel %vm1944, %v2025, %v2029
        %v2031 = vshrl.u32 %v1922, 16
        %v2033 = vrot.slane %v2031, 4
        %v2034 = vor.u32 %v2033, %v2029
        %v2035 = vrot.slane %v2034, 4
        %v2037 = vshll.u32 %v1923, 16
        %v2039 = vrot.slane %v2037, 5
        %v2040 = vsel %vm1944, %v2035, %v2039
        %v2042 = vshrl.u32 %v1924, 16
        %v2044 = vrot.slane %v2042, 4
        %v2045 = vshll.u32 %v1924, 16
        %v2047 = vrot.slane %v2045, 5
        %v2048 = vor.u32 %v2044, %v2047
        %v2049 = vrot.slane %v2048, 4
        %v2051 = vshll.u32 %v1925, 16
        %v2053 = vrot.slane %v2051, 5
        %v2054 = vsel %vm1944, %v2049, %v2053
        %v2055 = vshrl.u32 %v1925, 16
        %v2057 = vrot.slane %v2055, 4
        %v2058 = vor.u32 %v2057, %v2053
        %v2059 = vrot.slane %v2058, 4
        %v2061 = vshll.u32 %v1926, 16
        %v2063 = vrot.slane %v2061, 5
        %v2064 = vsel %vm1944, %v2059, %v2063
        %v2066 = vshrl.u32 %v1927, 16
        %v2068 = vrot.slane %v2066, 4
        %v2069 = vshll.u32 %v1927, 16
        %v2071 = vrot.slane %v2069, 5
        %v2072 = vor.u32 %v2068, %v2071
        %v2073 = vrot.slane %v2072, 4
        %v2075 = vshll.u32 %v1928, 16
        %v2077 = vrot.slane %v2075, 5
        %v2078 = vsel %vm1944, %v2073, %v2077
        %v2079 = vshrl.u32 %v1928, 16
        %v2081 = vrot.slane %v2079, 4
        %v2082 = vor.u32 %v2081, %v2077
        %v2083 = vrot.slane %v2082, 4
        %v2085 = vshll.u32 %v1929, 16
        %v2087 = vrot.slane %v2085, 5
        %v2088 = vsel %vm1944, %v2083, %v2087
        %v2090 = vshrl.u32 %v1930, 16
        %v2092 = vrot.slane %v2090, 4
        %v2093 = vshll.u32 %v1930, 16
        %v2095 = vrot.slane %v2093, 5
        %v2096 = vor.u32 %v2092, %v2095
        %v2097 = vrot.slane %v2096, 4
        %v2099 = vshll.u32 %v1931, 16
        %v2101 = vrot.slane %v2099, 5
        %v2102 = vsel %vm1944, %v2097, %v2101
        %v2103 = vshrl.u32 %v1931, 16
        %v2105 = vrot.slane %v2103, 4
        %v2106 = vor.u32 %v2105, %v2101
        %v2107 = vrot.slane %v2106, 4
        %v2109 = vshll.u32 %v1932, 16
        %v2111 = vrot.slane %v2109, 5
        %v2112 = vsel %vm1944, %v2107, %v2111
        %v2114 = vshrl.u32 %v1933, 16
        %v2116 = vrot.slane %v2114, 4
        %v2117 = vshll.u32 %v1933, 16
        %v2119 = vrot.slane %v2117, 5
        %v2120 = vor.u32 %v2116, %v2119
        %v2121 = vrot.slane %v2120, 4
        %v2123 = vshll.u32 %v1934, 16
        %v2125 = vrot.slane %v2123, 5
        %v2126 = vsel %vm1944, %v2121, %v2125
        %v2127 = vshrl.u32 %v1934, 16
        %v2129 = vrot.slane %v2127, 4
        %v2130 = vor.u32 %v2129, %v2125
        %v2131 = vrot.slane %v2130, 4
        %v2133 = vshll.u32 %v1935, 16
        %v2135 = vrot.slane %v2133, 5
        %v2136 = vsel %vm1944, %v2131, %v2135
        %s2137 = scalar_lea.vmem [#allocation8], 128
        %v2138 = vld [vmem:[%s2137] sm:$0xf]
        %v2139 = vld [vmem:[%s2137 + $0x4] sm:$0xf]
        %v2140 = vld [vmem:[%s2137 + $0x8] sm:$0xf]
        %v2141 = vld [vmem:[%s2137 + $0xc] sm:$0xf]
        %v2142 = vld [vmem:[%s2137 + $0x10] sm:$0xf]
        %v2143 = vld [vmem:[%s2137 + $0x14] sm:$0xf]
        %v2144 = vld [vmem:[%s2137 + $0x18] sm:$0xf]
        %v2145 = vld [vmem:[%s2137 + $0x1c] sm:$0xf]
        %v2146 = vld [vmem:[%s2137 + $0x20] sm:$0xf]
        %v2147 = vld [vmem:[%s2137 + $0x24] sm:$0xf]
        %v2148 = vld [vmem:[%s2137 + $0x28] sm:$0xf]
        %v2149 = vld [vmem:[%s2137 + $0x2c] sm:$0xf]
        %v2150 = vld [vmem:[%s2137 + $0x30] sm:$0xf]
        %v2151 = vld [vmem:[%s2137 + $0x34] sm:$0xf]
        %v2152 = vld [vmem:[%s2137 + $0x38] sm:$0xf]
        %v2153 = vld [vmem:[%s2137 + $0x3c] sm:$0xf]
        %v2154 = vunpack.c.l.b16 %v1958
        %v2155 = vunpack.c.l.b16 %v1968
        %v2156 = vunpack.c.l.b16 %v1982
        %v2157 = vunpack.c.l.b16 %v1992
        %v2158 = vunpack.c.l.b16 %v2006
        %v2159 = vunpack.c.l.b16 %v2016
        %v2160 = vunpack.c.l.b16 %v2030
        %v2161 = vunpack.c.l.b16 %v2040
        %v2162 = vunpack.c.l.b16 %v2054
        %v2163 = vunpack.c.l.b16 %v2064
        %v2164 = vunpack.c.l.b16 %v2078
        %v2165 = vunpack.c.l.b16 %v2088
        %v2166 = vunpack.c.l.b16 %v2102
        %v2167 = vunpack.c.l.b16 %v2112
        %v2168 = vunpack.c.l.b16 %v2126
        %v2169 = vunpack.c.l.b16 %v2136
        %v2170 = vpack.c.b16 %v2155, %v2154
        %v2171 = vpack.c.b16 %v2157, %v2156
        %v2172 = vpack.c.b16 %v2159, %v2158
        %v2173 = vpack.c.b16 %v2161, %v2160
        %v2174 = vpack.c.b16 %v2163, %v2162
        %v2175 = vpack.c.b16 %v2165, %v2164
        %v2176 = vpack.c.b16 %v2167, %v2166
        %v2177 = vpack.c.b16 %v2169, %v2168
        %v2202 = vunpack.c.l.b16 %v2138
        %v2203 = vunpack.c.l.b16 %v2139
        %v2204 = vunpack.c.l.b16 %v2140
        %v2205 = vunpack.c.l.b16 %v2141
        %v2206 = vunpack.c.l.b16 %v2142
        %v2207 = vunpack.c.l.b16 %v2143
        %v2208 = vunpack.c.l.b16 %v2144
        %v2209 = vunpack.c.l.b16 %v2145
        %v2210 = vunpack.c.l.b16 %v2146
        %v2211 = vunpack.c.l.b16 %v2147
        %v2212 = vunpack.c.l.b16 %v2148
        %v2213 = vunpack.c.l.b16 %v2149
        %v2214 = vunpack.c.l.b16 %v2150
        %v2215 = vunpack.c.l.b16 %v2151
        %v2216 = vunpack.c.l.b16 %v2152
        %v2217 = vunpack.c.l.b16 %v2153
        %v2218 = vpack.c.b16 %v2203, %v2202
        %v2219 = vpack.c.b16 %v2205, %v2204
        %v2220 = vpack.c.b16 %v2207, %v2206
        %v2221 = vpack.c.b16 %v2209, %v2208
        %v2222 = vpack.c.b16 %v2211, %v2210
        %v2223 = vpack.c.b16 %v2213, %v2212
        %v2224 = vpack.c.b16 %v2215, %v2214
        %v2225 = vpack.c.b16 %v2217, %v2216
        %2234 = vmatpush.bf16.msra.mxu0 %v2225
        %2235 = vmatpush.bf16.msra.mxu0 %v2224
        %2236 = vmatpush.bf16.msra.mxu0 %v2223
        %2237 = vmatpush.bf16.msra.mxu0 %v2222
        %2238 = vmatpush.bf16.msra.mxu0 %v2221
        %2239 = vmatpush.bf16.msra.mxu0 %v2220
        %2240 = vmatpush.bf16.msra.mxu0 %v2219
        %2241 = vmatpush.bf16.msra.mxu0 %v2218
        %2242 = vmatmul.bf16.gmra.mxu0 %v2170
        %v2243 = vpop.f32.mrf.mxu0
        %v2244 = vadd.f32 0.0, %v2243
        %v2245 = vpop.f32.mrf.mxu0
        %v2246 = vadd.f32 0.0, %v2245
        %2247 = vmatmul.bf16.gmra.mxu0 %v2171
        %v2248 = vpop.f32.mrf.mxu0
        %v2249 = vadd.f32 0.0, %v2248
        %v2250 = vpop.f32.mrf.mxu0
        %v2251 = vadd.f32 0.0, %v2250
        %2252 = vmatmul.bf16.gmra.mxu0 %v2172
        %v2253 = vpop.f32.mrf.mxu0
        %v2254 = vadd.f32 0.0, %v2253
        %v2255 = vpop.f32.mrf.mxu0
        %v2256 = vadd.f32 0.0, %v2255
        %2257 = vmatmul.bf16.gmra.mxu0 %v2173
        %v2258 = vpop.f32.mrf.mxu0
        %v2259 = vadd.f32 0.0, %v2258
        %v2260 = vpop.f32.mrf.mxu0
        %v2261 = vadd.f32 0.0, %v2260
        %2262 = vmatmul.bf16.gmra.mxu0 %v2174
        %v2263 = vpop.f32.mrf.mxu0
        %v2264 = vadd.f32 0.0, %v2263
        %v2265 = vpop.f32.mrf.mxu0
        %v2266 = vadd.f32 0.0, %v2265
        %2267 = vmatmul.bf16.gmra.mxu0 %v2175
        %v2268 = vpop.f32.mrf.mxu0
        %v2269 = vadd.f32 0.0, %v2268
        %v2270 = vpop.f32.mrf.mxu0
        %v2271 = vadd.f32 0.0, %v2270
        %2272 = vmatmul.bf16.gmra.mxu0 %v2176
        %v2273 = vpop.f32.mrf.mxu0
        %v2274 = vadd.f32 0.0, %v2273
        %v2275 = vpop.f32.mrf.mxu0
        %v2276 = vadd.f32 0.0, %v2275
        %2277 = vmatmul.bf16.gmra.mxu0 %v2177
        %v2278 = vpop.f32.mrf.mxu0
        %v2279 = vadd.f32 0.0, %v2278
        %v2280 = vpop.f32.mrf.mxu0
        %v2281 = vadd.f32 0.0, %v2280
        %2282 = vdwg.mxu0
        %v2283 = vadd.f32 %v1896, %v2244
        %v2284 = vadd.f32 %v1897, %v2246
        %v2285 = vadd.f32 %v1898, %v2249
        %v2286 = vadd.f32 %v1899, %v2251
        %v2287 = vadd.f32 %v1900, %v2254
        %v2288 = vadd.f32 %v1901, %v2256
        %v2289 = vadd.f32 %v1902, %v2259
        %v2290 = vadd.f32 %v1903, %v2261
        %v2291 = vadd.f32 %v1904, %v2264
        %v2292 = vadd.f32 %v1905, %v2266
        %v2293 = vadd.f32 %v1906, %v2269
        %v2294 = vadd.f32 %v1907, %v2271
        %v2295 = vadd.f32 %v1908, %v2274
        %v2296 = vadd.f32 %v1909, %v2276
        %v2297 = vadd.f32 %v1910, %v2279
        %v2298 = vadd.f32 %v1911, %v2281
        %v2300 = vshrl.u32 %v1936, 16
        %v2302 = vrot.slane %v2300, 4
        %v2303 = vshll.u32 %v1936, 16
        %v2305 = vrot.slane %v2303, 5
        %v2306 = vor.u32 %v2302, %v2305
        %v2307 = vrot.slane %v2306, 4
        %v2309 = vshll.u32 %v1937, 16
        %v2311 = vrot.slane %v2309, 5
        %v2312 = vsel %vm1944, %v2307, %v2311
        %v2313 = vshrl.u32 %v1937, 16
        %v2315 = vrot.slane %v2313, 4
        %v2316 = vor.u32 %v2315, %v2311
        %v2317 = vrot.slane %v2316, 4
        %v2319 = vshll.u32 %v1938, 16
        %v2321 = vrot.slane %v2319, 5
        %v2322 = vsel %vm1944, %v2317, %v2321
        %s2323 = scalar_lea.vmem [#allocation8], 320
        %v2324 = vld [vmem:[%s2323] sm:$0xf]
        %v2325 = vld [vmem:[%s2323 + $0x4] sm:$0xf]
        %v2326 = vld [vmem:[%s2323 + $0x8] sm:$0xf]
        %v2327 = vld [vmem:[%s2323 + $0xc] sm:$0xf]
        %v2328 = vld [vmem:[%s2323 + $0x10] sm:$0xf]
        %v2329 = vld [vmem:[%s2323 + $0x14] sm:$0xf]
        %v2330 = vld [vmem:[%s2323 + $0x18] sm:$0xf]
        %v2331 = vld [vmem:[%s2323 + $0x1c] sm:$0xf]
        %v2332 = vld [vmem:[%s2323 + $0x20] sm:$0xf]
        %v2333 = vld [vmem:[%s2323 + $0x24] sm:$0xf]
        %v2334 = vld [vmem:[%s2323 + $0x28] sm:$0xf]
        %v2335 = vld [vmem:[%s2323 + $0x2c] sm:$0xf]
        %v2336 = vld [vmem:[%s2323 + $0x30] sm:$0xf]
        %v2337 = vld [vmem:[%s2323 + $0x34] sm:$0xf]
        %v2338 = vld [vmem:[%s2323 + $0x38] sm:$0xf]
        %v2339 = vld [vmem:[%s2323 + $0x3c] sm:$0xf]
        %v2340 = vunpack.c.l.b16 %v2312
        %v2341 = vunpack.c.l.b16 %v2322
        %v2342 = vpack.c.b16 %v2341, %v2340
        %v2360 = vunpack.c.l.b16 %v2324
        %v2361 = vunpack.c.l.b16 %v2325
        %v2362 = vunpack.c.l.b16 %v2326
        %v2363 = vunpack.c.l.b16 %v2327
        %v2364 = vunpack.c.l.b16 %v2328
        %v2365 = vunpack.c.l.b16 %v2329
        %v2366 = vunpack.c.l.b16 %v2330
        %v2367 = vunpack.c.l.b16 %v2331
        %v2368 = vunpack.c.l.b16 %v2332
        %v2369 = vunpack.c.l.b16 %v2333
        %v2370 = vunpack.c.l.b16 %v2334
        %v2371 = vunpack.c.l.b16 %v2335
        %v2372 = vunpack.c.l.b16 %v2336
        %v2373 = vunpack.c.l.b16 %v2337
        %v2374 = vunpack.c.l.b16 %v2338
        %v2375 = vunpack.c.l.b16 %v2339
        %v2376 = vpack.c.b16 %v2361, %v2360
        %v2377 = vpack.c.b16 %v2363, %v2362
        %v2378 = vpack.c.b16 %v2365, %v2364
        %v2379 = vpack.c.b16 %v2367, %v2366
        %v2380 = vpack.c.b16 %v2369, %v2368
        %v2381 = vpack.c.b16 %v2371, %v2370
        %v2382 = vpack.c.b16 %v2373, %v2372
        %v2383 = vpack.c.b16 %v2375, %v2374
        %2392 = vmatpush.bf16.msra.mxu0 %v2383
        %2393 = vmatpush.bf16.msra.mxu0 %v2382
        %2394 = vmatpush.bf16.msra.mxu0 %v2381
        %2395 = vmatpush.bf16.msra.mxu0 %v2380
        %2396 = vmatpush.bf16.msra.mxu0 %v2379
        %2397 = vmatpush.bf16.msra.mxu0 %v2378
        %2398 = vmatpush.bf16.msra.mxu0 %v2377
        %2399 = vmatpush.bf16.msra.mxu0 %v2376
        %2400 = vmatmul.bf16.gmra.mxu0 %v2171
        %v2401 = vpop.f32.mrf.mxu0
        %v2402 = vadd.f32 0.0, %v2401
        %v2403 = vpop.f32.mrf.mxu0
        %v2404 = vadd.f32 0.0, %v2403
        %2405 = vmatmul.bf16.gmra.mxu0 %v2172
        %v2406 = vpop.f32.mrf.mxu0
        %v2407 = vadd.f32 0.0, %v2406
        %v2408 = vpop.f32.mrf.mxu0
        %v2409 = vadd.f32 0.0, %v2408
        %2410 = vmatmul.bf16.gmra.mxu0 %v2173
        %v2411 = vpop.f32.mrf.mxu0
        %v2412 = vadd.f32 0.0, %v2411
        %v2413 = vpop.f32.mrf.mxu0
        %v2414 = vadd.f32 0.0, %v2413
        %2415 = vmatmul.bf16.gmra.mxu0 %v2174
        %v2416 = vpop.f32.mrf.mxu0
        %v2417 = vadd.f32 0.0, %v2416
        %v2418 = vpop.f32.mrf.mxu0
        %v2419 = vadd.f32 0.0, %v2418
        %2420 = vmatmul.bf16.gmra.mxu0 %v2175
        %v2421 = vpop.f32.mrf.mxu0
        %v2422 = vadd.f32 0.0, %v2421
        %v2423 = vpop.f32.mrf.mxu0
        %v2424 = vadd.f32 0.0, %v2423
        %2425 = vmatmul.bf16.gmra.mxu0 %v2176
        %v2426 = vpop.f32.mrf.mxu0
        %v2427 = vadd.f32 0.0, %v2426
        %v2428 = vpop.f32.mrf.mxu0
        %v2429 = vadd.f32 0.0, %v2428
        %2430 = vmatmul.bf16.gmra.mxu0 %v2177
        %v2431 = vpop.f32.mrf.mxu0
        %v2432 = vadd.f32 0.0, %v2431
        %v2433 = vpop.f32.mrf.mxu0
        %v2434 = vadd.f32 0.0, %v2433
        %2435 = vmatmul.bf16.gmra.mxu0 %v2342
        %v2436 = vpop.f32.mrf.mxu0
        %v2437 = vadd.f32 0.0, %v2436
        %v2438 = vpop.f32.mrf.mxu0
        %v2439 = vadd.f32 0.0, %v2438
        %2440 = vdwg.mxu0
        %v2441 = vadd.f32 %v2283, %v2402
        %v2442 = vadd.f32 %v2284, %v2404
        %v2443 = vadd.f32 %v2285, %v2407
        %v2444 = vadd.f32 %v2286, %v2409
        %v2445 = vadd.f32 %v2287, %v2412
        %v2446 = vadd.f32 %v2288, %v2414
        %v2447 = vadd.f32 %v2289, %v2417
        %v2448 = vadd.f32 %v2290, %v2419
        %v2449 = vadd.f32 %v2291, %v2422
        %v2450 = vadd.f32 %v2292, %v2424
        %v2451 = vadd.f32 %v2293, %v2427
        %v2452 = vadd.f32 %v2294, %v2429
        %v2453 = vadd.f32 %v2295, %v2432
        %v2454 = vadd.f32 %v2296, %v2434
        %v2455 = vadd.f32 %v2297, %v2437
        %v2456 = vadd.f32 %v2298, %v2439
        %v2458 = vshrl.u32 %v1939, 16
        %v2460 = vrot.slane %v2458, 4
        %v2461 = vshll.u32 %v1939, 16
        %v2463 = vrot.slane %v2461, 5
        %v2464 = vor.u32 %v2460, %v2463
        %v2465 = vrot.slane %v2464, 4
        %v2467 = vshll.u32 %v1940, 16
        %v2469 = vrot.slane %v2467, 5
        %v2470 = vsel %vm1944, %v2465, %v2469
        %v2471 = vshrl.u32 %v1940, 16
        %v2473 = vrot.slane %v2471, 4
        %v2474 = vor.u32 %v2473, %v2469
        %v2475 = vrot.slane %v2474, 4
        %v2477 = vshll.u32 %v1941, 16
        %v2479 = vrot.slane %v2477, 5
        %v2480 = vsel %vm1944, %v2475, %v2479
        %s2481 = scalar_lea.vmem [#allocation8], 512
        %v2482 = vld [vmem:[%s2481] sm:$0xf]
        %v2483 = vld [vmem:[%s2481 + $0x4] sm:$0xf]
        %v2484 = vld [vmem:[%s2481 + $0x8] sm:$0xf]
        %v2485 = vld [vmem:[%s2481 + $0xc] sm:$0xf]
        %v2486 = vld [vmem:[%s2481 + $0x10] sm:$0xf]
        %v2487 = vld [vmem:[%s2481 + $0x14] sm:$0xf]
        %v2488 = vld [vmem:[%s2481 + $0x18] sm:$0xf]
        %v2489 = vld [vmem:[%s2481 + $0x1c] sm:$0xf]
        %v2490 = vld [vmem:[%s2481 + $0x20] sm:$0xf]
        %v2491 = vld [vmem:[%s2481 + $0x24] sm:$0xf]
        %v2492 = vld [vmem:[%s2481 + $0x28] sm:$0xf]
        %v2493 = vld [vmem:[%s2481 + $0x2c] sm:$0xf]
        %v2494 = vld [vmem:[%s2481 + $0x30] sm:$0xf]
        %v2495 = vld [vmem:[%s2481 + $0x34] sm:$0xf]
        %v2496 = vld [vmem:[%s2481 + $0x38] sm:$0xf]
        %v2497 = vld [vmem:[%s2481 + $0x3c] sm:$0xf]
        %v2498 = vunpack.c.l.b16 %v2470
        %v2499 = vunpack.c.l.b16 %v2480
        %v2500 = vpack.c.b16 %v2499, %v2498
        %v2518 = vunpack.c.l.b16 %v2482
        %v2519 = vunpack.c.l.b16 %v2483
        %v2520 = vunpack.c.l.b16 %v2484
        %v2521 = vunpack.c.l.b16 %v2485
        %v2522 = vunpack.c.l.b16 %v2486
        %v2523 = vunpack.c.l.b16 %v2487
        %v2524 = vunpack.c.l.b16 %v2488
        %v2525 = vunpack.c.l.b16 %v2489
        %v2526 = vunpack.c.l.b16 %v2490
        %v2527 = vunpack.c.l.b16 %v2491
        %v2528 = vunpack.c.l.b16 %v2492
        %v2529 = vunpack.c.l.b16 %v2493
        %v2530 = vunpack.c.l.b16 %v2494
        %v2531 = vunpack.c.l.b16 %v2495
        %v2532 = vunpack.c.l.b16 %v2496
        %v2533 = vunpack.c.l.b16 %v2497
        %v2534 = vpack.c.b16 %v2519, %v2518
        %v2535 = vpack.c.b16 %v2521, %v2520
        %v2536 = vpack.c.b16 %v2523, %v2522
        %v2537 = vpack.c.b16 %v2525, %v2524
        %v2538 = vpack.c.b16 %v2527, %v2526
        %v2539 = vpack.c.b16 %v2529, %v2528
        %v2540 = vpack.c.b16 %v2531, %v2530
        %v2541 = vpack.c.b16 %v2533, %v2532
        %2550 = vmatpush.bf16.msra.mxu0 %v2541
        %2551 = vmatpush.bf16.msra.mxu0 %v2540
        %2552 = vmatpush.bf16.msra.mxu0 %v2539
        %2553 = vmatpush.bf16.msra.mxu0 %v2538
        %2554 = vmatpush.bf16.msra.mxu0 %v2537
        %2555 = vmatpush.bf16.msra.mxu0 %v2536
        %2556 = vmatpush.bf16.msra.mxu0 %v2535
        %2557 = vmatpush.bf16.msra.mxu0 %v2534
        %2558 = vmatmul.bf16.gmra.mxu0 %v2172
        %v2559 = vpop.f32.mrf.mxu0
        %v2560 = vadd.f32 0.0, %v2559
        %v2561 = vpop.f32.mrf.mxu0
        %v2562 = vadd.f32 0.0, %v2561
        %2563 = vmatmul.bf16.gmra.mxu0 %v2173
        %v2564 = vpop.f32.mrf.mxu0
        %v2565 = vadd.f32 0.0, %v2564
        %v2566 = vpop.f32.mrf.mxu0
        %v2567 = vadd.f32 0.0, %v2566
        %2568 = vmatmul.bf16.gmra.mxu0 %v2174
        %v2569 = vpop.f32.mrf.mxu0
        %v2570 = vadd.f32 0.0, %v2569
        %v2571 = vpop.f32.mrf.mxu0
        %v2572 = vadd.f32 0.0, %v2571
        %2573 = vmatmul.bf16.gmra.mxu0 %v2175
        %v2574 = vpop.f32.mrf.mxu0
        %v2575 = vadd.f32 0.0, %v2574
        %v2576 = vpop.f32.mrf.mxu0
        %v2577 = vadd.f32 0.0, %v2576
        %2578 = vmatmul.bf16.gmra.mxu0 %v2176
        %v2579 = vpop.f32.mrf.mxu0
        %v2580 = vadd.f32 0.0, %v2579
        %v2581 = vpop.f32.mrf.mxu0
        %v2582 = vadd.f32 0.0, %v2581
        %2583 = vmatmul.bf16.gmra.mxu0 %v2177
        %v2584 = vpop.f32.mrf.mxu0
        %v2585 = vadd.f32 0.0, %v2584
        %v2586 = vpop.f32.mrf.mxu0
        %v2587 = vadd.f32 0.0, %v2586
        %2588 = vmatmul.bf16.gmra.mxu0 %v2342
        %v2589 = vpop.f32.mrf.mxu0
        %v2590 = vadd.f32 0.0, %v2589
        %v2591 = vpop.f32.mrf.mxu0
        %v2592 = vadd.f32 0.0, %v2591
        %2593 = vmatmul.bf16.gmra.mxu0 %v2500
        %v2594 = vpop.f32.mrf.mxu0
        %v2595 = vadd.f32 0.0, %v2594
        %v2596 = vpop.f32.mrf.mxu0
        %v2597 = vadd.f32 0.0, %v2596
        %2598 = vdwg.mxu0
        %v2599 = vadd.f32 %v2441, %v2560
        %v2600 = vadd.f32 %v2442, %v2562
        %v2601 = vadd.f32 %v2443, %v2565
        %v2602 = vadd.f32 %v2444, %v2567
        %v2603 = vadd.f32 %v2445, %v2570
        %v2604 = vadd.f32 %v2446, %v2572
        %v2605 = vadd.f32 %v2447, %v2575
        %v2606 = vadd.f32 %v2448, %v2577
        %v2607 = vadd.f32 %v2449, %v2580
        %v2608 = vadd.f32 %v2450, %v2582
        %v2609 = vadd.f32 %v2451, %v2585
        %v2610 = vadd.f32 %v2452, %v2587
        %v2611 = vadd.f32 %v2453, %v2590
        %v2612 = vadd.f32 %v2454, %v2592
        %v2613 = vadd.f32 %v2455, %v2595
        %v2614 = vadd.f32 %v2456, %v2597
        %v2615 = vld [vmem:[%s5] sm:$0x1]
        %v2617 = vperm.slane %v2615, 0
        %v2619 = vadd.f32 %v2599, %v2617
        %v2620 = vadd.f32 %v2600, %v2617
        %v2621 = vadd.f32 %v2601, %v2617
        %v2622 = vadd.f32 %v2602, %v2617
        %v2623 = vadd.f32 %v2603, %v2617
        %v2624 = vadd.f32 %v2604, %v2617
        %v2625 = vadd.f32 %v2605, %v2617
        %v2626 = vadd.f32 %v2606, %v2617
        %v2627 = vadd.f32 %v2607, %v2617
        %v2628 = vadd.f32 %v2608, %v2617
        %v2629 = vadd.f32 %v2609, %v2617
        %v2630 = vadd.f32 %v2610, %v2617
        %v2631 = vadd.f32 %v2611, %v2617
        %v2632 = vadd.f32 %v2612, %v2617
        %v2633 = vadd.f32 %v2613, %v2617
        %v2634 = vadd.f32 %v2614, %v2617
        %v2635 = vmax.f32 %v2619, 0.0
        %v2636 = vmax.f32 %v2620, 0.0
        %v2637 = vmax.f32 %v2621, 0.0
        %v2638 = vmax.f32 %v2622, 0.0
        %v2639 = vmax.f32 %v2623, 0.0
        %v2640 = vmax.f32 %v2624, 0.0
        %v2641 = vmax.f32 %v2625, 0.0
        %v2642 = vmax.f32 %v2626, 0.0
        %v2643 = vmax.f32 %v2627, 0.0
        %v2644 = vmax.f32 %v2628, 0.0
        %v2645 = vmax.f32 %v2629, 0.0
        %v2646 = vmax.f32 %v2630, 0.0
        %v2647 = vmax.f32 %v2631, 0.0
        %v2648 = vmax.f32 %v2632, 0.0
        %v2649 = vmax.f32 %v2633, 0.0
        %v2650 = vmax.f32 %v2634, 0.0
        %v2651 = vpack.c.bf16 %v2636, %v2635
        %v2652 = vpack.c.bf16 %v2638, %v2637
        %v2653 = vpack.c.bf16 %v2640, %v2639
        %v2654 = vpack.c.bf16 %v2642, %v2641
        %v2655 = vpack.c.bf16 %v2644, %v2643
        %v2656 = vpack.c.bf16 %v2646, %v2645
        %v2657 = vpack.c.bf16 %v2648, %v2647
        %v2658 = vpack.c.bf16 %v2650, %v2649
        %v2659 = vld [vmem:[#allocation9] sm:$0xf]
        %v2660 = vld [vmem:[#allocation9 + $0x4] sm:$0xf]
        %v2661 = vld [vmem:[#allocation9 + $0x8] sm:$0xf]
        %v2662 = vld [vmem:[#allocation9 + $0xc] sm:$0xf]
        %v2663 = vld [vmem:[#allocation9 + $0x10] sm:$0xf]
        %v2664 = vld [vmem:[#allocation9 + $0x14] sm:$0xf]
        %v2665 = vld [vmem:[#allocation9 + $0x18] sm:$0xf]
        %v2666 = vld [vmem:[#allocation9 + $0x1c] sm:$0xf]
        %v2667 = vld [vmem:[#allocation9 + $0x20] sm:$0xf]
        %v2668 = vld [vmem:[#allocation9 + $0x24] sm:$0xf]
        %v2669 = vld [vmem:[#allocation9 + $0x28] sm:$0xf]
        %v2670 = vld [vmem:[#allocation9 + $0x2c] sm:$0xf]
        %v2671 = vld [vmem:[#allocation9 + $0x30] sm:$0xf]
        %v2672 = vld [vmem:[#allocation9 + $0x34] sm:$0xf]
        %v2673 = vld [vmem:[#allocation9 + $0x38] sm:$0xf]
        %v2674 = vld [vmem:[#allocation9 + $0x3c] sm:$0xf]
        %v2675 = vld [vmem:[%s6] sm:$0x1]
        %v2677 = vperm.slane %v2675, 0
        %v2695 = vunpack.c.l.b16 %v2659
        %v2696 = vunpack.c.l.b16 %v2660
        %v2697 = vunpack.c.l.b16 %v2661
        %v2698 = vunpack.c.l.b16 %v2662
        %v2699 = vunpack.c.l.b16 %v2663
        %v2700 = vunpack.c.l.b16 %v2664
        %v2701 = vunpack.c.l.b16 %v2665
        %v2702 = vunpack.c.l.b16 %v2666
        %v2703 = vunpack.c.l.b16 %v2667
        %v2704 = vunpack.c.l.b16 %v2668
        %v2705 = vunpack.c.l.b16 %v2669
        %v2706 = vunpack.c.l.b16 %v2670
        %v2707 = vunpack.c.l.b16 %v2671
        %v2708 = vunpack.c.l.b16 %v2672
        %v2709 = vunpack.c.l.b16 %v2673
        %v2710 = vunpack.c.l.b16 %v2674
        %v2711 = vpack.c.b16 %v2696, %v2695
        %v2712 = vpack.c.b16 %v2698, %v2697
        %v2713 = vpack.c.b16 %v2700, %v2699
        %v2714 = vpack.c.b16 %v2702, %v2701
        %v2715 = vpack.c.b16 %v2704, %v2703
        %v2716 = vpack.c.b16 %v2706, %v2705
        %v2717 = vpack.c.b16 %v2708, %v2707
        %v2718 = vpack.c.b16 %v2710, %v2709
        %2727 = vmatpush.bf16.msra.mxu0 %v2718
        %2728 = vmatpush.bf16.msra.mxu0 %v2717
        %2729 = vmatpush.bf16.msra.mxu0 %v2716
        %2730 = vmatpush.bf16.msra.mxu0 %v2715
        %2731 = vmatpush.bf16.msra.mxu0 %v2714
        %2732 = vmatpush.bf16.msra.mxu0 %v2713
        %2733 = vmatpush.bf16.msra.mxu0 %v2712
        %2734 = vmatpush.bf16.msra.mxu0 %v2711
        %2735 = vmatmul.bf16.gmra.mxu0 %v2651
        %v2736 = vpop.f32.mrf.mxu0
        %v2737 = vadd.f32 %v2677, %v2736
        %v2738 = vpop.f32.mrf.mxu0
        %v2739 = vadd.f32 %v2677, %v2738
        %2740 = vmatmul.bf16.gmra.mxu0 %v2652
        %v2741 = vpop.f32.mrf.mxu0
        %v2742 = vadd.f32 %v2677, %v2741
        %v2743 = vpop.f32.mrf.mxu0
        %v2744 = vadd.f32 %v2677, %v2743
        %2745 = vmatmul.bf16.gmra.mxu0 %v2653
        %v2746 = vpop.f32.mrf.mxu0
        %v2747 = vadd.f32 %v2677, %v2746
        %v2748 = vpop.f32.mrf.mxu0
        %v2749 = vadd.f32 %v2677, %v2748
        %2750 = vmatmul.bf16.gmra.mxu0 %v2654
        %v2751 = vpop.f32.mrf.mxu0
        %v2752 = vadd.f32 %v2677, %v2751
        %v2753 = vpop.f32.mrf.mxu0
        %v2754 = vadd.f32 %v2677, %v2753
        %2755 = vmatmul.bf16.gmra.mxu0 %v2655
        %v2756 = vpop.f32.mrf.mxu0
        %v2757 = vadd.f32 %v2677, %v2756
        %v2758 = vpop.f32.mrf.mxu0
        %v2759 = vadd.f32 %v2677, %v2758
        %2760 = vmatmul.bf16.gmra.mxu0 %v2656
        %v2761 = vpop.f32.mrf.mxu0
        %v2762 = vadd.f32 %v2677, %v2761
        %v2763 = vpop.f32.mrf.mxu0
        %v2764 = vadd.f32 %v2677, %v2763
        %2765 = vmatmul.bf16.gmra.mxu0 %v2657
        %v2766 = vpop.f32.mrf.mxu0
        %v2767 = vadd.f32 %v2677, %v2766
        %v2768 = vpop.f32.mrf.mxu0
        %v2769 = vadd.f32 %v2677, %v2768
        %2770 = vmatmul.bf16.gmra.mxu0 %v2658
        %v2771 = vpop.f32.mrf.mxu0
        %v2772 = vadd.f32 %v2677, %v2771
        %v2773 = vpop.f32.mrf.mxu0
        %v2774 = vadd.f32 %v2677, %v2773
        %2775 = vdwg.mxu0
        %s2776 = smul.u32 0, 16
        %s2777 = scalar_lea.vmem %s302, %s2776 [#allocation3]
        %v2778 = vld [vmem:[%s2777] sm:$0xff]
        %v2779 = vld [vmem:[%s2777 + $0x8] sm:$0xff]
        %v2780 = vld [vmem:[%s2777 + $0x10] sm:$0xff]
        %v2781 = vld [vmem:[%s2777 + $0x18] sm:$0xff]
        %v2782 = vld [vmem:[%s2777 + $0x20] sm:$0xff]
        %v2783 = vld [vmem:[%s2777 + $0x28] sm:$0xff]
        %v2784 = vld [vmem:[%s2777 + $0x30] sm:$0xff]
        %v2785 = vld [vmem:[%s2777 + $0x38] sm:$0xff]
        %v2786 = vld [vmem:[%s2777 + $0x40] sm:$0xff]
        %v2787 = vld [vmem:[%s2777 + $0x48] sm:$0xff]
        %v2788 = vld [vmem:[%s2777 + $0x50] sm:$0xff]
        %v2789 = vld [vmem:[%s2777 + $0x58] sm:$0xff]
        %v2790 = vld [vmem:[%s2777 + $0x60] sm:$0xff]
        %v2791 = vld [vmem:[%s2777 + $0x68] sm:$0xff]
        %v2792 = vld [vmem:[%s2777 + $0x70] sm:$0xff]
        %v2793 = vld [vmem:[%s2777 + $0x78] sm:$0xff]
        %v2794 = vadd.f32 %v2737, %v2778
        %v2795 = vadd.f32 %v2739, %v2779
        %v2796 = vadd.f32 %v2742, %v2780
        %v2797 = vadd.f32 %v2744, %v2781
        %v2798 = vadd.f32 %v2747, %v2782
        %v2799 = vadd.f32 %v2749, %v2783
        %v2800 = vadd.f32 %v2752, %v2784
        %v2801 = vadd.f32 %v2754, %v2785
        %v2802 = vadd.f32 %v2757, %v2786
        %v2803 = vadd.f32 %v2759, %v2787
        %v2804 = vadd.f32 %v2762, %v2788
        %v2805 = vadd.f32 %v2764, %v2789
        %v2806 = vadd.f32 %v2767, %v2790
        %v2807 = vadd.f32 %v2769, %v2791
        %v2808 = vadd.f32 %v2772, %v2792
        %v2809 = vadd.f32 %v2774, %v2793
        %v2810 = vmax.f32 %v2794, 0.0
        %v2811 = vmax.f32 %v2795, 0.0
        %v2812 = vmax.f32 %v2796, 0.0
        %v2813 = vmax.f32 %v2797, 0.0
        %v2814 = vmax.f32 %v2798, 0.0
        %v2815 = vmax.f32 %v2799, 0.0
        %v2816 = vmax.f32 %v2800, 0.0
        %v2817 = vmax.f32 %v2801, 0.0
        %v2818 = vmax.f32 %v2802, 0.0
        %v2819 = vmax.f32 %v2803, 0.0
        %v2820 = vmax.f32 %v2804, 0.0
        %v2821 = vmax.f32 %v2805, 0.0
        %v2822 = vmax.f32 %v2806, 0.0
        %v2823 = vmax.f32 %v2807, 0.0
        %v2824 = vmax.f32 %v2808, 0.0
        %v2825 = vmax.f32 %v2809, 0.0
        %s2826 = scalar_lea.vmem %s348, %s2776 [#allocation11]
        %2827 = vst [vmem:[%s2826] sm:$0xff] %v2810
        %2828 = vst [vmem:[%s2826 + $0x8] sm:$0xff] %v2811
        %2829 = vst [vmem:[%s2826 + $0x10] sm:$0xff] %v2812
        %2830 = vst [vmem:[%s2826 + $0x18] sm:$0xff] %v2813
        %2831 = vst [vmem:[%s2826 + $0x20] sm:$0xff] %v2814
        %2832 = vst [vmem:[%s2826 + $0x28] sm:$0xff] %v2815
        %2833 = vst [vmem:[%s2826 + $0x30] sm:$0xff] %v2816
        %2834 = vst [vmem:[%s2826 + $0x38] sm:$0xff] %v2817
        %2835 = vst [vmem:[%s2826 + $0x40] sm:$0xff] %v2818
        %2836 = vst [vmem:[%s2826 + $0x48] sm:$0xff] %v2819
        %2837 = vst [vmem:[%s2826 + $0x50] sm:$0xff] %v2820
        %2838 = vst [vmem:[%s2826 + $0x58] sm:$0xff] %v2821
        %2839 = vst [vmem:[%s2826 + $0x60] sm:$0xff] %v2822
        %2840 = vst [vmem:[%s2826 + $0x68] sm:$0xff] %v2823
        %2841 = vst [vmem:[%s2826 + $0x70] sm:$0xff] %v2824
        %2842 = vst [vmem:[%s2826 + $0x78] sm:$0xff] %v2825
        %s2843 = smul.u32 8, 4
        %s2844 = smul.addr %s2843, 4
        %s2845 = scalar_lea.vmem [#allocation2], %s2844
        %v2846 = vld [vmem:[%s2845] sm:$0x8]
        %v2847 = vld [vmem:[%s2845 + $0x4] sm:$0xf]
        %v2848 = vld [vmem:[%s2845 + $0x8] sm:$0xf]
        %v2849 = vld [vmem:[%s2845 + $0x10] sm:$0x8]
        %v2850 = vld [vmem:[%s2845 + $0x14] sm:$0xf]
        %v2851 = vld [vmem:[%s2845 + $0x18] sm:$0xf]
        %v2852 = vld [vmem:[%s2845 + $0x20] sm:$0x8]
        %v2853 = vld [vmem:[%s2845 + $0x24] sm:$0xf]
        %v2854 = vld [vmem:[%s2845 + $0x28] sm:$0xf]
        %v2855 = vld [vmem:[%s2845 + $0x30] sm:$0x8]
        %v2856 = vld [vmem:[%s2845 + $0x34] sm:$0xf]
        %v2857 = vld [vmem:[%s2845 + $0x38] sm:$0xf]
        %v2858 = vld [vmem:[%s2845 + $0x40] sm:$0x8]
        %v2859 = vld [vmem:[%s2845 + $0x44] sm:$0xf]
        %v2860 = vld [vmem:[%s2845 + $0x48] sm:$0xf]
        %v2861 = vld [vmem:[%s2845 + $0x50] sm:$0x8]
        %v2862 = vld [vmem:[%s2845 + $0x54] sm:$0xf]
        %v2863 = vld [vmem:[%s2845 + $0x58] sm:$0xf]
        %v2864 = vld [vmem:[%s2845 + $0x60] sm:$0x8]
        %v2865 = vld [vmem:[%s2845 + $0x64] sm:$0xf]
        %v2866 = vld [vmem:[%s2845 + $0x68] sm:$0xf]
        %v2867 = vld [vmem:[%s2845 + $0x70] sm:$0x8]
        %v2868 = vld [vmem:[%s2845 + $0x74] sm:$0xf]
        %v2869 = vld [vmem:[%s2845 + $0x78] sm:$0xf]
        %v2870 = vld [vmem:[%s2845 + $0x80] sm:$0x8]
        %v2871 = vld [vmem:[%s2845 + $0x84] sm:$0xf]
        %v2872 = vld [vmem:[%s2845 + $0x88] sm:$0xf]
        %v2873 = vld [vmem:[%s2845 + $0x90] sm:$0x8]
        %v2874 = vld [vmem:[%s2845 + $0x94] sm:$0xf]
        %v2875 = vld [vmem:[%s2845 + $0x98] sm:$0xf]
        %v2877 = vshrl.u32 %v2846, 16
        %v2879 = vrot.slane %v2877, 7
        %v2880 = vrot.slane %v2879, 4
        %v2882 = vshrl.u32 %v2847, 16
        %v2884 = vrot.slane %v2882, 7
        %v2885 = vshll.u32 %v2847, 16
        %v2887 = vor.u32 %v2884, %v2885
        %v2888 = vsel %vm844, %v2880, %v2887
        %v2889 = vrot.slane %v2884, 4
        %v2891 = vshrl.u32 %v2848, 16
        %v2893 = vrot.slane %v2891, 7
        %v2894 = vshll.u32 %v2848, 16
        %v2896 = vor.u32 %v2893, %v2894
        %v2897 = vsel %vm844, %v2889, %v2896
        %v2899 = vshrl.u32 %v2849, 16
        %v2901 = vrot.slane %v2899, 7
        %v2902 = vrot.slane %v2901, 4
        %v2904 = vshrl.u32 %v2850, 16
        %v2906 = vrot.slane %v2904, 7
        %v2907 = vshll.u32 %v2850, 16
        %v2909 = vor.u32 %v2906, %v2907
        %v2910 = vsel %vm844, %v2902, %v2909
        %v2911 = vrot.slane %v2906, 4
        %v2913 = vshrl.u32 %v2851, 16
        %v2915 = vrot.slane %v2913, 7
        %v2916 = vshll.u32 %v2851, 16
        %v2918 = vor.u32 %v2915, %v2916
        %v2919 = vsel %vm844, %v2911, %v2918
        %v2921 = vshrl.u32 %v2852, 16
        %v2923 = vrot.slane %v2921, 7
        %v2924 = vrot.slane %v2923, 4
        %v2926 = vshrl.u32 %v2853, 16
        %v2928 = vrot.slane %v2926, 7
        %v2929 = vshll.u32 %v2853, 16
        %v2931 = vor.u32 %v2928, %v2929
        %v2932 = vsel %vm844, %v2924, %v2931
        %v2933 = vrot.slane %v2928, 4
        %v2935 = vshrl.u32 %v2854, 16
        %v2937 = vrot.slane %v2935, 7
        %v2938 = vshll.u32 %v2854, 16
        %v2940 = vor.u32 %v2937, %v2938
        %v2941 = vsel %vm844, %v2933, %v2940
        %v2943 = vshrl.u32 %v2855, 16
        %v2945 = vrot.slane %v2943, 7
        %v2946 = vrot.slane %v2945, 4
        %v2948 = vshrl.u32 %v2856, 16
        %v2950 = vrot.slane %v2948, 7
        %v2951 = vshll.u32 %v2856, 16
        %v2953 = vor.u32 %v2950, %v2951
        %v2954 = vsel %vm844, %v2946, %v2953
        %v2955 = vrot.slane %v2950, 4
        %v2957 = vshrl.u32 %v2857, 16
        %v2959 = vrot.slane %v2957, 7
        %v2960 = vshll.u32 %v2857, 16
        %v2962 = vor.u32 %v2959, %v2960
        %v2963 = vsel %vm844, %v2955, %v2962
        %v2965 = vshrl.u32 %v2858, 16
        %v2967 = vrot.slane %v2965, 7
        %v2968 = vrot.slane %v2967, 4
        %v2970 = vshrl.u32 %v2859, 16
        %v2972 = vrot.slane %v2970, 7
        %v2973 = vshll.u32 %v2859, 16
        %v2975 = vor.u32 %v2972, %v2973
        %v2976 = vsel %vm844, %v2968, %v2975
        %v2977 = vrot.slane %v2972, 4
        %v2979 = vshrl.u32 %v2860, 16
        %v2981 = vrot.slane %v2979, 7
        %v2982 = vshll.u32 %v2860, 16
        %v2984 = vor.u32 %v2981, %v2982
        %v2985 = vsel %vm844, %v2977, %v2984
        %v2987 = vshrl.u32 %v2861, 16
        %v2989 = vrot.slane %v2987, 7
        %v2990 = vrot.slane %v2989, 4
        %v2992 = vshrl.u32 %v2862, 16
        %v2994 = vrot.slane %v2992, 7
        %v2995 = vshll.u32 %v2862, 16
        %v2997 = vor.u32 %v2994, %v2995
        %v2998 = vsel %vm844, %v2990, %v2997
        %v2999 = vrot.slane %v2994, 4
        %v3001 = vshrl.u32 %v2863, 16
        %v3003 = vrot.slane %v3001, 7
        %v3004 = vshll.u32 %v2863, 16
        %v3006 = vor.u32 %v3003, %v3004
        %v3007 = vsel %vm844, %v2999, %v3006
        %v3009 = vshrl.u32 %v2864, 16
        %v3011 = vrot.slane %v3009, 7
        %v3012 = vrot.slane %v3011, 4
        %v3014 = vshrl.u32 %v2865, 16
        %v3016 = vrot.slane %v3014, 7
        %v3017 = vshll.u32 %v2865, 16
        %v3019 = vor.u32 %v3016, %v3017
        %v3020 = vsel %vm844, %v3012, %v3019
        %v3021 = vrot.slane %v3016, 4
        %v3023 = vshrl.u32 %v2866, 16
        %v3025 = vrot.slane %v3023, 7
        %v3026 = vshll.u32 %v2866, 16
        %v3028 = vor.u32 %v3025, %v3026
        %v3029 = vsel %vm844, %v3021, %v3028
        %v3031 = vshrl.u32 %v2867, 16
        %v3033 = vrot.slane %v3031, 7
        %v3034 = vrot.slane %v3033, 4
        %v3036 = vshrl.u32 %v2868, 16
        %v3038 = vrot.slane %v3036, 7
        %v3039 = vshll.u32 %v2868, 16
        %v3041 = vor.u32 %v3038, %v3039
        %v3042 = vsel %vm844, %v3034, %v3041
        %v3043 = vrot.slane %v3038, 4
        %v3045 = vshrl.u32 %v2869, 16
        %v3047 = vrot.slane %v3045, 7
        %v3048 = vshll.u32 %v2869, 16
        %v3050 = vor.u32 %v3047, %v3048
        %v3051 = vsel %vm844, %v3043, %v3050
        %v3052 = vld [vmem:[#allocation8] sm:$0xf]
        %v3053 = vld [vmem:[#allocation8 + $0x4] sm:$0xf]
        %v3054 = vld [vmem:[#allocation8 + $0x8] sm:$0xf]
        %v3055 = vld [vmem:[#allocation8 + $0xc] sm:$0xf]
        %v3056 = vld [vmem:[#allocation8 + $0x10] sm:$0xf]
        %v3057 = vld [vmem:[#allocation8 + $0x14] sm:$0xf]
        %v3058 = vld [vmem:[#allocation8 + $0x18] sm:$0xf]
        %v3059 = vld [vmem:[#allocation8 + $0x1c] sm:$0xf]
        %v3060 = vld [vmem:[#allocation8 + $0x20] sm:$0xf]
        %v3061 = vld [vmem:[#allocation8 + $0x24] sm:$0xf]
        %v3062 = vld [vmem:[#allocation8 + $0x28] sm:$0xf]
        %v3063 = vld [vmem:[#allocation8 + $0x2c] sm:$0xf]
        %v3064 = vld [vmem:[#allocation8 + $0x30] sm:$0xf]
        %v3065 = vld [vmem:[#allocation8 + $0x34] sm:$0xf]
        %v3066 = vld [vmem:[#allocation8 + $0x38] sm:$0xf]
        %v3067 = vld [vmem:[#allocation8 + $0x3c] sm:$0xf]
        %v3069 = vshrl.u32 %v2870, 16
        %v3071 = vrot.slane %v3069, 7
        %v3072 = vrot.slane %v3071, 4
        %v3074 = vshrl.u32 %v2871, 16
        %v3076 = vrot.slane %v3074, 7
        %v3077 = vshll.u32 %v2871, 16
        %v3079 = vor.u32 %v3076, %v3077
        %v3080 = vsel %vm844, %v3072, %v3079
        %v3081 = vrot.slane %v3076, 4
        %v3083 = vshrl.u32 %v2872, 16
        %v3085 = vrot.slane %v3083, 7
        %v3086 = vshll.u32 %v2872, 16
        %v3088 = vor.u32 %v3085, %v3086
        %v3089 = vsel %vm844, %v3081, %v3088
        %v3090 = vld [vmem:[%s1059] sm:$0xf]
        %v3091 = vld [vmem:[%s1059 + $0x4] sm:$0xf]
        %v3092 = vld [vmem:[%s1059 + $0x8] sm:$0xf]
        %v3093 = vld [vmem:[%s1059 + $0xc] sm:$0xf]
        %v3094 = vld [vmem:[%s1059 + $0x10] sm:$0xf]
        %v3095 = vld [vmem:[%s1059 + $0x14] sm:$0xf]
        %v3096 = vld [vmem:[%s1059 + $0x18] sm:$0xf]
        %v3097 = vld [vmem:[%s1059 + $0x1c] sm:$0xf]
        %v3098 = vld [vmem:[%s1059 + $0x20] sm:$0xf]
        %v3099 = vld [vmem:[%s1059 + $0x24] sm:$0xf]
        %v3100 = vld [vmem:[%s1059 + $0x28] sm:$0xf]
        %v3101 = vld [vmem:[%s1059 + $0x2c] sm:$0xf]
        %v3102 = vld [vmem:[%s1059 + $0x30] sm:$0xf]
        %v3103 = vld [vmem:[%s1059 + $0x34] sm:$0xf]
        %v3104 = vld [vmem:[%s1059 + $0x38] sm:$0xf]
        %v3105 = vld [vmem:[%s1059 + $0x3c] sm:$0xf]
        %v3106 = vunpack.c.l.b16 %v2910
        %v3107 = vunpack.c.l.b16 %v2919
        %v3108 = vunpack.c.l.b16 %v2932
        %v3109 = vunpack.c.l.b16 %v2941
        %v3110 = vunpack.c.l.b16 %v2954
        %v3111 = vunpack.c.l.b16 %v2963
        %v3112 = vunpack.c.l.b16 %v2976
        %v3113 = vunpack.c.l.b16 %v2985
        %v3114 = vunpack.c.l.b16 %v2998
        %v3115 = vunpack.c.l.b16 %v3007
        %v3116 = vunpack.c.l.b16 %v3020
        %v3117 = vunpack.c.l.b16 %v3029
        %v3118 = vunpack.c.l.b16 %v3042
        %v3119 = vunpack.c.l.b16 %v3051
        %v3120 = vunpack.c.l.b16 %v3080
        %v3121 = vunpack.c.l.b16 %v3089
        %v3122 = vpack.c.b16 %v3107, %v3106
        %v3123 = vpack.c.b16 %v3109, %v3108
        %v3124 = vpack.c.b16 %v3111, %v3110
        %v3125 = vpack.c.b16 %v3113, %v3112
        %v3126 = vpack.c.b16 %v3115, %v3114
        %v3127 = vpack.c.b16 %v3117, %v3116
        %v3128 = vpack.c.b16 %v3119, %v3118
        %v3129 = vpack.c.b16 %v3121, %v3120
        %v3154 = vunpack.c.l.b16 %v3090
        %v3155 = vunpack.c.l.b16 %v3091
        %v3156 = vunpack.c.l.b16 %v3092
        %v3157 = vunpack.c.l.b16 %v3093
        %v3158 = vunpack.c.l.b16 %v3094
        %v3159 = vunpack.c.l.b16 %v3095
        %v3160 = vunpack.c.l.b16 %v3096
        %v3161 = vunpack.c.l.b16 %v3097
        %v3162 = vunpack.c.l.b16 %v3098
        %v3163 = vunpack.c.l.b16 %v3099
        %v3164 = vunpack.c.l.b16 %v3100
        %v3165 = vunpack.c.l.b16 %v3101
        %v3166 = vunpack.c.l.b16 %v3102
        %v3167 = vunpack.c.l.b16 %v3103
        %v3168 = vunpack.c.l.b16 %v3104
        %v3169 = vunpack.c.l.b16 %v3105
        %v3170 = vpack.c.b16 %v3155, %v3154
        %v3171 = vpack.c.b16 %v3157, %v3156
        %v3172 = vpack.c.b16 %v3159, %v3158
        %v3173 = vpack.c.b16 %v3161, %v3160
        %v3174 = vpack.c.b16 %v3163, %v3162
        %v3175 = vpack.c.b16 %v3165, %v3164
        %v3176 = vpack.c.b16 %v3167, %v3166
        %v3177 = vpack.c.b16 %v3169, %v3168
        %3186 = vmatpush.bf16.msra.mxu0 %v3177
        %3187 = vmatpush.bf16.msra.mxu0 %v3176
        %3188 = vmatpush.bf16.msra.mxu0 %v3175
        %3189 = vmatpush.bf16.msra.mxu0 %v3174
        %3190 = vmatpush.bf16.msra.mxu0 %v3173
        %3191 = vmatpush.bf16.msra.mxu0 %v3172
        %3192 = vmatpush.bf16.msra.mxu0 %v3171
        %3193 = vmatpush.bf16.msra.mxu0 %v3170
        %3194 = vmatmul.bf16.gmra.mxu0 %v3122
        %v3195 = vpop.f32.mrf.mxu0
        %v3196 = vadd.f32 0.0, %v3195
        %v3197 = vpop.f32.mrf.mxu0
        %v3198 = vadd.f32 0.0, %v3197
        %3199 = vmatmul.bf16.gmra.mxu0 %v3123
        %v3200 = vpop.f32.mrf.mxu0
        %v3201 = vadd.f32 0.0, %v3200
        %v3202 = vpop.f32.mrf.mxu0
        %v3203 = vadd.f32 0.0, %v3202
        %3204 = vmatmul.bf16.gmra.mxu0 %v3124
        %v3205 = vpop.f32.mrf.mxu0
        %v3206 = vadd.f32 0.0, %v3205
        %v3207 = vpop.f32.mrf.mxu0
        %v3208 = vadd.f32 0.0, %v3207
        %3209 = vmatmul.bf16.gmra.mxu0 %v3125
        %v3210 = vpop.f32.mrf.mxu0
        %v3211 = vadd.f32 0.0, %v3210
        %v3212 = vpop.f32.mrf.mxu0
        %v3213 = vadd.f32 0.0, %v3212
        %3214 = vmatmul.bf16.gmra.mxu0 %v3126
        %v3215 = vpop.f32.mrf.mxu0
        %v3216 = vadd.f32 0.0, %v3215
        %v3217 = vpop.f32.mrf.mxu0
        %v3218 = vadd.f32 0.0, %v3217
        %3219 = vmatmul.bf16.gmra.mxu0 %v3127
        %v3220 = vpop.f32.mrf.mxu0
        %v3221 = vadd.f32 0.0, %v3220
        %v3222 = vpop.f32.mrf.mxu0
        %v3223 = vadd.f32 0.0, %v3222
        %3224 = vmatmul.bf16.gmra.mxu0 %v3128
        %v3225 = vpop.f32.mrf.mxu0
        %v3226 = vadd.f32 0.0, %v3225
        %v3227 = vpop.f32.mrf.mxu0
        %v3228 = vadd.f32 0.0, %v3227
        %3229 = vmatmul.bf16.gmra.mxu0 %v3129
        %v3230 = vpop.f32.mrf.mxu0
        %v3231 = vadd.f32 0.0, %v3230
        %v3232 = vpop.f32.mrf.mxu0
        %v3233 = vadd.f32 0.0, %v3232
        %3234 = vdwg.mxu0
        %v3235 = vunpack.c.l.b16 %v2888
        %v3236 = vunpack.c.l.b16 %v2897
        %v3237 = vpack.c.b16 %v3236, %v3235
        %v3255 = vunpack.c.l.b16 %v3052
        %v3256 = vunpack.c.l.b16 %v3053
        %v3257 = vunpack.c.l.b16 %v3054
        %v3258 = vunpack.c.l.b16 %v3055
        %v3259 = vunpack.c.l.b16 %v3056
        %v3260 = vunpack.c.l.b16 %v3057
        %v3261 = vunpack.c.l.b16 %v3058
        %v3262 = vunpack.c.l.b16 %v3059
        %v3263 = vunpack.c.l.b16 %v3060
        %v3264 = vunpack.c.l.b16 %v3061
        %v3265 = vunpack.c.l.b16 %v3062
        %v3266 = vunpack.c.l.b16 %v3063
        %v3267 = vunpack.c.l.b16 %v3064
        %v3268 = vunpack.c.l.b16 %v3065
        %v3269 = vunpack.c.l.b16 %v3066
        %v3270 = vunpack.c.l.b16 %v3067
        %v3271 = vpack.c.b16 %v3256, %v3255
        %v3272 = vpack.c.b16 %v3258, %v3257
        %v3273 = vpack.c.b16 %v3260, %v3259
        %v3274 = vpack.c.b16 %v3262, %v3261
        %v3275 = vpack.c.b16 %v3264, %v3263
        %v3276 = vpack.c.b16 %v3266, %v3265
        %v3277 = vpack.c.b16 %v3268, %v3267
        %v3278 = vpack.c.b16 %v3270, %v3269
        %3287 = vmatpush.bf16.msra.mxu0 %v3278
        %3288 = vmatpush.bf16.msra.mxu0 %v3277
        %3289 = vmatpush.bf16.msra.mxu0 %v3276
        %3290 = vmatpush.bf16.msra.mxu0 %v3275
        %3291 = vmatpush.bf16.msra.mxu0 %v3274
        %3292 = vmatpush.bf16.msra.mxu0 %v3273
        %3293 = vmatpush.bf16.msra.mxu0 %v3272
        %3294 = vmatpush.bf16.msra.mxu0 %v3271
        %3295 = vmatmul.bf16.gmra.mxu0 %v3237
        %v3296 = vpop.f32.mrf.mxu0
        %v3297 = vadd.f32 %v3196, %v3296
        %v3298 = vpop.f32.mrf.mxu0
        %v3299 = vadd.f32 %v3198, %v3298
        %3300 = vmatmul.bf16.gmra.mxu0 %v3122
        %v3301 = vpop.f32.mrf.mxu0
        %v3302 = vadd.f32 %v3201, %v3301
        %v3303 = vpop.f32.mrf.mxu0
        %v3304 = vadd.f32 %v3203, %v3303
        %3305 = vmatmul.bf16.gmra.mxu0 %v3123
        %v3306 = vpop.f32.mrf.mxu0
        %v3307 = vadd.f32 %v3206, %v3306
        %v3308 = vpop.f32.mrf.mxu0
        %v3309 = vadd.f32 %v3208, %v3308
        %3310 = vmatmul.bf16.gmra.mxu0 %v3124
        %v3311 = vpop.f32.mrf.mxu0
        %v3312 = vadd.f32 %v3211, %v3311
        %v3313 = vpop.f32.mrf.mxu0
        %v3314 = vadd.f32 %v3213, %v3313
        %3315 = vmatmul.bf16.gmra.mxu0 %v3125
        %v3316 = vpop.f32.mrf.mxu0
        %v3317 = vadd.f32 %v3216, %v3316
        %v3318 = vpop.f32.mrf.mxu0
        %v3319 = vadd.f32 %v3218, %v3318
        %3320 = vmatmul.bf16.gmra.mxu0 %v3126
        %v3321 = vpop.f32.mrf.mxu0
        %v3322 = vadd.f32 %v3221, %v3321
        %v3323 = vpop.f32.mrf.mxu0
        %v3324 = vadd.f32 %v3223, %v3323
        %3325 = vmatmul.bf16.gmra.mxu0 %v3127
        %v3326 = vpop.f32.mrf.mxu0
        %v3327 = vadd.f32 %v3226, %v3326
        %v3328 = vpop.f32.mrf.mxu0
        %v3329 = vadd.f32 %v3228, %v3328
        %3330 = vmatmul.bf16.gmra.mxu0 %v3128
        %v3331 = vpop.f32.mrf.mxu0
        %v3332 = vadd.f32 %v3231, %v3331
        %v3333 = vpop.f32.mrf.mxu0
        %v3334 = vadd.f32 %v3233, %v3333
        %3335 = vdwg.mxu0
        %v3337 = vshrl.u32 %v2873, 16
        %v3339 = vrot.slane %v3337, 7
        %v3340 = vrot.slane %v3339, 4
        %v3342 = vshrl.u32 %v2874, 16
        %v3344 = vrot.slane %v3342, 7
        %v3345 = vshll.u32 %v2874, 16
        %v3347 = vor.u32 %v3344, %v3345
        %v3348 = vsel %vm844, %v3340, %v3347
        %v3349 = vrot.slane %v3344, 4
        %v3351 = vshrl.u32 %v2875, 16
        %v3353 = vrot.slane %v3351, 7
        %v3354 = vshll.u32 %v2875, 16
        %v3356 = vor.u32 %v3353, %v3354
        %v3357 = vsel %vm844, %v3349, %v3356
        %v3358 = vld [vmem:[%s1328] sm:$0xf]
        %v3359 = vld [vmem:[%s1328 + $0x4] sm:$0xf]
        %v3360 = vld [vmem:[%s1328 + $0x8] sm:$0xf]
        %v3361 = vld [vmem:[%s1328 + $0xc] sm:$0xf]
        %v3362 = vld [vmem:[%s1328 + $0x10] sm:$0xf]
        %v3363 = vld [vmem:[%s1328 + $0x14] sm:$0xf]
        %v3364 = vld [vmem:[%s1328 + $0x18] sm:$0xf]
        %v3365 = vld [vmem:[%s1328 + $0x1c] sm:$0xf]
        %v3366 = vld [vmem:[%s1328 + $0x20] sm:$0xf]
        %v3367 = vld [vmem:[%s1328 + $0x24] sm:$0xf]
        %v3368 = vld [vmem:[%s1328 + $0x28] sm:$0xf]
        %v3369 = vld [vmem:[%s1328 + $0x2c] sm:$0xf]
        %v3370 = vld [vmem:[%s1328 + $0x30] sm:$0xf]
        %v3371 = vld [vmem:[%s1328 + $0x34] sm:$0xf]
        %v3372 = vld [vmem:[%s1328 + $0x38] sm:$0xf]
        %v3373 = vld [vmem:[%s1328 + $0x3c] sm:$0xf]
        %v3374 = vunpack.c.l.b16 %v3348
        %v3375 = vunpack.c.l.b16 %v3357
        %v3376 = vpack.c.b16 %v3375, %v3374
        %v3394 = vunpack.c.l.b16 %v3358
        %v3395 = vunpack.c.l.b16 %v3359
        %v3396 = vunpack.c.l.b16 %v3360
        %v3397 = vunpack.c.l.b16 %v3361
        %v3398 = vunpack.c.l.b16 %v3362
        %v3399 = vunpack.c.l.b16 %v3363
        %v3400 = vunpack.c.l.b16 %v3364
        %v3401 = vunpack.c.l.b16 %v3365
        %v3402 = vunpack.c.l.b16 %v3366
        %v3403 = vunpack.c.l.b16 %v3367
        %v3404 = vunpack.c.l.b16 %v3368
        %v3405 = vunpack.c.l.b16 %v3369
        %v3406 = vunpack.c.l.b16 %v3370
        %v3407 = vunpack.c.l.b16 %v3371
        %v3408 = vunpack.c.l.b16 %v3372
        %v3409 = vunpack.c.l.b16 %v3373
        %v3410 = vpack.c.b16 %v3395, %v3394
        %v3411 = vpack.c.b16 %v3397, %v3396
        %v3412 = vpack.c.b16 %v3399, %v3398
        %v3413 = vpack.c.b16 %v3401, %v3400
        %v3414 = vpack.c.b16 %v3403, %v3402
        %v3415 = vpack.c.b16 %v3405, %v3404
        %v3416 = vpack.c.b16 %v3407, %v3406
        %v3417 = vpack.c.b16 %v3409, %v3408
        %3426 = vmatpush.bf16.msra.mxu0 %v3417
        %3427 = vmatpush.bf16.msra.mxu0 %v3416
        %3428 = vmatpush.bf16.msra.mxu0 %v3415
        %3429 = vmatpush.bf16.msra.mxu0 %v3414
        %3430 = vmatpush.bf16.msra.mxu0 %v3413
        %3431 = vmatpush.bf16.msra.mxu0 %v3412
        %3432 = vmatpush.bf16.msra.mxu0 %v3411
        %3433 = vmatpush.bf16.msra.mxu0 %v3410
        %3434 = vmatmul.bf16.gmra.mxu0 %v3123
        %v3435 = vpop.f32.mrf.mxu0
        %v3436 = vadd.f32 0.0, %v3435
        %v3437 = vpop.f32.mrf.mxu0
        %v3438 = vadd.f32 0.0, %v3437
        %3439 = vmatmul.bf16.gmra.mxu0 %v3124
        %v3440 = vpop.f32.mrf.mxu0
        %v3441 = vadd.f32 0.0, %v3440
        %v3442 = vpop.f32.mrf.mxu0
        %v3443 = vadd.f32 0.0, %v3442
        %3444 = vmatmul.bf16.gmra.mxu0 %v3125
        %v3445 = vpop.f32.mrf.mxu0
        %v3446 = vadd.f32 0.0, %v3445
        %v3447 = vpop.f32.mrf.mxu0
        %v3448 = vadd.f32 0.0, %v3447
        %3449 = vmatmul.bf16.gmra.mxu0 %v3126
        %v3450 = vpop.f32.mrf.mxu0
        %v3451 = vadd.f32 0.0, %v3450
        %v3452 = vpop.f32.mrf.mxu0
        %v3453 = vadd.f32 0.0, %v3452
        %3454 = vmatmul.bf16.gmra.mxu0 %v3127
        %v3455 = vpop.f32.mrf.mxu0
        %v3456 = vadd.f32 0.0, %v3455
        %v3457 = vpop.f32.mrf.mxu0
        %v3458 = vadd.f32 0.0, %v3457
        %3459 = vmatmul.bf16.gmra.mxu0 %v3128
        %v3460 = vpop.f32.mrf.mxu0
        %v3461 = vadd.f32 0.0, %v3460
        %v3462 = vpop.f32.mrf.mxu0
        %v3463 = vadd.f32 0.0, %v3462
        %3464 = vmatmul.bf16.gmra.mxu0 %v3129
        %v3465 = vpop.f32.mrf.mxu0
        %v3466 = vadd.f32 0.0, %v3465
        %v3467 = vpop.f32.mrf.mxu0
        %v3468 = vadd.f32 0.0, %v3467
        %3469 = vmatmul.bf16.gmra.mxu0 %v3376
        %v3470 = vpop.f32.mrf.mxu0
        %v3471 = vadd.f32 0.0, %v3470
        %v3472 = vpop.f32.mrf.mxu0
        %v3473 = vadd.f32 0.0, %v3472
        %3474 = vdwg.mxu0
        %v3475 = vadd.f32 %v3297, %v3436
        %v3476 = vadd.f32 %v3299, %v3438
        %v3477 = vadd.f32 %v3302, %v3441
        %v3478 = vadd.f32 %v3304, %v3443
        %v3479 = vadd.f32 %v3307, %v3446
        %v3480 = vadd.f32 %v3309, %v3448
        %v3481 = vadd.f32 %v3312, %v3451
        %v3482 = vadd.f32 %v3314, %v3453
        %v3483 = vadd.f32 %v3317, %v3456
        %v3484 = vadd.f32 %v3319, %v3458
        %v3485 = vadd.f32 %v3322, %v3461
        %v3486 = vadd.f32 %v3324, %v3463
        %v3487 = vadd.f32 %v3327, %v3466
        %v3488 = vadd.f32 %v3329, %v3468
        %v3489 = vadd.f32 %v3332, %v3471
        %v3490 = vadd.f32 %v3334, %v3473
        %v3491 = vld [vmem:[%s1462] sm:$0xf]
        %v3492 = vld [vmem:[%s1462 + $0x4] sm:$0xf]
        %v3493 = vld [vmem:[%s1462 + $0x8] sm:$0xf]
        %v3494 = vld [vmem:[%s1462 + $0xc] sm:$0xf]
        %v3495 = vld [vmem:[%s1462 + $0x10] sm:$0xf]
        %v3496 = vld [vmem:[%s1462 + $0x14] sm:$0xf]
        %v3497 = vld [vmem:[%s1462 + $0x18] sm:$0xf]
        %v3498 = vld [vmem:[%s1462 + $0x1c] sm:$0xf]
        %v3499 = vld [vmem:[%s1462 + $0x20] sm:$0xf]
        %v3500 = vld [vmem:[%s1462 + $0x24] sm:$0xf]
        %v3501 = vld [vmem:[%s1462 + $0x28] sm:$0xf]
        %v3502 = vld [vmem:[%s1462 + $0x2c] sm:$0xf]
        %v3503 = vld [vmem:[%s1462 + $0x30] sm:$0xf]
        %v3504 = vld [vmem:[%s1462 + $0x34] sm:$0xf]
        %v3505 = vld [vmem:[%s1462 + $0x38] sm:$0xf]
        %v3506 = vld [vmem:[%s1462 + $0x3c] sm:$0xf]
        %v3523 = vunpack.c.l.b16 %v2847
        %v3524 = vunpack.c.l.b16 %v2848
        %v3525 = vunpack.c.l.b16 %v2850
        %v3526 = vunpack.c.l.b16 %v2851
        %v3527 = vunpack.c.l.b16 %v2853
        %v3528 = vunpack.c.l.b16 %v2854
        %v3529 = vunpack.c.l.b16 %v2856
        %v3530 = vunpack.c.l.b16 %v2857
        %v3531 = vunpack.c.l.b16 %v2859
        %v3532 = vunpack.c.l.b16 %v2860
        %v3533 = vunpack.c.l.b16 %v2862
        %v3534 = vunpack.c.l.b16 %v2863
        %v3535 = vunpack.c.l.b16 %v2865
        %v3536 = vunpack.c.l.b16 %v2866
        %v3537 = vunpack.c.l.b16 %v2868
        %v3538 = vunpack.c.l.b16 %v2869
        %v3539 = vpack.c.b16 %v3524, %v3523
        %v3540 = vpack.c.b16 %v3526, %v3525
        %v3541 = vpack.c.b16 %v3528, %v3527
        %v3542 = vpack.c.b16 %v3530, %v3529
        %v3543 = vpack.c.b16 %v3532, %v3531
        %v3544 = vpack.c.b16 %v3534, %v3533
        %v3545 = vpack.c.b16 %v3536, %v3535
        %v3546 = vpack.c.b16 %v3538, %v3537
        %v3571 = vunpack.c.l.b16 %v3491
        %v3572 = vunpack.c.l.b16 %v3492
        %v3573 = vunpack.c.l.b16 %v3493
        %v3574 = vunpack.c.l.b16 %v3494
        %v3575 = vunpack.c.l.b16 %v3495
        %v3576 = vunpack.c.l.b16 %v3496
        %v3577 = vunpack.c.l.b16 %v3497
        %v3578 = vunpack.c.l.b16 %v3498
        %v3579 = vunpack.c.l.b16 %v3499
        %v3580 = vunpack.c.l.b16 %v3500
        %v3581 = vunpack.c.l.b16 %v3501
        %v3582 = vunpack.c.l.b16 %v3502
        %v3583 = vunpack.c.l.b16 %v3503
        %v3584 = vunpack.c.l.b16 %v3504
        %v3585 = vunpack.c.l.b16 %v3505
        %v3586 = vunpack.c.l.b16 %v3506
        %v3587 = vpack.c.b16 %v3572, %v3571
        %v3588 = vpack.c.b16 %v3574, %v3573
        %v3589 = vpack.c.b16 %v3576, %v3575
        %v3590 = vpack.c.b16 %v3578, %v3577
        %v3591 = vpack.c.b16 %v3580, %v3579
        %v3592 = vpack.c.b16 %v3582, %v3581
        %v3593 = vpack.c.b16 %v3584, %v3583
        %v3594 = vpack.c.b16 %v3586, %v3585
        %3603 = vmatpush.bf16.msra.mxu0 %v3594
        %3604 = vmatpush.bf16.msra.mxu0 %v3593
        %3605 = vmatpush.bf16.msra.mxu0 %v3592
        %3606 = vmatpush.bf16.msra.mxu0 %v3591
        %3607 = vmatpush.bf16.msra.mxu0 %v3590
        %3608 = vmatpush.bf16.msra.mxu0 %v3589
        %3609 = vmatpush.bf16.msra.mxu0 %v3588
        %3610 = vmatpush.bf16.msra.mxu0 %v3587
        %3611 = vmatmul.bf16.gmra.mxu0 %v3539
        %v3612 = vpop.f32.mrf.mxu0
        %v3613 = vadd.f32 0.0, %v3612
        %v3614 = vpop.f32.mrf.mxu0
        %v3615 = vadd.f32 0.0, %v3614
        %3616 = vmatmul.bf16.gmra.mxu0 %v3540
        %v3617 = vpop.f32.mrf.mxu0
        %v3618 = vadd.f32 0.0, %v3617
        %v3619 = vpop.f32.mrf.mxu0
        %v3620 = vadd.f32 0.0, %v3619
        %3621 = vmatmul.bf16.gmra.mxu0 %v3541
        %v3622 = vpop.f32.mrf.mxu0
        %v3623 = vadd.f32 0.0, %v3622
        %v3624 = vpop.f32.mrf.mxu0
        %v3625 = vadd.f32 0.0, %v3624
        %3626 = vmatmul.bf16.gmra.mxu0 %v3542
        %v3627 = vpop.f32.mrf.mxu0
        %v3628 = vadd.f32 0.0, %v3627
        %v3629 = vpop.f32.mrf.mxu0
        %v3630 = vadd.f32 0.0, %v3629
        %3631 = vmatmul.bf16.gmra.mxu0 %v3543
        %v3632 = vpop.f32.mrf.mxu0
        %v3633 = vadd.f32 0.0, %v3632
        %v3634 = vpop.f32.mrf.mxu0
        %v3635 = vadd.f32 0.0, %v3634
        %3636 = vmatmul.bf16.gmra.mxu0 %v3544
        %v3637 = vpop.f32.mrf.mxu0
        %v3638 = vadd.f32 0.0, %v3637
        %v3639 = vpop.f32.mrf.mxu0
        %v3640 = vadd.f32 0.0, %v3639
        %3641 = vmatmul.bf16.gmra.mxu0 %v3545
        %v3642 = vpop.f32.mrf.mxu0
        %v3643 = vadd.f32 0.0, %v3642
        %v3644 = vpop.f32.mrf.mxu0
        %v3645 = vadd.f32 0.0, %v3644
        %3646 = vmatmul.bf16.gmra.mxu0 %v3546
        %v3647 = vpop.f32.mrf.mxu0
        %v3648 = vadd.f32 0.0, %v3647
        %v3649 = vpop.f32.mrf.mxu0
        %v3650 = vadd.f32 0.0, %v3649
        %3651 = vdwg.mxu0
        %v3652 = vadd.f32 %v3475, %v3613
        %v3653 = vadd.f32 %v3476, %v3615
        %v3654 = vadd.f32 %v3477, %v3618
        %v3655 = vadd.f32 %v3478, %v3620
        %v3656 = vadd.f32 %v3479, %v3623
        %v3657 = vadd.f32 %v3480, %v3625
        %v3658 = vadd.f32 %v3481, %v3628
        %v3659 = vadd.f32 %v3482, %v3630
        %v3660 = vadd.f32 %v3483, %v3633
        %v3661 = vadd.f32 %v3484, %v3635
        %v3662 = vadd.f32 %v3485, %v3638
        %v3663 = vadd.f32 %v3486, %v3640
        %v3664 = vadd.f32 %v3487, %v3643
        %v3665 = vadd.f32 %v3488, %v3645
        %v3666 = vadd.f32 %v3489, %v3648
        %v3667 = vadd.f32 %v3490, %v3650
        %v3668 = vld [vmem:[%s1640] sm:$0xf]
        %v3669 = vld [vmem:[%s1640 + $0x4] sm:$0xf]
        %v3670 = vld [vmem:[%s1640 + $0x8] sm:$0xf]
        %v3671 = vld [vmem:[%s1640 + $0xc] sm:$0xf]
        %v3672 = vld [vmem:[%s1640 + $0x10] sm:$0xf]
        %v3673 = vld [vmem:[%s1640 + $0x14] sm:$0xf]
        %v3674 = vld [vmem:[%s1640 + $0x18] sm:$0xf]
        %v3675 = vld [vmem:[%s1640 + $0x1c] sm:$0xf]
        %v3676 = vld [vmem:[%s1640 + $0x20] sm:$0xf]
        %v3677 = vld [vmem:[%s1640 + $0x24] sm:$0xf]
        %v3678 = vld [vmem:[%s1640 + $0x28] sm:$0xf]
        %v3679 = vld [vmem:[%s1640 + $0x2c] sm:$0xf]
        %v3680 = vld [vmem:[%s1640 + $0x30] sm:$0xf]
        %v3681 = vld [vmem:[%s1640 + $0x34] sm:$0xf]
        %v3682 = vld [vmem:[%s1640 + $0x38] sm:$0xf]
        %v3683 = vld [vmem:[%s1640 + $0x3c] sm:$0xf]
        %v3686 = vunpack.c.l.b16 %v2871
        %v3687 = vunpack.c.l.b16 %v2872
        %v3688 = vpack.c.b16 %v3687, %v3686
        %v3706 = vunpack.c.l.b16 %v3668
        %v3707 = vunpack.c.l.b16 %v3669
        %v3708 = vunpack.c.l.b16 %v3670
        %v3709 = vunpack.c.l.b16 %v3671
        %v3710 = vunpack.c.l.b16 %v3672
        %v3711 = vunpack.c.l.b16 %v3673
        %v3712 = vunpack.c.l.b16 %v3674
        %v3713 = vunpack.c.l.b16 %v3675
        %v3714 = vunpack.c.l.b16 %v3676
        %v3715 = vunpack.c.l.b16 %v3677
        %v3716 = vunpack.c.l.b16 %v3678
        %v3717 = vunpack.c.l.b16 %v3679
        %v3718 = vunpack.c.l.b16 %v3680
        %v3719 = vunpack.c.l.b16 %v3681
        %v3720 = vunpack.c.l.b16 %v3682
        %v3721 = vunpack.c.l.b16 %v3683
        %v3722 = vpack.c.b16 %v3707, %v3706
        %v3723 = vpack.c.b16 %v3709, %v3708
        %v3724 = vpack.c.b16 %v3711, %v3710
        %v3725 = vpack.c.b16 %v3713, %v3712
        %v3726 = vpack.c.b16 %v3715, %v3714
        %v3727 = vpack.c.b16 %v3717, %v3716
        %v3728 = vpack.c.b16 %v3719, %v3718
        %v3729 = vpack.c.b16 %v3721, %v3720
        %3738 = vmatpush.bf16.msra.mxu0 %v3729
        %3739 = vmatpush.bf16.msra.mxu0 %v3728
        %3740 = vmatpush.bf16.msra.mxu0 %v3727
        %3741 = vmatpush.bf16.msra.mxu0 %v3726
        %3742 = vmatpush.bf16.msra.mxu0 %v3725
        %3743 = vmatpush.bf16.msra.mxu0 %v3724
        %3744 = vmatpush.bf16.msra.mxu0 %v3723
        %3745 = vmatpush.bf16.msra.mxu0 %v3722
        %3746 = vmatmul.bf16.gmra.mxu0 %v3540
        %v3747 = vpop.f32.mrf.mxu0
        %v3748 = vadd.f32 0.0, %v3747
        %v3749 = vpop.f32.mrf.mxu0
        %v3750 = vadd.f32 0.0, %v3749
        %3751 = vmatmul.bf16.gmra.mxu0 %v3541
        %v3752 = vpop.f32.mrf.mxu0
        %v3753 = vadd.f32 0.0, %v3752
        %v3754 = vpop.f32.mrf.mxu0
        %v3755 = vadd.f32 0.0, %v3754
        %3756 = vmatmul.bf16.gmra.mxu0 %v3542
        %v3757 = vpop.f32.mrf.mxu0
        %v3758 = vadd.f32 0.0, %v3757
        %v3759 = vpop.f32.mrf.mxu0
        %v3760 = vadd.f32 0.0, %v3759
        %3761 = vmatmul.bf16.gmra.mxu0 %v3543
        %v3762 = vpop.f32.mrf.mxu0
        %v3763 = vadd.f32 0.0, %v3762
        %v3764 = vpop.f32.mrf.mxu0
        %v3765 = vadd.f32 0.0, %v3764
        %3766 = vmatmul.bf16.gmra.mxu0 %v3544
        %v3767 = vpop.f32.mrf.mxu0
        %v3768 = vadd.f32 0.0, %v3767
        %v3769 = vpop.f32.mrf.mxu0
        %v3770 = vadd.f32 0.0, %v3769
        %3771 = vmatmul.bf16.gmra.mxu0 %v3545
        %v3772 = vpop.f32.mrf.mxu0
        %v3773 = vadd.f32 0.0, %v3772
        %v3774 = vpop.f32.mrf.mxu0
        %v3775 = vadd.f32 0.0, %v3774
        %3776 = vmatmul.bf16.gmra.mxu0 %v3546
        %v3777 = vpop.f32.mrf.mxu0
        %v3778 = vadd.f32 0.0, %v3777
        %v3779 = vpop.f32.mrf.mxu0
        %v3780 = vadd.f32 0.0, %v3779
        %3781 = vmatmul.bf16.gmra.mxu0 %v3688
        %v3782 = vpop.f32.mrf.mxu0
        %v3783 = vadd.f32 0.0, %v3782
        %v3784 = vpop.f32.mrf.mxu0
        %v3785 = vadd.f32 0.0, %v3784
        %3786 = vdwg.mxu0
        %v3787 = vadd.f32 %v3652, %v3748
        %v3788 = vadd.f32 %v3653, %v3750
        %v3789 = vadd.f32 %v3654, %v3753
        %v3790 = vadd.f32 %v3655, %v3755
        %v3791 = vadd.f32 %v3656, %v3758
        %v3792 = vadd.f32 %v3657, %v3760
        %v3793 = vadd.f32 %v3658, %v3763
        %v3794 = vadd.f32 %v3659, %v3765
        %v3795 = vadd.f32 %v3660, %v3768
        %v3796 = vadd.f32 %v3661, %v3770
        %v3797 = vadd.f32 %v3662, %v3773
        %v3798 = vadd.f32 %v3663, %v3775
        %v3799 = vadd.f32 %v3664, %v3778
        %v3800 = vadd.f32 %v3665, %v3780
        %v3801 = vadd.f32 %v3666, %v3783
        %v3802 = vadd.f32 %v3667, %v3785
        %v3803 = vld [vmem:[%s1776] sm:$0xf]
        %v3804 = vld [vmem:[%s1776 + $0x4] sm:$0xf]
        %v3805 = vld [vmem:[%s1776 + $0x8] sm:$0xf]
        %v3806 = vld [vmem:[%s1776 + $0xc] sm:$0xf]
        %v3807 = vld [vmem:[%s1776 + $0x10] sm:$0xf]
        %v3808 = vld [vmem:[%s1776 + $0x14] sm:$0xf]
        %v3809 = vld [vmem:[%s1776 + $0x18] sm:$0xf]
        %v3810 = vld [vmem:[%s1776 + $0x1c] sm:$0xf]
        %v3811 = vld [vmem:[%s1776 + $0x20] sm:$0xf]
        %v3812 = vld [vmem:[%s1776 + $0x24] sm:$0xf]
        %v3813 = vld [vmem:[%s1776 + $0x28] sm:$0xf]
        %v3814 = vld [vmem:[%s1776 + $0x2c] sm:$0xf]
        %v3815 = vld [vmem:[%s1776 + $0x30] sm:$0xf]
        %v3816 = vld [vmem:[%s1776 + $0x34] sm:$0xf]
        %v3817 = vld [vmem:[%s1776 + $0x38] sm:$0xf]
        %v3818 = vld [vmem:[%s1776 + $0x3c] sm:$0xf]
        %v3821 = vunpack.c.l.b16 %v2874
        %v3822 = vunpack.c.l.b16 %v2875
        %v3823 = vpack.c.b16 %v3822, %v3821
        %v3841 = vunpack.c.l.b16 %v3803
        %v3842 = vunpack.c.l.b16 %v3804
        %v3843 = vunpack.c.l.b16 %v3805
        %v3844 = vunpack.c.l.b16 %v3806
        %v3845 = vunpack.c.l.b16 %v3807
        %v3846 = vunpack.c.l.b16 %v3808
        %v3847 = vunpack.c.l.b16 %v3809
        %v3848 = vunpack.c.l.b16 %v3810
        %v3849 = vunpack.c.l.b16 %v3811
        %v3850 = vunpack.c.l.b16 %v3812
        %v3851 = vunpack.c.l.b16 %v3813
        %v3852 = vunpack.c.l.b16 %v3814
        %v3853 = vunpack.c.l.b16 %v3815
        %v3854 = vunpack.c.l.b16 %v3816
        %v3855 = vunpack.c.l.b16 %v3817
        %v3856 = vunpack.c.l.b16 %v3818
        %v3857 = vpack.c.b16 %v3842, %v3841
        %v3858 = vpack.c.b16 %v3844, %v3843
        %v3859 = vpack.c.b16 %v3846, %v3845
        %v3860 = vpack.c.b16 %v3848, %v3847
        %v3861 = vpack.c.b16 %v3850, %v3849
        %v3862 = vpack.c.b16 %v3852, %v3851
        %v3863 = vpack.c.b16 %v3854, %v3853
        %v3864 = vpack.c.b16 %v3856, %v3855
        %3873 = vmatpush.bf16.msra.mxu0 %v3864
        %3874 = vmatpush.bf16.msra.mxu0 %v3863
        %3875 = vmatpush.bf16.msra.mxu0 %v3862
        %3876 = vmatpush.bf16.msra.mxu0 %v3861
        %3877 = vmatpush.bf16.msra.mxu0 %v3860
        %3878 = vmatpush.bf16.msra.mxu0 %v3859
        %3879 = vmatpush.bf16.msra.mxu0 %v3858
        %3880 = vmatpush.bf16.msra.mxu0 %v3857
        %3881 = vmatmul.bf16.gmra.mxu0 %v3541
        %v3882 = vpop.f32.mrf.mxu0
        %v3883 = vadd.f32 0.0, %v3882
        %v3884 = vpop.f32.mrf.mxu0
        %v3885 = vadd.f32 0.0, %v3884
        %3886 = vmatmul.bf16.gmra.mxu0 %v3542
        %v3887 = vpop.f32.mrf.mxu0
        %v3888 = vadd.f32 0.0, %v3887
        %v3889 = vpop.f32.mrf.mxu0
        %v3890 = vadd.f32 0.0, %v3889
        %3891 = vmatmul.bf16.gmra.mxu0 %v3543
        %v3892 = vpop.f32.mrf.mxu0
        %v3893 = vadd.f32 0.0, %v3892
        %v3894 = vpop.f32.mrf.mxu0
        %v3895 = vadd.f32 0.0, %v3894
        %3896 = vmatmul.bf16.gmra.mxu0 %v3544
        %v3897 = vpop.f32.mrf.mxu0
        %v3898 = vadd.f32 0.0, %v3897
        %v3899 = vpop.f32.mrf.mxu0
        %v3900 = vadd.f32 0.0, %v3899
        %3901 = vmatmul.bf16.gmra.mxu0 %v3545
        %v3902 = vpop.f32.mrf.mxu0
        %v3903 = vadd.f32 0.0, %v3902
        %v3904 = vpop.f32.mrf.mxu0
        %v3905 = vadd.f32 0.0, %v3904
        %3906 = vmatmul.bf16.gmra.mxu0 %v3546
        %v3907 = vpop.f32.mrf.mxu0
        %v3908 = vadd.f32 0.0, %v3907
        %v3909 = vpop.f32.mrf.mxu0
        %v3910 = vadd.f32 0.0, %v3909
        %3911 = vmatmul.bf16.gmra.mxu0 %v3688
        %v3912 = vpop.f32.mrf.mxu0
        %v3913 = vadd.f32 0.0, %v3912
        %v3914 = vpop.f32.mrf.mxu0
        %v3915 = vadd.f32 0.0, %v3914
        %3916 = vmatmul.bf16.gmra.mxu0 %v3823
        %v3917 = vpop.f32.mrf.mxu0
        %v3918 = vadd.f32 0.0, %v3917
        %v3919 = vpop.f32.mrf.mxu0
        %v3920 = vadd.f32 0.0, %v3919
        %3921 = vdwg.mxu0
        %v3922 = vadd.f32 %v3787, %v3883
        %v3923 = vadd.f32 %v3788, %v3885
        %v3924 = vadd.f32 %v3789, %v3888
        %v3925 = vadd.f32 %v3790, %v3890
        %v3926 = vadd.f32 %v3791, %v3893
        %v3927 = vadd.f32 %v3792, %v3895
        %v3928 = vadd.f32 %v3793, %v3898
        %v3929 = vadd.f32 %v3794, %v3900
        %v3930 = vadd.f32 %v3795, %v3903
        %v3931 = vadd.f32 %v3796, %v3905
        %v3932 = vadd.f32 %v3797, %v3908
        %v3933 = vadd.f32 %v3798, %v3910
        %v3934 = vadd.f32 %v3799, %v3913
        %v3935 = vadd.f32 %v3800, %v3915
        %v3936 = vadd.f32 %v3801, %v3918
        %v3937 = vadd.f32 %v3802, %v3920
        %v3938 = vld [vmem:[%s2845 + $0x4] sm:$0xf]
        %v3939 = vld [vmem:[%s2845 + $0x8] sm:$0xf]
        %v3940 = vld [vmem:[%s2845 + $0xc] sm:$0x1]
        %v3941 = vld [vmem:[%s2845 + $0x14] sm:$0xf]
        %v3942 = vld [vmem:[%s2845 + $0x18] sm:$0xf]
        %v3943 = vld [vmem:[%s2845 + $0x1c] sm:$0x1]
        %v3944 = vld [vmem:[%s2845 + $0x24] sm:$0xf]
        %v3945 = vld [vmem:[%s2845 + $0x28] sm:$0xf]
        %v3946 = vld [vmem:[%s2845 + $0x2c] sm:$0x1]
        %v3947 = vld [vmem:[%s2845 + $0x34] sm:$0xf]
        %v3948 = vld [vmem:[%s2845 + $0x38] sm:$0xf]
        %v3949 = vld [vmem:[%s2845 + $0x3c] sm:$0x1]
        %v3950 = vld [vmem:[%s2845 + $0x44] sm:$0xf]
        %v3951 = vld [vmem:[%s2845 + $0x48] sm:$0xf]
        %v3952 = vld [vmem:[%s2845 + $0x4c] sm:$0x1]
        %v3953 = vld [vmem:[%s2845 + $0x54] sm:$0xf]
        %v3954 = vld [vmem:[%s2845 + $0x58] sm:$0xf]
        %v3955 = vld [vmem:[%s2845 + $0x5c] sm:$0x1]
        %v3956 = vld [vmem:[%s2845 + $0x64] sm:$0xf]
        %v3957 = vld [vmem:[%s2845 + $0x68] sm:$0xf]
        %v3958 = vld [vmem:[%s2845 + $0x6c] sm:$0x1]
        %v3959 = vld [vmem:[%s2845 + $0x74] sm:$0xf]
        %v3960 = vld [vmem:[%s2845 + $0x78] sm:$0xf]
        %v3961 = vld [vmem:[%s2845 + $0x7c] sm:$0x1]
        %v3962 = vld [vmem:[%s2845 + $0x84] sm:$0xf]
        %v3963 = vld [vmem:[%s2845 + $0x88] sm:$0xf]
        %v3964 = vld [vmem:[%s2845 + $0x8c] sm:$0x1]
        %v3965 = vld [vmem:[%s2845 + $0x94] sm:$0xf]
        %v3966 = vld [vmem:[%s2845 + $0x98] sm:$0xf]
        %v3967 = vld [vmem:[%s2845 + $0x9c] sm:$0x1]
        %v3969 = vshrl.u32 %v3938, 16
        %v3971 = vrot.slane %v3969, 4
        %v3972 = vshll.u32 %v3938, 16
        %v3974 = vrot.slane %v3972, 5
        %v3975 = vor.u32 %v3971, %v3974
        %v3976 = vrot.slane %v3975, 4
        %v3978 = vshll.u32 %v3939, 16
        %v3980 = vrot.slane %v3978, 5
        %v3981 = vsel %vm1944, %v3976, %v3980
        %v3982 = vshrl.u32 %v3939, 16
        %v3984 = vrot.slane %v3982, 4
        %v3985 = vor.u32 %v3984, %v3980
        %v3986 = vrot.slane %v3985, 4
        %v3988 = vshll.u32 %v3940, 16
        %v3990 = vrot.slane %v3988, 5
        %v3991 = vsel %vm1944, %v3986, %v3990
        %v3993 = vshrl.u32 %v3941, 16
        %v3995 = vrot.slane %v3993, 4
        %v3996 = vshll.u32 %v3941, 16
        %v3998 = vrot.slane %v3996, 5
        %v3999 = vor.u32 %v3995, %v3998
        %v4000 = vrot.slane %v3999, 4
        %v4002 = vshll.u32 %v3942, 16
        %v4004 = vrot.slane %v4002, 5
        %v4005 = vsel %vm1944, %v4000, %v4004
        %v4006 = vshrl.u32 %v3942, 16
        %v4008 = vrot.slane %v4006, 4
        %v4009 = vor.u32 %v4008, %v4004
        %v4010 = vrot.slane %v4009, 4
        %v4012 = vshll.u32 %v3943, 16
        %v4014 = vrot.slane %v4012, 5
        %v4015 = vsel %vm1944, %v4010, %v4014
        %v4017 = vshrl.u32 %v3944, 16
        %v4019 = vrot.slane %v4017, 4
        %v4020 = vshll.u32 %v3944, 16
        %v4022 = vrot.slane %v4020, 5
        %v4023 = vor.u32 %v4019, %v4022
        %v4024 = vrot.slane %v4023, 4
        %v4026 = vshll.u32 %v3945, 16
        %v4028 = vrot.slane %v4026, 5
        %v4029 = vsel %vm1944, %v4024, %v4028
        %v4030 = vshrl.u32 %v3945, 16
        %v4032 = vrot.slane %v4030, 4
        %v4033 = vor.u32 %v4032, %v4028
        %v4034 = vrot.slane %v4033, 4
        %v4036 = vshll.u32 %v3946, 16
        %v4038 = vrot.slane %v4036, 5
        %v4039 = vsel %vm1944, %v4034, %v4038
        %v4041 = vshrl.u32 %v3947, 16
        %v4043 = vrot.slane %v4041, 4
        %v4044 = vshll.u32 %v3947, 16
        %v4046 = vrot.slane %v4044, 5
        %v4047 = vor.u32 %v4043, %v4046
        %v4048 = vrot.slane %v4047, 4
        %v4050 = vshll.u32 %v3948, 16
        %v4052 = vrot.slane %v4050, 5
        %v4053 = vsel %vm1944, %v4048, %v4052
        %v4054 = vshrl.u32 %v3948, 16
        %v4056 = vrot.slane %v4054, 4
        %v4057 = vor.u32 %v4056, %v4052
        %v4058 = vrot.slane %v4057, 4
        %v4060 = vshll.u32 %v3949, 16
        %v4062 = vrot.slane %v4060, 5
        %v4063 = vsel %vm1944, %v4058, %v4062
        %v4065 = vshrl.u32 %v3950, 16
        %v4067 = vrot.slane %v4065, 4
        %v4068 = vshll.u32 %v3950, 16
        %v4070 = vrot.slane %v4068, 5
        %v4071 = vor.u32 %v4067, %v4070
        %v4072 = vrot.slane %v4071, 4
        %v4074 = vshll.u32 %v3951, 16
        %v4076 = vrot.slane %v4074, 5
        %v4077 = vsel %vm1944, %v4072, %v4076
        %v4078 = vshrl.u32 %v3951, 16
        %v4080 = vrot.slane %v4078, 4
        %v4081 = vor.u32 %v4080, %v4076
        %v4082 = vrot.slane %v4081, 4
        %v4084 = vshll.u32 %v3952, 16
        %v4086 = vrot.slane %v4084, 5
        %v4087 = vsel %vm1944, %v4082, %v4086
        %v4089 = vshrl.u32 %v3953, 16
        %v4091 = vrot.slane %v4089, 4
        %v4092 = vshll.u32 %v3953, 16
        %v4094 = vrot.slane %v4092, 5
        %v4095 = vor.u32 %v4091, %v4094
        %v4096 = vrot.slane %v4095, 4
        %v4098 = vshll.u32 %v3954, 16
        %v4100 = vrot.slane %v4098, 5
        %v4101 = vsel %vm1944, %v4096, %v4100
        %v4102 = vshrl.u32 %v3954, 16
        %v4104 = vrot.slane %v4102, 4
        %v4105 = vor.u32 %v4104, %v4100
        %v4106 = vrot.slane %v4105, 4
        %v4108 = vshll.u32 %v3955, 16
        %v4110 = vrot.slane %v4108, 5
        %v4111 = vsel %vm1944, %v4106, %v4110
        %v4113 = vshrl.u32 %v3956, 16
        %v4115 = vrot.slane %v4113, 4
        %v4116 = vshll.u32 %v3956, 16
        %v4118 = vrot.slane %v4116, 5
        %v4119 = vor.u32 %v4115, %v4118
        %v4120 = vrot.slane %v4119, 4
        %v4122 = vshll.u32 %v3957, 16
        %v4124 = vrot.slane %v4122, 5
        %v4125 = vsel %vm1944, %v4120, %v4124
        %v4126 = vshrl.u32 %v3957, 16
        %v4128 = vrot.slane %v4126, 4
        %v4129 = vor.u32 %v4128, %v4124
        %v4130 = vrot.slane %v4129, 4
        %v4132 = vshll.u32 %v3958, 16
        %v4134 = vrot.slane %v4132, 5
        %v4135 = vsel %vm1944, %v4130, %v4134
        %v4137 = vshrl.u32 %v3959, 16
        %v4139 = vrot.slane %v4137, 4
        %v4140 = vshll.u32 %v3959, 16
        %v4142 = vrot.slane %v4140, 5
        %v4143 = vor.u32 %v4139, %v4142
        %v4144 = vrot.slane %v4143, 4
        %v4146 = vshll.u32 %v3960, 16
        %v4148 = vrot.slane %v4146, 5
        %v4149 = vsel %vm1944, %v4144, %v4148
        %v4150 = vshrl.u32 %v3960, 16
        %v4152 = vrot.slane %v4150, 4
        %v4153 = vor.u32 %v4152, %v4148
        %v4154 = vrot.slane %v4153, 4
        %v4156 = vshll.u32 %v3961, 16
        %v4158 = vrot.slane %v4156, 5
        %v4159 = vsel %vm1944, %v4154, %v4158
        %v4160 = vld [vmem:[%s2137] sm:$0xf]
        %v4161 = vld [vmem:[%s2137 + $0x4] sm:$0xf]
        %v4162 = vld [vmem:[%s2137 + $0x8] sm:$0xf]
        %v4163 = vld [vmem:[%s2137 + $0xc] sm:$0xf]
        %v4164 = vld [vmem:[%s2137 + $0x10] sm:$0xf]
        %v4165 = vld [vmem:[%s2137 + $0x14] sm:$0xf]
        %v4166 = vld [vmem:[%s2137 + $0x18] sm:$0xf]
        %v4167 = vld [vmem:[%s2137 + $0x1c] sm:$0xf]
        %v4168 = vld [vmem:[%s2137 + $0x20] sm:$0xf]
        %v4169 = vld [vmem:[%s2137 + $0x24] sm:$0xf]
        %v4170 = vld [vmem:[%s2137 + $0x28] sm:$0xf]
        %v4171 = vld [vmem:[%s2137 + $0x2c] sm:$0xf]
        %v4172 = vld [vmem:[%s2137 + $0x30] sm:$0xf]
        %v4173 = vld [vmem:[%s2137 + $0x34] sm:$0xf]
        %v4174 = vld [vmem:[%s2137 + $0x38] sm:$0xf]
        %v4175 = vld [vmem:[%s2137 + $0x3c] sm:$0xf]
        %v4176 = vunpack.c.l.b16 %v3981
        %v4177 = vunpack.c.l.b16 %v3991
        %v4178 = vunpack.c.l.b16 %v4005
        %v4179 = vunpack.c.l.b16 %v4015
        %v4180 = vunpack.c.l.b16 %v4029
        %v4181 = vunpack.c.l.b16 %v4039
        %v4182 = vunpack.c.l.b16 %v4053
        %v4183 = vunpack.c.l.b16 %v4063
        %v4184 = vunpack.c.l.b16 %v4077
        %v4185 = vunpack.c.l.b16 %v4087
        %v4186 = vunpack.c.l.b16 %v4101
        %v4187 = vunpack.c.l.b16 %v4111
        %v4188 = vunpack.c.l.b16 %v4125
        %v4189 = vunpack.c.l.b16 %v4135
        %v4190 = vunpack.c.l.b16 %v4149
        %v4191 = vunpack.c.l.b16 %v4159
        %v4192 = vpack.c.b16 %v4177, %v4176
        %v4193 = vpack.c.b16 %v4179, %v4178
        %v4194 = vpack.c.b16 %v4181, %v4180
        %v4195 = vpack.c.b16 %v4183, %v4182
        %v4196 = vpack.c.b16 %v4185, %v4184
        %v4197 = vpack.c.b16 %v4187, %v4186
        %v4198 = vpack.c.b16 %v4189, %v4188
        %v4199 = vpack.c.b16 %v4191, %v4190
        %v4224 = vunpack.c.l.b16 %v4160
        %v4225 = vunpack.c.l.b16 %v4161
        %v4226 = vunpack.c.l.b16 %v4162
        %v4227 = vunpack.c.l.b16 %v4163
        %v4228 = vunpack.c.l.b16 %v4164
        %v4229 = vunpack.c.l.b16 %v4165
        %v4230 = vunpack.c.l.b16 %v4166
        %v4231 = vunpack.c.l.b16 %v4167
        %v4232 = vunpack.c.l.b16 %v4168
        %v4233 = vunpack.c.l.b16 %v4169
        %v4234 = vunpack.c.l.b16 %v4170
        %v4235 = vunpack.c.l.b16 %v4171
        %v4236 = vunpack.c.l.b16 %v4172
        %v4237 = vunpack.c.l.b16 %v4173
        %v4238 = vunpack.c.l.b16 %v4174
        %v4239 = vunpack.c.l.b16 %v4175
        %v4240 = vpack.c.b16 %v4225, %v4224
        %v4241 = vpack.c.b16 %v4227, %v4226
        %v4242 = vpack.c.b16 %v4229, %v4228
        %v4243 = vpack.c.b16 %v4231, %v4230
        %v4244 = vpack.c.b16 %v4233, %v4232
        %v4245 = vpack.c.b16 %v4235, %v4234
        %v4246 = vpack.c.b16 %v4237, %v4236
        %v4247 = vpack.c.b16 %v4239, %v4238
        %4256 = vmatpush.bf16.msra.mxu0 %v4247
        %4257 = vmatpush.bf16.msra.mxu0 %v4246
        %4258 = vmatpush.bf16.msra.mxu0 %v4245
        %4259 = vmatpush.bf16.msra.mxu0 %v4244
        %4260 = vmatpush.bf16.msra.mxu0 %v4243
        %4261 = vmatpush.bf16.msra.mxu0 %v4242
        %4262 = vmatpush.bf16.msra.mxu0 %v4241
        %4263 = vmatpush.bf16.msra.mxu0 %v4240
        %4264 = vmatmul.bf16.gmra.mxu0 %v4192
        %v4265 = vpop.f32.mrf.mxu0
        %v4266 = vadd.f32 0.0, %v4265
        %v4267 = vpop.f32.mrf.mxu0
        %v4268 = vadd.f32 0.0, %v4267
        %4269 = vmatmul.bf16.gmra.mxu0 %v4193
        %v4270 = vpop.f32.mrf.mxu0
        %v4271 = vadd.f32 0.0, %v4270
        %v4272 = vpop.f32.mrf.mxu0
        %v4273 = vadd.f32 0.0, %v4272
        %4274 = vmatmul.bf16.gmra.mxu0 %v4194
        %v4275 = vpop.f32.mrf.mxu0
        %v4276 = vadd.f32 0.0, %v4275
        %v4277 = vpop.f32.mrf.mxu0
        %v4278 = vadd.f32 0.0, %v4277
        %4279 = vmatmul.bf16.gmra.mxu0 %v4195
        %v4280 = vpop.f32.mrf.mxu0
        %v4281 = vadd.f32 0.0, %v4280
        %v4282 = vpop.f32.mrf.mxu0
        %v4283 = vadd.f32 0.0, %v4282
        %4284 = vmatmul.bf16.gmra.mxu0 %v4196
        %v4285 = vpop.f32.mrf.mxu0
        %v4286 = vadd.f32 0.0, %v4285
        %v4287 = vpop.f32.mrf.mxu0
        %v4288 = vadd.f32 0.0, %v4287
        %4289 = vmatmul.bf16.gmra.mxu0 %v4197
        %v4290 = vpop.f32.mrf.mxu0
        %v4291 = vadd.f32 0.0, %v4290
        %v4292 = vpop.f32.mrf.mxu0
        %v4293 = vadd.f32 0.0, %v4292
        %4294 = vmatmul.bf16.gmra.mxu0 %v4198
        %v4295 = vpop.f32.mrf.mxu0
        %v4296 = vadd.f32 0.0, %v4295
        %v4297 = vpop.f32.mrf.mxu0
        %v4298 = vadd.f32 0.0, %v4297
        %4299 = vmatmul.bf16.gmra.mxu0 %v4199
        %v4300 = vpop.f32.mrf.mxu0
        %v4301 = vadd.f32 0.0, %v4300
        %v4302 = vpop.f32.mrf.mxu0
        %v4303 = vadd.f32 0.0, %v4302
        %4304 = vdwg.mxu0
        %v4305 = vadd.f32 %v3922, %v4266
        %v4306 = vadd.f32 %v3923, %v4268
        %v4307 = vadd.f32 %v3924, %v4271
        %v4308 = vadd.f32 %v3925, %v4273
        %v4309 = vadd.f32 %v3926, %v4276
        %v4310 = vadd.f32 %v3927, %v4278
        %v4311 = vadd.f32 %v3928, %v4281
        %v4312 = vadd.f32 %v3929, %v4283
        %v4313 = vadd.f32 %v3930, %v4286
        %v4314 = vadd.f32 %v3931, %v4288
        %v4315 = vadd.f32 %v3932, %v4291
        %v4316 = vadd.f32 %v3933, %v4293
        %v4317 = vadd.f32 %v3934, %v4296
        %v4318 = vadd.f32 %v3935, %v4298
        %v4319 = vadd.f32 %v3936, %v4301
        %v4320 = vadd.f32 %v3937, %v4303
        %v4322 = vshrl.u32 %v3962, 16
        %v4324 = vrot.slane %v4322, 4
        %v4325 = vshll.u32 %v3962, 16
        %v4327 = vrot.slane %v4325, 5
        %v4328 = vor.u32 %v4324, %v4327
        %v4329 = vrot.slane %v4328, 4
        %v4331 = vshll.u32 %v3963, 16
        %v4333 = vrot.slane %v4331, 5
        %v4334 = vsel %vm1944, %v4329, %v4333
        %v4335 = vshrl.u32 %v3963, 16
        %v4337 = vrot.slane %v4335, 4
        %v4338 = vor.u32 %v4337, %v4333
        %v4339 = vrot.slane %v4338, 4
        %v4341 = vshll.u32 %v3964, 16
        %v4343 = vrot.slane %v4341, 5
        %v4344 = vsel %vm1944, %v4339, %v4343
        %v4345 = vld [vmem:[%s2323] sm:$0xf]
        %v4346 = vld [vmem:[%s2323 + $0x4] sm:$0xf]
        %v4347 = vld [vmem:[%s2323 + $0x8] sm:$0xf]
        %v4348 = vld [vmem:[%s2323 + $0xc] sm:$0xf]
        %v4349 = vld [vmem:[%s2323 + $0x10] sm:$0xf]
        %v4350 = vld [vmem:[%s2323 + $0x14] sm:$0xf]
        %v4351 = vld [vmem:[%s2323 + $0x18] sm:$0xf]
        %v4352 = vld [vmem:[%s2323 + $0x1c] sm:$0xf]
        %v4353 = vld [vmem:[%s2323 + $0x20] sm:$0xf]
        %v4354 = vld [vmem:[%s2323 + $0x24] sm:$0xf]
        %v4355 = vld [vmem:[%s2323 + $0x28] sm:$0xf]
        %v4356 = vld [vmem:[%s2323 + $0x2c] sm:$0xf]
        %v4357 = vld [vmem:[%s2323 + $0x30] sm:$0xf]
        %v4358 = vld [vmem:[%s2323 + $0x34] sm:$0xf]
        %v4359 = vld [vmem:[%s2323 + $0x38] sm:$0xf]
        %v4360 = vld [vmem:[%s2323 + $0x3c] sm:$0xf]
        %v4361 = vunpack.c.l.b16 %v4334
        %v4362 = vunpack.c.l.b16 %v4344
        %v4363 = vpack.c.b16 %v4362, %v4361
        %v4381 = vunpack.c.l.b16 %v4345
        %v4382 = vunpack.c.l.b16 %v4346
        %v4383 = vunpack.c.l.b16 %v4347
        %v4384 = vunpack.c.l.b16 %v4348
        %v4385 = vunpack.c.l.b16 %v4349
        %v4386 = vunpack.c.l.b16 %v4350
        %v4387 = vunpack.c.l.b16 %v4351
        %v4388 = vunpack.c.l.b16 %v4352
        %v4389 = vunpack.c.l.b16 %v4353
        %v4390 = vunpack.c.l.b16 %v4354
        %v4391 = vunpack.c.l.b16 %v4355
        %v4392 = vunpack.c.l.b16 %v4356
        %v4393 = vunpack.c.l.b16 %v4357
        %v4394 = vunpack.c.l.b16 %v4358
        %v4395 = vunpack.c.l.b16 %v4359
        %v4396 = vunpack.c.l.b16 %v4360
        %v4397 = vpack.c.b16 %v4382, %v4381
        %v4398 = vpack.c.b16 %v4384, %v4383
        %v4399 = vpack.c.b16 %v4386, %v4385
        %v4400 = vpack.c.b16 %v4388, %v4387
        %v4401 = vpack.c.b16 %v4390, %v4389
        %v4402 = vpack.c.b16 %v4392, %v4391
        %v4403 = vpack.c.b16 %v4394, %v4393
        %v4404 = vpack.c.b16 %v4396, %v4395
        %4413 = vmatpush.bf16.msra.mxu0 %v4404
        %4414 = vmatpush.bf16.msra.mxu0 %v4403
        %4415 = vmatpush.bf16.msra.mxu0 %v4402
        %4416 = vmatpush.bf16.msra.mxu0 %v4401
        %4417 = vmatpush.bf16.msra.mxu0 %v4400
        %4418 = vmatpush.bf16.msra.mxu0 %v4399
        %4419 = vmatpush.bf16.msra.mxu0 %v4398
        %4420 = vmatpush.bf16.msra.mxu0 %v4397
        %4421 = vmatmul.bf16.gmra.mxu0 %v4193
        %v4422 = vpop.f32.mrf.mxu0
        %v4423 = vadd.f32 0.0, %v4422
        %v4424 = vpop.f32.mrf.mxu0
        %v4425 = vadd.f32 0.0, %v4424
        %4426 = vmatmul.bf16.gmra.mxu0 %v4194
        %v4427 = vpop.f32.mrf.mxu0
        %v4428 = vadd.f32 0.0, %v4427
        %v4429 = vpop.f32.mrf.mxu0
        %v4430 = vadd.f32 0.0, %v4429
        %4431 = vmatmul.bf16.gmra.mxu0 %v4195
        %v4432 = vpop.f32.mrf.mxu0
        %v4433 = vadd.f32 0.0, %v4432
        %v4434 = vpop.f32.mrf.mxu0
        %v4435 = vadd.f32 0.0, %v4434
        %4436 = vmatmul.bf16.gmra.mxu0 %v4196
        %v4437 = vpop.f32.mrf.mxu0
        %v4438 = vadd.f32 0.0, %v4437
        %v4439 = vpop.f32.mrf.mxu0
        %v4440 = vadd.f32 0.0, %v4439
        %4441 = vmatmul.bf16.gmra.mxu0 %v4197
        %v4442 = vpop.f32.mrf.mxu0
        %v4443 = vadd.f32 0.0, %v4442
        %v4444 = vpop.f32.mrf.mxu0
        %v4445 = vadd.f32 0.0, %v4444
        %4446 = vmatmul.bf16.gmra.mxu0 %v4198
        %v4447 = vpop.f32.mrf.mxu0
        %v4448 = vadd.f32 0.0, %v4447
        %v4449 = vpop.f32.mrf.mxu0
        %v4450 = vadd.f32 0.0, %v4449
        %4451 = vmatmul.bf16.gmra.mxu0 %v4199
        %v4452 = vpop.f32.mrf.mxu0
        %v4453 = vadd.f32 0.0, %v4452
        %v4454 = vpop.f32.mrf.mxu0
        %v4455 = vadd.f32 0.0, %v4454
        %4456 = vmatmul.bf16.gmra.mxu0 %v4363
        %v4457 = vpop.f32.mrf.mxu0
        %v4458 = vadd.f32 0.0, %v4457
        %v4459 = vpop.f32.mrf.mxu0
        %v4460 = vadd.f32 0.0, %v4459
        %4461 = vdwg.mxu0
        %v4462 = vadd.f32 %v4305, %v4423
        %v4463 = vadd.f32 %v4306, %v4425
        %v4464 = vadd.f32 %v4307, %v4428
        %v4465 = vadd.f32 %v4308, %v4430
        %v4466 = vadd.f32 %v4309, %v4433
        %v4467 = vadd.f32 %v4310, %v4435
        %v4468 = vadd.f32 %v4311, %v4438
        %v4469 = vadd.f32 %v4312, %v4440
        %v4470 = vadd.f32 %v4313, %v4443
        %v4471 = vadd.f32 %v4314, %v4445
        %v4472 = vadd.f32 %v4315, %v4448
        %v4473 = vadd.f32 %v4316, %v4450
        %v4474 = vadd.f32 %v4317, %v4453
        %v4475 = vadd.f32 %v4318, %v4455
        %v4476 = vadd.f32 %v4319, %v4458
        %v4477 = vadd.f32 %v4320, %v4460
        %v4479 = vshrl.u32 %v3965, 16
        %v4481 = vrot.slane %v4479, 4
        %v4482 = vshll.u32 %v3965, 16
        %v4484 = vrot.slane %v4482, 5
        %v4485 = vor.u32 %v4481, %v4484
        %v4486 = vrot.slane %v4485, 4
        %v4488 = vshll.u32 %v3966, 16
        %v4490 = vrot.slane %v4488, 5
        %v4491 = vsel %vm1944, %v4486, %v4490
        %v4492 = vshrl.u32 %v3966, 16
        %v4494 = vrot.slane %v4492, 4
        %v4495 = vor.u32 %v4494, %v4490
        %v4496 = vrot.slane %v4495, 4
        %v4498 = vshll.u32 %v3967, 16
        %v4500 = vrot.slane %v4498, 5
        %v4501 = vsel %vm1944, %v4496, %v4500
        %v4502 = vld [vmem:[%s2481] sm:$0xf]
        %v4503 = vld [vmem:[%s2481 + $0x4] sm:$0xf]
        %v4504 = vld [vmem:[%s2481 + $0x8] sm:$0xf]
        %v4505 = vld [vmem:[%s2481 + $0xc] sm:$0xf]
        %v4506 = vld [vmem:[%s2481 + $0x10] sm:$0xf]
        %v4507 = vld [vmem:[%s2481 + $0x14] sm:$0xf]
        %v4508 = vld [vmem:[%s2481 + $0x18] sm:$0xf]
        %v4509 = vld [vmem:[%s2481 + $0x1c] sm:$0xf]
        %v4510 = vld [vmem:[%s2481 + $0x20] sm:$0xf]
        %v4511 = vld [vmem:[%s2481 + $0x24] sm:$0xf]
        %v4512 = vld [vmem:[%s2481 + $0x28] sm:$0xf]
        %v4513 = vld [vmem:[%s2481 + $0x2c] sm:$0xf]
        %v4514 = vld [vmem:[%s2481 + $0x30] sm:$0xf]
        %v4515 = vld [vmem:[%s2481 + $0x34] sm:$0xf]
        %v4516 = vld [vmem:[%s2481 + $0x38] sm:$0xf]
        %v4517 = vld [vmem:[%s2481 + $0x3c] sm:$0xf]
        %v4518 = vunpack.c.l.b16 %v4491
        %v4519 = vunpack.c.l.b16 %v4501
        %v4520 = vpack.c.b16 %v4519, %v4518
        %v4538 = vunpack.c.l.b16 %v4502
        %v4539 = vunpack.c.l.b16 %v4503
        %v4540 = vunpack.c.l.b16 %v4504
        %v4541 = vunpack.c.l.b16 %v4505
        %v4542 = vunpack.c.l.b16 %v4506
        %v4543 = vunpack.c.l.b16 %v4507
        %v4544 = vunpack.c.l.b16 %v4508
        %v4545 = vunpack.c.l.b16 %v4509
        %v4546 = vunpack.c.l.b16 %v4510
        %v4547 = vunpack.c.l.b16 %v4511
        %v4548 = vunpack.c.l.b16 %v4512
        %v4549 = vunpack.c.l.b16 %v4513
        %v4550 = vunpack.c.l.b16 %v4514
        %v4551 = vunpack.c.l.b16 %v4515
        %v4552 = vunpack.c.l.b16 %v4516
        %v4553 = vunpack.c.l.b16 %v4517
        %v4554 = vpack.c.b16 %v4539, %v4538
        %v4555 = vpack.c.b16 %v4541, %v4540
        %v4556 = vpack.c.b16 %v4543, %v4542
        %v4557 = vpack.c.b16 %v4545, %v4544
        %v4558 = vpack.c.b16 %v4547, %v4546
        %v4559 = vpack.c.b16 %v4549, %v4548
        %v4560 = vpack.c.b16 %v4551, %v4550
        %v4561 = vpack.c.b16 %v4553, %v4552
        %4570 = vmatpush.bf16.msra.mxu0 %v4561
        %4571 = vmatpush.bf16.msra.mxu0 %v4560
        %4572 = vmatpush.bf16.msra.mxu0 %v4559
        %4573 = vmatpush.bf16.msra.mxu0 %v4558
        %4574 = vmatpush.bf16.msra.mxu0 %v4557
        %4575 = vmatpush.bf16.msra.mxu0 %v4556
        %4576 = vmatpush.bf16.msra.mxu0 %v4555
        %4577 = vmatpush.bf16.msra.mxu0 %v4554
        %4578 = vmatmul.bf16.gmra.mxu0 %v4194
        %v4579 = vpop.f32.mrf.mxu0
        %v4580 = vadd.f32 0.0, %v4579
        %v4581 = vpop.f32.mrf.mxu0
        %v4582 = vadd.f32 0.0, %v4581
        %4583 = vmatmul.bf16.gmra.mxu0 %v4195
        %v4584 = vpop.f32.mrf.mxu0
        %v4585 = vadd.f32 0.0, %v4584
        %v4586 = vpop.f32.mrf.mxu0
        %v4587 = vadd.f32 0.0, %v4586
        %4588 = vmatmul.bf16.gmra.mxu0 %v4196
        %v4589 = vpop.f32.mrf.mxu0
        %v4590 = vadd.f32 0.0, %v4589
        %v4591 = vpop.f32.mrf.mxu0
        %v4592 = vadd.f32 0.0, %v4591
        %4593 = vmatmul.bf16.gmra.mxu0 %v4197
        %v4594 = vpop.f32.mrf.mxu0
        %v4595 = vadd.f32 0.0, %v4594
        %v4596 = vpop.f32.mrf.mxu0
        %v4597 = vadd.f32 0.0, %v4596
        %4598 = vmatmul.bf16.gmra.mxu0 %v4198
        %v4599 = vpop.f32.mrf.mxu0
        %v4600 = vadd.f32 0.0, %v4599
        %v4601 = vpop.f32.mrf.mxu0
        %v4602 = vadd.f32 0.0, %v4601
        %4603 = vmatmul.bf16.gmra.mxu0 %v4199
        %v4604 = vpop.f32.mrf.mxu0
        %v4605 = vadd.f32 0.0, %v4604
        %v4606 = vpop.f32.mrf.mxu0
        %v4607 = vadd.f32 0.0, %v4606
        %4608 = vmatmul.bf16.gmra.mxu0 %v4363
        %v4609 = vpop.f32.mrf.mxu0
        %v4610 = vadd.f32 0.0, %v4609
        %v4611 = vpop.f32.mrf.mxu0
        %v4612 = vadd.f32 0.0, %v4611
        %4613 = vmatmul.bf16.gmra.mxu0 %v4520
        %v4614 = vpop.f32.mrf.mxu0
        %v4615 = vadd.f32 0.0, %v4614
        %v4616 = vpop.f32.mrf.mxu0
        %v4617 = vadd.f32 0.0, %v4616
        %4618 = vdwg.mxu0
        %v4619 = vadd.f32 %v4462, %v4580
        %v4620 = vadd.f32 %v4463, %v4582
        %v4621 = vadd.f32 %v4464, %v4585
        %v4622 = vadd.f32 %v4465, %v4587
        %v4623 = vadd.f32 %v4466, %v4590
        %v4624 = vadd.f32 %v4467, %v4592
        %v4625 = vadd.f32 %v4468, %v4595
        %v4626 = vadd.f32 %v4469, %v4597
        %v4627 = vadd.f32 %v4470, %v4600
        %v4628 = vadd.f32 %v4471, %v4602
        %v4629 = vadd.f32 %v4472, %v4605
        %v4630 = vadd.f32 %v4473, %v4607
        %v4631 = vadd.f32 %v4474, %v4610
        %v4632 = vadd.f32 %v4475, %v4612
        %v4633 = vadd.f32 %v4476, %v4615
        %v4634 = vadd.f32 %v4477, %v4617
        %v4635 = vld [vmem:[%s5] sm:$0x1]
        %v4637 = vperm.slane %v4635, 0
        %v4639 = vadd.f32 %v4619, %v4637
        %v4640 = vadd.f32 %v4620, %v4637
        %v4641 = vadd.f32 %v4621, %v4637
        %v4642 = vadd.f32 %v4622, %v4637
        %v4643 = vadd.f32 %v4623, %v4637
        %v4644 = vadd.f32 %v4624, %v4637
        %v4645 = vadd.f32 %v4625, %v4637
        %v4646 = vadd.f32 %v4626, %v4637
        %v4647 = vadd.f32 %v4627, %v4637
        %v4648 = vadd.f32 %v4628, %v4637
        %v4649 = vadd.f32 %v4629, %v4637
        %v4650 = vadd.f32 %v4630, %v4637
        %v4651 = vadd.f32 %v4631, %v4637
        %v4652 = vadd.f32 %v4632, %v4637
        %v4653 = vadd.f32 %v4633, %v4637
        %v4654 = vadd.f32 %v4634, %v4637
        %v4655 = vmax.f32 %v4639, 0.0
        %v4656 = vmax.f32 %v4640, 0.0
        %v4657 = vmax.f32 %v4641, 0.0
        %v4658 = vmax.f32 %v4642, 0.0
        %v4659 = vmax.f32 %v4643, 0.0
        %v4660 = vmax.f32 %v4644, 0.0
        %v4661 = vmax.f32 %v4645, 0.0
        %v4662 = vmax.f32 %v4646, 0.0
        %v4663 = vmax.f32 %v4647, 0.0
        %v4664 = vmax.f32 %v4648, 0.0
        %v4665 = vmax.f32 %v4649, 0.0
        %v4666 = vmax.f32 %v4650, 0.0
        %v4667 = vmax.f32 %v4651, 0.0
        %v4668 = vmax.f32 %v4652, 0.0
        %v4669 = vmax.f32 %v4653, 0.0
        %v4670 = vmax.f32 %v4654, 0.0
        %v4671 = vpack.c.bf16 %v4656, %v4655
        %v4672 = vpack.c.bf16 %v4658, %v4657
        %v4673 = vpack.c.bf16 %v4660, %v4659
        %v4674 = vpack.c.bf16 %v4662, %v4661
        %v4675 = vpack.c.bf16 %v4664, %v4663
        %v4676 = vpack.c.bf16 %v4666, %v4665
        %v4677 = vpack.c.bf16 %v4668, %v4667
        %v4678 = vpack.c.bf16 %v4670, %v4669
        %v4679 = vld [vmem:[#allocation9] sm:$0xf]
        %v4680 = vld [vmem:[#allocation9 + $0x4] sm:$0xf]
        %v4681 = vld [vmem:[#allocation9 + $0x8] sm:$0xf]
        %v4682 = vld [vmem:[#allocation9 + $0xc] sm:$0xf]
        %v4683 = vld [vmem:[#allocation9 + $0x10] sm:$0xf]
        %v4684 = vld [vmem:[#allocation9 + $0x14] sm:$0xf]
        %v4685 = vld [vmem:[#allocation9 + $0x18] sm:$0xf]
        %v4686 = vld [vmem:[#allocation9 + $0x1c] sm:$0xf]
        %v4687 = vld [vmem:[#allocation9 + $0x20] sm:$0xf]
        %v4688 = vld [vmem:[#allocation9 + $0x24] sm:$0xf]
        %v4689 = vld [vmem:[#allocation9 + $0x28] sm:$0xf]
        %v4690 = vld [vmem:[#allocation9 + $0x2c] sm:$0xf]
        %v4691 = vld [vmem:[#allocation9 + $0x30] sm:$0xf]
        %v4692 = vld [vmem:[#allocation9 + $0x34] sm:$0xf]
        %v4693 = vld [vmem:[#allocation9 + $0x38] sm:$0xf]
        %v4694 = vld [vmem:[#allocation9 + $0x3c] sm:$0xf]
        %v4695 = vld [vmem:[%s6] sm:$0x1]
        %v4697 = vperm.slane %v4695, 0
        %v4715 = vunpack.c.l.b16 %v4679
        %v4716 = vunpack.c.l.b16 %v4680
        %v4717 = vunpack.c.l.b16 %v4681
        %v4718 = vunpack.c.l.b16 %v4682
        %v4719 = vunpack.c.l.b16 %v4683
        %v4720 = vunpack.c.l.b16 %v4684
        %v4721 = vunpack.c.l.b16 %v4685
        %v4722 = vunpack.c.l.b16 %v4686
        %v4723 = vunpack.c.l.b16 %v4687
        %v4724 = vunpack.c.l.b16 %v4688
        %v4725 = vunpack.c.l.b16 %v4689
        %v4726 = vunpack.c.l.b16 %v4690
        %v4727 = vunpack.c.l.b16 %v4691
        %v4728 = vunpack.c.l.b16 %v4692
        %v4729 = vunpack.c.l.b16 %v4693
        %v4730 = vunpack.c.l.b16 %v4694
        %v4731 = vpack.c.b16 %v4716, %v4715
        %v4732 = vpack.c.b16 %v4718, %v4717
        %v4733 = vpack.c.b16 %v4720, %v4719
        %v4734 = vpack.c.b16 %v4722, %v4721
        %v4735 = vpack.c.b16 %v4724, %v4723
        %v4736 = vpack.c.b16 %v4726, %v4725
        %v4737 = vpack.c.b16 %v4728, %v4727
        %v4738 = vpack.c.b16 %v4730, %v4729
        %4747 = vmatpush.bf16.msra.mxu0 %v4738
        %4748 = vmatpush.bf16.msra.mxu0 %v4737
        %4749 = vmatpush.bf16.msra.mxu0 %v4736
        %4750 = vmatpush.bf16.msra.mxu0 %v4735
        %4751 = vmatpush.bf16.msra.mxu0 %v4734
        %4752 = vmatpush.bf16.msra.mxu0 %v4733
        %4753 = vmatpush.bf16.msra.mxu0 %v4732
        %4754 = vmatpush.bf16.msra.mxu0 %v4731
        %4755 = vmatmul.bf16.gmra.mxu0 %v4671
        %v4756 = vpop.f32.mrf.mxu0
        %v4757 = vadd.f32 %v4697, %v4756
        %v4758 = vpop.f32.mrf.mxu0
        %v4759 = vadd.f32 %v4697, %v4758
        %4760 = vmatmul.bf16.gmra.mxu0 %v4672
        %v4761 = vpop.f32.mrf.mxu0
        %v4762 = vadd.f32 %v4697, %v4761
        %v4763 = vpop.f32.mrf.mxu0
        %v4764 = vadd.f32 %v4697, %v4763
        %4765 = vmatmul.bf16.gmra.mxu0 %v4673
        %v4766 = vpop.f32.mrf.mxu0
        %v4767 = vadd.f32 %v4697, %v4766
        %v4768 = vpop.f32.mrf.mxu0
        %v4769 = vadd.f32 %v4697, %v4768
        %4770 = vmatmul.bf16.gmra.mxu0 %v4674
        %v4771 = vpop.f32.mrf.mxu0
        %v4772 = vadd.f32 %v4697, %v4771
        %v4773 = vpop.f32.mrf.mxu0
        %v4774 = vadd.f32 %v4697, %v4773
        %4775 = vmatmul.bf16.gmra.mxu0 %v4675
        %v4776 = vpop.f32.mrf.mxu0
        %v4777 = vadd.f32 %v4697, %v4776
        %v4778 = vpop.f32.mrf.mxu0
        %v4779 = vadd.f32 %v4697, %v4778
        %4780 = vmatmul.bf16.gmra.mxu0 %v4676
        %v4781 = vpop.f32.mrf.mxu0
        %v4782 = vadd.f32 %v4697, %v4781
        %v4783 = vpop.f32.mrf.mxu0
        %v4784 = vadd.f32 %v4697, %v4783
        %4785 = vmatmul.bf16.gmra.mxu0 %v4677
        %v4786 = vpop.f32.mrf.mxu0
        %v4787 = vadd.f32 %v4697, %v4786
        %v4788 = vpop.f32.mrf.mxu0
        %v4789 = vadd.f32 %v4697, %v4788
        %4790 = vmatmul.bf16.gmra.mxu0 %v4678
        %v4791 = vpop.f32.mrf.mxu0
        %v4792 = vadd.f32 %v4697, %v4791
        %v4793 = vpop.f32.mrf.mxu0
        %v4794 = vadd.f32 %v4697, %v4793
        %4795 = vdwg.mxu0
        %s4796 = smul.u32 8, 16
        %s4797 = scalar_lea.vmem %s302, %s4796 [#allocation3]
        %v4798 = vld [vmem:[%s4797] sm:$0xff]
        %v4799 = vld [vmem:[%s4797 + $0x8] sm:$0xff]
        %v4800 = vld [vmem:[%s4797 + $0x10] sm:$0xff]
        %v4801 = vld [vmem:[%s4797 + $0x18] sm:$0xff]
        %v4802 = vld [vmem:[%s4797 + $0x20] sm:$0xff]
        %v4803 = vld [vmem:[%s4797 + $0x28] sm:$0xff]
        %v4804 = vld [vmem:[%s4797 + $0x30] sm:$0xff]
        %v4805 = vld [vmem:[%s4797 + $0x38] sm:$0xff]
        %v4806 = vld [vmem:[%s4797 + $0x40] sm:$0xff]
        %v4807 = vld [vmem:[%s4797 + $0x48] sm:$0xff]
        %v4808 = vld [vmem:[%s4797 + $0x50] sm:$0xff]
        %v4809 = vld [vmem:[%s4797 + $0x58] sm:$0xff]
        %v4810 = vld [vmem:[%s4797 + $0x60] sm:$0xff]
        %v4811 = vld [vmem:[%s4797 + $0x68] sm:$0xff]
        %v4812 = vld [vmem:[%s4797 + $0x70] sm:$0xff]
        %v4813 = vld [vmem:[%s4797 + $0x78] sm:$0xff]
        %v4814 = vadd.f32 %v4757, %v4798
        %v4815 = vadd.f32 %v4759, %v4799
        %v4816 = vadd.f32 %v4762, %v4800
        %v4817 = vadd.f32 %v4764, %v4801
        %v4818 = vadd.f32 %v4767, %v4802
        %v4819 = vadd.f32 %v4769, %v4803
        %v4820 = vadd.f32 %v4772, %v4804
        %v4821 = vadd.f32 %v4774, %v4805
        %v4822 = vadd.f32 %v4777, %v4806
        %v4823 = vadd.f32 %v4779, %v4807
        %v4824 = vadd.f32 %v4782, %v4808
        %v4825 = vadd.f32 %v4784, %v4809
        %v4826 = vadd.f32 %v4787, %v4810
        %v4827 = vadd.f32 %v4789, %v4811
        %v4828 = vadd.f32 %v4792, %v4812
        %v4829 = vadd.f32 %v4794, %v4813
        %v4830 = vmax.f32 %v4814, 0.0
        %v4831 = vmax.f32 %v4815, 0.0
        %v4832 = vmax.f32 %v4816, 0.0
        %v4833 = vmax.f32 %v4817, 0.0
        %v4834 = vmax.f32 %v4818, 0.0
        %v4835 = vmax.f32 %v4819, 0.0
        %v4836 = vmax.f32 %v4820, 0.0
        %v4837 = vmax.f32 %v4821, 0.0
        %v4838 = vmax.f32 %v4822, 0.0
        %v4839 = vmax.f32 %v4823, 0.0
        %v4840 = vmax.f32 %v4824, 0.0
        %v4841 = vmax.f32 %v4825, 0.0
        %v4842 = vmax.f32 %v4826, 0.0
        %v4843 = vmax.f32 %v4827, 0.0
        %v4844 = vmax.f32 %v4828, 0.0
        %v4845 = vmax.f32 %v4829, 0.0
        %s4846 = scalar_lea.vmem %s348, %s4796 [#allocation11]
        %4847 = vst [vmem:[%s4846] sm:$0xff] %v4830
        %4848 = vst [vmem:[%s4846 + $0x8] sm:$0xff] %v4831
        %4849 = vst [vmem:[%s4846 + $0x10] sm:$0xff] %v4832
        %4850 = vst [vmem:[%s4846 + $0x18] sm:$0xff] %v4833
        %4851 = vst [vmem:[%s4846 + $0x20] sm:$0xff] %v4834
        %4852 = vst [vmem:[%s4846 + $0x28] sm:$0xff] %v4835
        %4853 = vst [vmem:[%s4846 + $0x30] sm:$0xff] %v4836
        %4854 = vst [vmem:[%s4846 + $0x38] sm:$0xff] %v4837
        %4855 = vst [vmem:[%s4846 + $0x40] sm:$0xff] %v4838
        %4856 = vst [vmem:[%s4846 + $0x48] sm:$0xff] %v4839
        %4857 = vst [vmem:[%s4846 + $0x50] sm:$0xff] %v4840
        %4858 = vst [vmem:[%s4846 + $0x58] sm:$0xff] %v4841
        %4859 = vst [vmem:[%s4846 + $0x60] sm:$0xff] %v4842
        %4860 = vst [vmem:[%s4846 + $0x68] sm:$0xff] %v4843
        %4861 = vst [vmem:[%s4846 + $0x70] sm:$0xff] %v4844
        %4862 = vst [vmem:[%s4846 + $0x78] sm:$0xff] %v4845
        %s4863 = sand.u32 %s186, 1
        %s4864 = scalar_lea.sflag [#allocation5], %s4863
        %s4865 = sand.u32 %s186, 1
        %s4866 = smul.addr %s4865, 256
        %s4867 = scalar_lea.vmem [#allocation11], %s4866
        // Predicated region
        $region65: #{tpu_custom_call.1} parent=47 // pred_check
          %p4868 = pneg %p196
        $region66: #{tpu_custom_call.1} parent=47 // pred_check_branch
          %4870 = sbr.rel (%p4868) target = $region68
        $region67: #{tpu_custom_call.1} parent=47 // pred_region
          %4872 = vsyncadd %s4864, 0
          %s4873 = smul.addr %s26, 32
          %s4874 = smul.addr %s4873, 8
          %s4875 = scalar_lea.hbm %s7, %s4874
          %s4876 = sshll.u32 %s4867, 4
          %s4877 = int_to_ptr.vmem [resolvable:$true] %s4876
          %s4878 = sshll.u32 %s4875, 4
          %s4879 = int_to_ptr.hbm [resolvable:$true] %s4878
          %4884 = dma.vmem_to_hbm [thread:$0]  %s4877, 4096, %s4879, %s4864, 128, 128, 8
        $region68: #{tpu_custom_call.1} parent=47 // pred_fallthru
          _
      $region48: #{tpu_custom_call.1} parent=5 // pred_fallthru
        _
      %p4885 = scmp.le.s32.totalorder 2, %s21
      // Predicated region
      $region69: #{tpu_custom_call.1} parent=5 // pred_check
        %p4886 = pneg %p4885
      $region70: #{tpu_custom_call.1} parent=5 // pred_check_branch
        %4888 = sbr.rel (%p4886) target = $region72
      $region71: #{tpu_custom_call.1} parent=5 // pred_region
        %s4889 = ssub.s32 %s21, 2
        // Predicated region
        $region73: #{tpu_custom_call.1} parent=71 // pred_check
          %p4890 = pneg %p202
        $region74: #{tpu_custom_call.1} parent=71 // pred_check_branch
          %4892 = sbr.rel (%p4890) target = $region76
        $region75: #{tpu_custom_call.1} parent=71 // pred_region
          %s4893 = sand.u32 %s187, 1
          %s4894 = scalar_lea.sflag [#allocation5], %s4893
          %s4895 = sand.u32 %s187, 1
          %s4896 = smul.addr %s4895, 256
          %s4897 = scalar_lea.vmem [#allocation11], %s4896
          %4899 = dma.done %s4894, 4096
        $region76: #{tpu_custom_call.1} parent=71 // pred_fallthru
          _
      $region72: #{tpu_custom_call.1} parent=5 // pred_fallthru
        _
    $region6: #{tpu_custom_call.1} parent=1 // loop_footer
      %s25 = sadd.s32 1, %s21
    $region7: #{tpu_custom_call.1} parent=1 // loop_footer_branch
      %20 = sbr.rel target = $region3
    $region8: #{tpu_custom_call.1} parent=1 // loop_exit
      _
    %4900 = vsyncpa [#allocation4], 1
    %s4901 = scalar_lea.sflag [#allocation4], 1
    %4902 = vsyncpa %s4901, 1
    %4903 = vsyncpa [#allocation7], 1
    %4904 = vsyncpa [#allocation10], 1
    %4905 = vsyncpa [#allocation5], 1
    %s4906 = scalar_lea.sflag [#allocation5], 1
    %4907 = vsyncpa %s4906, 1

</llo_original>
